<compile_context>
chip_gen: v5e
topology: v5e:2x2
jax: 0.10.0
libtpu: 0.0.40
codegen_flags: <defaults>
</compile_context>

<pallas_src>
import jax
import jax.numpy as jnp
from jax import lax
from jax.experimental import pallas as pl
from jax.experimental.pallas import tpu as pltpu


# ---------------------------------------------------------------------------
# Fused GRU + decoder kernel (single invocation, no grid).
# ---------------------------------------------------------------------------
def gru_decoder_kernel(emb_ref, wih_ref, whh_ref, bx_ref, bhn_ref, h0_ref,
                       dec_w_ref, dec_b_ref, out_ref, gx_scr):
    S, Bp, E = emb_ref.shape          # time-major, batch padded to sublanes
    H = h0_ref.shape[-1]
    G = 3 * H

    # ---- Hoisted input projection: one MXU matmul for all timesteps -------
    # gx[t, b, :] = x_{t,b} @ [W_ir^T | W_iz^T | W_in^T] + folded biases
    emb2d = emb_ref[...].reshape(S * Bp, E)
    gx2d = jnp.dot(emb2d, wih_ref[...],
                   preferred_element_type=jnp.float32) + bx_ref[...]
    gx_scr[...] = gx2d.reshape(S, Bp, G)

    whh = whh_ref[...]                # (H, 3H), VMEM-resident, hoisted
    bhn = bhn_ref[...]                # (1, H)   b_hh for the n gate
    h0 = h0_ref[...]                  # (Bp, H)

    # ---- Serial recurrence: one lane-dense (Bp,H)@(H,3H) dot per step -----
    def step(t, carry):
        h, acc = carry
        gx_t = gx_scr[t]              # (Bp, 3H) precomputed input gates
        gh = jnp.dot(h, whh, preferred_element_type=jnp.float32)   # (Bp, 3H)
        r = jax.nn.sigmoid(gx_t[:, 0:H] + gh[:, 0:H])
        z = jax.nn.sigmoid(gx_t[:, H:2 * H] + gh[:, H:2 * H])
        n = jnp.tanh(gx_t[:, 2 * H:G] + r * (gh[:, 2 * H:G] + bhn))
        h_new = n + z * (h - n)       # == (1 - z) * n + z * h
        # Fused decoder: accumulate dec_w[t] * h_t[:, H-1] (scalar from SMEM).
        acc = acc + h_new[:, H - 1:H] * dec_w_ref[t]
        return h_new, acc

    _, acc = lax.fori_loop(
        0, S, step, (h0, jnp.zeros((Bp, 1), jnp.float32)), unroll=True)

    out_ref[...] = acc + dec_b_ref[0]


def gru_decoder_fused(emb_tm, wih_cat, whh_cat, bx, bhn, h0, dec_w, dec_b):
    S, Bp, E = emb_tm.shape
    H = h0.shape[-1]
    G = 3 * H
    return pl.pallas_call(
        gru_decoder_kernel,
        out_shape=jax.ShapeDtypeStruct((Bp, 1), jnp.float32),
        in_specs=[
            pl.BlockSpec(memory_space=pltpu.MemorySpace.VMEM),   # emb (S,Bp,E)
            pl.BlockSpec(memory_space=pltpu.MemorySpace.VMEM),   # W_ih (E,3H)
            pl.BlockSpec(memory_space=pltpu.MemorySpace.VMEM),   # W_hh (H,3H)
            pl.BlockSpec(memory_space=pltpu.MemorySpace.VMEM),   # bx   (1,3H)
            pl.BlockSpec(memory_space=pltpu.MemorySpace.VMEM),   # bhn  (1,H)
            pl.BlockSpec(memory_space=pltpu.MemorySpace.VMEM),   # h0   (Bp,H)
            pl.BlockSpec(memory_space=pltpu.MemorySpace.SMEM),   # dec_w (S,)
            pl.BlockSpec(memory_space=pltpu.MemorySpace.SMEM),   # dec_b (1,)
        ],
        out_specs=pl.BlockSpec(memory_space=pltpu.MemorySpace.VMEM),
        scratch_shapes=[pltpu.VMEM((S, Bp, G), jnp.float32)],    # input gates
    )(emb_tm, wih_cat, whh_cat, bx, bhn, h0, dec_w, dec_b)


# ---------------------------------------------------------------------------
# Parameter packing (PyTorch GRU layout -> kernel layout).
# ---------------------------------------------------------------------------
def pack_gru_params(params, H):
    w_ih = params["w_ih"]             # (3H, E), gate rows stacked (r, z, n)
    w_hh = params["w_hh"]             # (3H, H)
    b_ih = params["b_ih"]             # (3H,)
    b_hh = params["b_hh"]             # (3H,)
    wih_cat = w_ih.T                  # (E, 3H): x @ [W_ir^T|W_iz^T|W_in^T]
    whh_cat = w_hh.T                  # (H, 3H)
    # Fold r/z biases (b_ih + b_hh) into the hoisted projection; keep b_in
    # there too.  b_hn stays separate (inside the r * (.) term).
    bx = jnp.concatenate(
        [b_ih[:2 * H] + b_hh[:2 * H], b_ih[2 * H:]])[None, :]    # (1, 3H)
    bhn = b_hh[2 * H:][None, :]                                  # (1, H)
    dec_w = params["dec_w"].reshape(-1)                          # (H,) == (S,)
    dec_b = params["dec_b"].reshape(1)                           # (1,)
    return wih_cat, whh_cat, bx, bhn, dec_w, dec_b


# ---------------------------------------------------------------------------
# Full forward: Embedding gather (plain JAX glue) -> fused GRU+decoder kernel.
# ---------------------------------------------------------------------------
def rnn_forward(inputs, params, h0):
    B, S = inputs.shape
    H = h0.shape[-1]
    assert S == H, "decoder(output[:, :, -1]) requires seq_len == hidden_size"

    Bp = -(-B // 8) * 8               # pad batch to sublane width (8)

    # Embedding gather emits time-major activations directly: only the tiny
    # int32 index array is transposed, never the activation tensor.
    emb_tm = jnp.take(params["embedding"], inputs.T, axis=0)     # (S, B, E)
    emb_tm = jnp.pad(emb_tm, ((0, 0), (0, Bp - B), (0, 0)))      # (S, Bp, E)
    h0_p = jnp.pad(h0, ((0, Bp - B), (0, 0)))                    # (Bp, H)

    wih_cat, whh_cat, bx, bhn, dec_w, dec_b = pack_gru_params(params, H)
    y = gru_decoder_fused(emb_tm, wih_cat, whh_cat, bx, bhn,
                          h0_p, dec_w, dec_b)                    # (Bp, 1)
    return y[:B, 0]                                              # .squeeze()


# ---------------------------------------------------------------------------
# Pure-JAX reference (mirrors torch.nn.GRU + Linear semantics).
# ---------------------------------------------------------------------------
def rnn_reference(inputs, params, h0):
    H = h0.shape[-1]
    emb = jnp.take(params["embedding"], inputs, axis=0)          # (B, S, E)
    w_ih, w_hh = params["w_ih"], params["w_hh"]
    b_ih, b_hh = params["b_ih"], params["b_hh"]

    def cell(h, x):
        gi = x @ w_ih.T + b_ih
        gh = h @ w_hh.T + b_hh
        r = jax.nn.sigmoid(gi[:, :H] + gh[:, :H])
        z = jax.nn.sigmoid(gi[:, H:2 * H] + gh[:, H:2 * H])
        n = jnp.tanh(gi[:, 2 * H:] + r * gh[:, 2 * H:])
        h_new = (1.0 - z) * n + z * h
        return h_new, h_new

    xs = jnp.transpose(emb, (1, 0, 2))                           # (S, B, E)
    _, hs = lax.scan(cell, h0, xs)                               # (S, B, H)
    feat = jnp.transpose(hs, (1, 0, 2))[:, :, -1]                # (B, S)
    y = feat @ params["dec_w"].T + params["dec_b"]               # (B, 1)
    return jnp.squeeze(y)


if __name__ == "__main__":
    vocab_size = 50
    B, S, E, H = 2, 32, 16, 32        # S must equal H (see note at top)

    key = jax.random.PRNGKey(0)
    keys = jax.random.split(key, 9)
    scale = 0.1
    params = {
        "embedding": jax.random.normal(keys[0], (vocab_size, E), jnp.float32),
        "w_ih": scale * jax.random.normal(keys[1], (3 * H, E), jnp.float32),
        "w_hh": scale * jax.random.normal(keys[2], (3 * H, H), jnp.float32),
        "b_ih": scale * jax.random.normal(keys[3], (3 * H,), jnp.float32),
        "b_hh": scale * jax.random.normal(keys[4], (3 * H,), jnp.float32),
        "dec_w": scale * jax.random.normal(keys[5], (1, H), jnp.float32),
        "dec_b": scale * jax.random.normal(keys[6], (1,), jnp.float32),
    }
    # init_hidden(): torch.randn(n_layers=1, B, H); take layer 0.
    h0 = jax.random.normal(keys[7], (1, B, H), jnp.float32)[0]
    inputs = jax.random.randint(keys[8], (B, S), 0, vocab_size, dtype=jnp.int32)

    fwd = jax.jit(rnn_forward)
    out = fwd(inputs, params, h0)
    jax.block_until_ready(out)
    assert out.shape == (B,)

    ref = rnn_reference(inputs, params, h0)
    assert jnp.allclose(out, ref, atol=1e-4, rtol=1e-4), (out, ref)
    print("KERNEL_OK")
</pallas_src>

<mosaic_0001>
module attributes {stable_mosaic.version = 11 : i64} {
  func.func @gru_decoder_kernel(%arg0: memref<32x8x16xf32, #tpu.memory_space<vmem>>, %arg1: memref<16x96xf32, #tpu.memory_space<vmem>>, %arg2: memref<32x96xf32, #tpu.memory_space<vmem>>, %arg3: memref<1x96xf32, #tpu.memory_space<vmem>>, %arg4: memref<1x32xf32, #tpu.memory_space<vmem>>, %arg5: memref<8x32xf32, #tpu.memory_space<vmem>>, %arg6: memref<32xf32, #tpu.memory_space<smem>>, %arg7: memref<1xf32, #tpu.memory_space<smem>>, %arg8: memref<8x1xf32, #tpu.memory_space<vmem>>, %arg9: memref<32x8x96xf32, #tpu.memory_space<vmem>>) attributes {dimension_semantics = [], scalar_prefetch = 0 : i64, scratch_operands = 1 : i64, tpu.core_type = #tpu.core_type<tc>} {
    %c0 = arith.constant 0 : index
    %c0_0 = arith.constant 0 : index
    %c0_1 = arith.constant 0 : index
    %0 = vector.load %arg0[%c0, %c0_0, %c0_1] : memref<32x8x16xf32, #tpu.memory_space<vmem>>, vector<32x8x16xf32>
    %1 = vector.shape_cast %0 : vector<32x8x16xf32> to vector<256x16xf32>
    %c0_2 = arith.constant 0 : index
    %c0_3 = arith.constant 0 : index
    %2 = vector.load %arg1[%c0_2, %c0_3] : memref<16x96xf32, #tpu.memory_space<vmem>>, vector<16x96xf32>
    %cst = arith.constant dense<0.000000e+00> : vector<256x96xf32>
    %3 = tpu.matmul %1, %2, %cst {dimension_numbers = #tpu.dot_dimension_numbers<[1], [0], [0], [1], [0, 0, 1, 1], [], []>} : vector<256x16xf32>, vector<16x96xf32>, vector<256x96xf32> -> vector<256x96xf32>
    %c0_4 = arith.constant 0 : index
    %c0_5 = arith.constant 0 : index
    %4 = vector.load %arg3[%c0_4, %c0_5] : memref<1x96xf32, #tpu.memory_space<vmem>>, vector<1x96xf32>
    %5 = vector.broadcast %4 : vector<1x96xf32> to vector<256x96xf32>
    %6 = arith.addf %3, %5 : vector<256x96xf32>
    %7 = vector.shape_cast %6 : vector<256x96xf32> to vector<32x8x96xf32>
    %c0_6 = arith.constant 0 : index
    %c0_7 = arith.constant 0 : index
    %c0_8 = arith.constant 0 : index
    %8 = vector.load %arg9[%c0_6, %c0_7, %c0_8] : memref<32x8x96xf32, #tpu.memory_space<vmem>>, vector<32x8x96xf32>
    tpu.vector_store %arg9[%c0_6, %c0_7, %c0_8], %7 {strides = array<i32>} : memref<32x8x96xf32, #tpu.memory_space<vmem>>, vector<32x8x96xf32>,
    %c0_9 = arith.constant 0 : index
    %c0_10 = arith.constant 0 : index
    %9 = vector.load %arg2[%c0_9, %c0_10] : memref<32x96xf32, #tpu.memory_space<vmem>>, vector<32x96xf32>
    %c0_11 = arith.constant 0 : index
    %c0_12 = arith.constant 0 : index
    %10 = vector.load %arg4[%c0_11, %c0_12] : memref<1x32xf32, #tpu.memory_space<vmem>>, vector<1x32xf32>
    %c0_13 = arith.constant 0 : index
    %c0_14 = arith.constant 0 : index
    %11 = vector.load %arg5[%c0_13, %c0_14] : memref<8x32xf32, #tpu.memory_space<vmem>>, vector<8x32xf32>
    %cst_15 = arith.constant 0.000000e+00 : f32
    %12 = vector.broadcast %cst_15 : f32 to vector<8x1xf32>
    %c0_i32 = arith.constant 0 : i32
    %13 = arith.index_cast %c0_i32 : i32 to index
    %c0_16 = arith.constant 0 : index
    %c0_17 = arith.constant 0 : index
    %14 = vector.load %arg9[%13, %c0_16, %c0_17] : memref<32x8x96xf32, #tpu.memory_space<vmem>>, vector<1x8x96xf32>
    %15 = vector.shape_cast %14 : vector<1x8x96xf32> to vector<8x96xf32>
    %cst_18 = arith.constant dense<0.000000e+00> : vector<8x96xf32>
    %16 = tpu.matmul %11, %9, %cst_18 {dimension_numbers = #tpu.dot_dimension_numbers<[1], [0], [0], [1], [0, 0, 1, 1], [], []>} : vector<8x32xf32>, vector<32x96xf32>, vector<8x96xf32> -> vector<8x96xf32>
    %17 = vector.extract_strided_slice %15 {offsets = [0, 0], sizes = [8, 32], strides = [1, 1]} : vector<8x96xf32> to vector<8x32xf32>
    %18 = vector.extract_strided_slice %16 {offsets = [0, 0], sizes = [8, 32], strides = [1, 1]} : vector<8x96xf32> to vector<8x32xf32>
    %19 = arith.addf %17, %18 : vector<8x32xf32>
    %20 = arith.negf %19 : vector<8x32xf32>
    %21 = math.exp %20 : vector<8x32xf32>
    %cst_19 = arith.constant 1.000000e+00 : f32
    %22 = vector.broadcast %cst_19 : f32 to vector<8x32xf32>
    %23 = arith.addf %22, %21 : vector<8x32xf32>
    %24 = arith.divf %22, %23 : vector<8x32xf32>
    %25 = vector.extract_strided_slice %15 {offsets = [0, 32], sizes = [8, 32], strides = [1, 1]} : vector<8x96xf32> to vector<8x32xf32>
    %26 = vector.extract_strided_slice %16 {offsets = [0, 32], sizes = [8, 32], strides = [1, 1]} : vector<8x96xf32> to vector<8x32xf32>
    %27 = arith.addf %25, %26 : vector<8x32xf32>
    %28 = arith.negf %27 : vector<8x32xf32>
    %29 = math.exp %28 : vector<8x32xf32>
    %cst_20 = arith.constant 1.000000e+00 : f32
    %30 = vector.broadcast %cst_20 : f32 to vector<8x32xf32>
    %31 = arith.addf %30, %29 : vector<8x32xf32>
    %32 = arith.divf %30, %31 : vector<8x32xf32>
    %33 = vector.extract_strided_slice %15 {offsets = [0, 64], sizes = [8, 32], strides = [1, 1]} : vector<8x96xf32> to vector<8x32xf32>
    %34 = vector.extract_strided_slice %16 {offsets = [0, 64], sizes = [8, 32], strides = [1, 1]} : vector<8x96xf32> to vector<8x32xf32>
    %35 = vector.broadcast %10 : vector<1x32xf32> to vector<8x32xf32>
    %36 = arith.addf %34, %35 : vector<8x32xf32>
    %37 = arith.mulf %24, %36 : vector<8x32xf32>
    %38 = arith.addf %33, %37 : vector<8x32xf32>
    %39 = math.tanh %38 : vector<8x32xf32>
    %40 = arith.subf %11, %39 : vector<8x32xf32>
    %41 = arith.mulf %32, %40 : vector<8x32xf32>
    %42 = arith.addf %39, %41 : vector<8x32xf32>
    %43 = vector.extract_strided_slice %42 {offsets = [0, 31], sizes = [8, 1], strides = [1, 1]} : vector<8x32xf32> to vector<8x1xf32>
    %44 = arith.index_cast %c0_i32 : i32 to index
    %45 = memref.load %arg6[%44] : memref<32xf32, #tpu.memory_space<smem>>
    %46 = vector.broadcast %45 : f32 to vector<8x1xf32>
    %47 = arith.mulf %43, %46 : vector<8x1xf32>
    %48 = arith.addf %12, %47 : vector<8x1xf32>
    %c1_i32 = arith.constant 1 : i32
    %49 = arith.index_cast %c1_i32 : i32 to index
    %c0_21 = arith.constant 0 : index
    %c0_22 = arith.constant 0 : index
    %50 = vector.load %arg9[%49, %c0_21, %c0_22] : memref<32x8x96xf32, #tpu.memory_space<vmem>>, vector<1x8x96xf32>
    %51 = vector.shape_cast %50 : vector<1x8x96xf32> to vector<8x96xf32>
    %cst_23 = arith.constant dense<0.000000e+00> : vector<8x96xf32>
    %52 = tpu.matmul %42, %9, %cst_23 {dimension_numbers = #tpu.dot_dimension_numbers<[1], [0], [0], [1], [0, 0, 1, 1], [], []>} : vector<8x32xf32>, vector<32x96xf32>, vector<8x96xf32> -> vector<8x96xf32>
    %53 = vector.extract_strided_slice %51 {offsets = [0, 0], sizes = [8, 32], strides = [1, 1]} : vector<8x96xf32> to vector<8x32xf32>
    %54 = vector.extract_strided_slice %52 {offsets = [0, 0], sizes = [8, 32], strides = [1, 1]} : vector<8x96xf32> to vector<8x32xf32>
    %55 = arith.addf %53, %54 : vector<8x32xf32>
    %56 = arith.negf %55 : vector<8x32xf32>
    %57 = math.exp %56 : vector<8x32xf32>
    %cst_24 = arith.constant 1.000000e+00 : f32
    %58 = vector.broadcast %cst_24 : f32 to vector<8x32xf32>
    %59 = arith.addf %58, %57 : vector<8x32xf32>
    %60 = arith.divf %58, %59 : vector<8x32xf32>
    %61 = vector.extract_strided_slice %51 {offsets = [0, 32], sizes = [8, 32], strides = [1, 1]} : vector<8x96xf32> to vector<8x32xf32>
    %62 = vector.extract_strided_slice %52 {offsets = [0, 32], sizes = [8, 32], strides = [1, 1]} : vector<8x96xf32> to vector<8x32xf32>
    %63 = arith.addf %61, %62 : vector<8x32xf32>
    %64 = arith.negf %63 : vector<8x32xf32>
    %65 = math.exp %64 : vector<8x32xf32>
    %cst_25 = arith.constant 1.000000e+00 : f32
    %66 = vector.broadcast %cst_25 : f32 to vector<8x32xf32>
    %67 = arith.addf %66, %65 : vector<8x32xf32>
    %68 = arith.divf %66, %67 : vector<8x32xf32>
    %69 = vector.extract_strided_slice %51 {offsets = [0, 64], sizes = [8, 32], strides = [1, 1]} : vector<8x96xf32> to vector<8x32xf32>
    %70 = vector.extract_strided_slice %52 {offsets = [0, 64], sizes = [8, 32], strides = [1, 1]} : vector<8x96xf32> to vector<8x32xf32>
    %71 = vector.broadcast %10 : vector<1x32xf32> to vector<8x32xf32>
    %72 = arith.addf %70, %71 : vector<8x32xf32>
    %73 = arith.mulf %60, %72 : vector<8x32xf32>
    %74 = arith.addf %69, %73 : vector<8x32xf32>
    %75 = math.tanh %74 : vector<8x32xf32>
    %76 = arith.subf %42, %75 : vector<8x32xf32>
    %77 = arith.mulf %68, %76 : vector<8x32xf32>
    %78 = arith.addf %75, %77 : vector<8x32xf32>
    %79 = vector.extract_strided_slice %78 {offsets = [0, 31], sizes = [8, 1], strides = [1, 1]} : vector<8x32xf32> to vector<8x1xf32>
    %80 = arith.index_cast %c1_i32 : i32 to index
    %81 = memref.load %arg6[%80] : memref<32xf32, #tpu.memory_space<smem>>
    %82 = vector.broadcast %81 : f32 to vector<8x1xf32>
    %83 = arith.mulf %79, %82 : vector<8x1xf32>
    %84 = arith.addf %48, %83 : vector<8x1xf32>
    %c2_i32 = arith.constant 2 : i32
    %85 = arith.index_cast %c2_i32 : i32 to index
    %c0_26 = arith.constant 0 : index
    %c0_27 = arith.constant 0 : index
    %86 = vector.load %arg9[%85, %c0_26, %c0_27] : memref<32x8x96xf32, #tpu.memory_space<vmem>>, vector<1x8x96xf32>
    %87 = vector.shape_cast %86 : vector<1x8x96xf32> to vector<8x96xf32>
    %cst_28 = arith.constant dense<0.000000e+00> : vector<8x96xf32>
    %88 = tpu.matmul %78, %9, %cst_28 {dimension_numbers = #tpu.dot_dimension_numbers<[1], [0], [0], [1], [0, 0, 1, 1], [], []>} : vector<8x32xf32>, vector<32x96xf32>, vector<8x96xf32> -> vector<8x96xf32>
    %89 = vector.extract_strided_slice %87 {offsets = [0, 0], sizes = [8, 32], strides = [1, 1]} : vector<8x96xf32> to vector<8x32xf32>
    %90 = vector.extract_strided_slice %88 {offsets = [0, 0], sizes = [8, 32], strides = [1, 1]} : vector<8x96xf32> to vector<8x32xf32>
    %91 = arith.addf %89, %90 : vector<8x32xf32>
    %92 = arith.negf %91 : vector<8x32xf32>
    %93 = math.exp %92 : vector<8x32xf32>
    %cst_29 = arith.constant 1.000000e+00 : f32
    %94 = vector.broadcast %cst_29 : f32 to vector<8x32xf32>
    %95 = arith.addf %94, %93 : vector<8x32xf32>
    %96 = arith.divf %94, %95 : vector<8x32xf32>
    %97 = vector.extract_strided_slice %87 {offsets = [0, 32], sizes = [8, 32], strides = [1, 1]} : vector<8x96xf32> to vector<8x32xf32>
    %98 = vector.extract_strided_slice %88 {offsets = [0, 32], sizes = [8, 32], strides = [1, 1]} : vector<8x96xf32> to vector<8x32xf32>
    %99 = arith.addf %97, %98 : vector<8x32xf32>
    %100 = arith.negf %99 : vector<8x32xf32>
    %101 = math.exp %100 : vector<8x32xf32>
    %cst_30 = arith.constant 1.000000e+00 : f32
    %102 = vector.broadcast %cst_30 : f32 to vector<8x32xf32>
    %103 = arith.addf %102, %101 : vector<8x32xf32>
    %104 = arith.divf %102, %103 : vector<8x32xf32>
    %105 = vector.extract_strided_slice %87 {offsets = [0, 64], sizes = [8, 32], strides = [1, 1]} : vector<8x96xf32> to vector<8x32xf32>
    %106 = vector.extract_strided_slice %88 {offsets = [0, 64], sizes = [8, 32], strides = [1, 1]} : vector<8x96xf32> to vector<8x32xf32>
    %107 = vector.broadcast %10 : vector<1x32xf32> to vector<8x32xf32>
    %108 = arith.addf %106, %107 : vector<8x32xf32>
    %109 = arith.mulf %96, %108 : vector<8x32xf32>
    %110 = arith.addf %105, %109 : vector<8x32xf32>
    %111 = math.tanh %110 : vector<8x32xf32>
    %112 = arith.subf %78, %111 : vector<8x32xf32>
    %113 = arith.mulf %104, %112 : vector<8x32xf32>
    %114 = arith.addf %111, %113 : vector<8x32xf32>
    %115 = vector.extract_strided_slice %114 {offsets = [0, 31], sizes = [8, 1], strides = [1, 1]} : vector<8x32xf32> to vector<8x1xf32>
    %116 = arith.index_cast %c2_i32 : i32 to index
    %117 = memref.load %arg6[%116] : memref<32xf32, #tpu.memory_space<smem>>
    %118 = vector.broadcast %117 : f32 to vector<8x1xf32>
    %119 = arith.mulf %115, %118 : vector<8x1xf32>
    %120 = arith.addf %84, %119 : vector<8x1xf32>
    %c3_i32 = arith.constant 3 : i32
    %121 = arith.index_cast %c3_i32 : i32 to index
    %c0_31 = arith.constant 0 : index
    %c0_32 = arith.constant 0 : index
    %122 = vector.load %arg9[%121, %c0_31, %c0_32] : memref<32x8x96xf32, #tpu.memory_space<vmem>>, vector<1x8x96xf32>
    %123 = vector.shape_cast %122 : vector<1x8x96xf32> to vector<8x96xf32>
    %cst_33 = arith.constant dense<0.000000e+00> : vector<8x96xf32>
    %124 = tpu.matmul %114, %9, %cst_33 {dimension_numbers = #tpu.dot_dimension_numbers<[1], [0], [0], [1], [0, 0, 1, 1], [], []>} : vector<8x32xf32>, vector<32x96xf32>, vector<8x96xf32> -> vector<8x96xf32>
    %125 = vector.extract_strided_slice %123 {offsets = [0, 0], sizes = [8, 32], strides = [1, 1]} : vector<8x96xf32> to vector<8x32xf32>
    %126 = vector.extract_strided_slice %124 {offsets = [0, 0], sizes = [8, 32], strides = [1, 1]} : vector<8x96xf32> to vector<8x32xf32>
    %127 = arith.addf %125, %126 : vector<8x32xf32>
    %128 = arith.negf %127 : vector<8x32xf32>
    %129 = math.exp %128 : vector<8x32xf32>
    %cst_34 = arith.constant 1.000000e+00 : f32
    %130 = vector.broadcast %cst_34 : f32 to vector<8x32xf32>
    %131 = arith.addf %130, %129 : vector<8x32xf32>
    %132 = arith.divf %130, %131 : vector<8x32xf32>
    %133 = vector.extract_strided_slice %123 {offsets = [0, 32], sizes = [8, 32], strides = [1, 1]} : vector<8x96xf32> to vector<8x32xf32>
    %134 = vector.extract_strided_slice %124 {offsets = [0, 32], sizes = [8, 32], strides = [1, 1]} : vector<8x96xf32> to vector<8x32xf32>
    %135 = arith.addf %133, %134 : vector<8x32xf32>
    %136 = arith.negf %135 : vector<8x32xf32>
    %137 = math.exp %136 : vector<8x32xf32>
    %cst_35 = arith.constant 1.000000e+00 : f32
    %138 = vector.broadcast %cst_35 : f32 to vector<8x32xf32>
    %139 = arith.addf %138, %137 : vector<8x32xf32>
    %140 = arith.divf %138, %139 : vector<8x32xf32>
    %141 = vector.extract_strided_slice %123 {offsets = [0, 64], sizes = [8, 32], strides = [1, 1]} : vector<8x96xf32> to vector<8x32xf32>
    %142 = vector.extract_strided_slice %124 {offsets = [0, 64], sizes = [8, 32], strides = [1, 1]} : vector<8x96xf32> to vector<8x32xf32>
    %143 = vector.broadcast %10 : vector<1x32xf32> to vector<8x32xf32>
    %144 = arith.addf %142, %143 : vector<8x32xf32>
    %145 = arith.mulf %132, %144 : vector<8x32xf32>
    %146 = arith.addf %141, %145 : vector<8x32xf32>
    %147 = math.tanh %146 : vector<8x32xf32>
    %148 = arith.subf %114, %147 : vector<8x32xf32>
    %149 = arith.mulf %140, %148 : vector<8x32xf32>
    %150 = arith.addf %147, %149 : vector<8x32xf32>
    %151 = vector.extract_strided_slice %150 {offsets = [0, 31], sizes = [8, 1], strides = [1, 1]} : vector<8x32xf32> to vector<8x1xf32>
    %152 = arith.index_cast %c3_i32 : i32 to index
    %153 = memref.load %arg6[%152] : memref<32xf32, #tpu.memory_space<smem>>
    %154 = vector.broadcast %153 : f32 to vector<8x1xf32>
    %155 = arith.mulf %151, %154 : vector<8x1xf32>
    %156 = arith.addf %120, %155 : vector<8x1xf32>
    %c4_i32 = arith.constant 4 : i32
    %157 = arith.index_cast %c4_i32 : i32 to index
    %c0_36 = arith.constant 0 : index
    %c0_37 = arith.constant 0 : index
    %158 = vector.load %arg9[%157, %c0_36, %c0_37] : memref<32x8x96xf32, #tpu.memory_space<vmem>>, vector<1x8x96xf32>
    %159 = vector.shape_cast %158 : vector<1x8x96xf32> to vector<8x96xf32>
    %cst_38 = arith.constant dense<0.000000e+00> : vector<8x96xf32>
    %160 = tpu.matmul %150, %9, %cst_38 {dimension_numbers = #tpu.dot_dimension_numbers<[1], [0], [0], [1], [0, 0, 1, 1], [], []>} : vector<8x32xf32>, vector<32x96xf32>, vector<8x96xf32> -> vector<8x96xf32>
    %161 = vector.extract_strided_slice %159 {offsets = [0, 0], sizes = [8, 32], strides = [1, 1]} : vector<8x96xf32> to vector<8x32xf32>
    %162 = vector.extract_strided_slice %160 {offsets = [0, 0], sizes = [8, 32], strides = [1, 1]} : vector<8x96xf32> to vector<8x32xf32>
    %163 = arith.addf %161, %162 : vector<8x32xf32>
    %164 = arith.negf %163 : vector<8x32xf32>
    %165 = math.exp %164 : vector<8x32xf32>
    %cst_39 = arith.constant 1.000000e+00 : f32
    %166 = vector.broadcast %cst_39 : f32 to vector<8x32xf32>
    %167 = arith.addf %166, %165 : vector<8x32xf32>
    %168 = arith.divf %166, %167 : vector<8x32xf32>
    %169 = vector.extract_strided_slice %159 {offsets = [0, 32], sizes = [8, 32], strides = [1, 1]} : vector<8x96xf32> to vector<8x32xf32>
    %170 = vector.extract_strided_slice %160 {offsets = [0, 32], sizes = [8, 32], strides = [1, 1]} : vector<8x96xf32> to vector<8x32xf32>
    %171 = arith.addf %169, %170 : vector<8x32xf32>
    %172 = arith.negf %171 : vector<8x32xf32>
    %173 = math.exp %172 : vector<8x32xf32>
    %cst_40 = arith.constant 1.000000e+00 : f32
    %174 = vector.broadcast %cst_40 : f32 to vector<8x32xf32>
    %175 = arith.addf %174, %173 : vector<8x32xf32>
    %176 = arith.divf %174, %175 : vector<8x32xf32>
    %177 = vector.extract_strided_slice %159 {offsets = [0, 64], sizes = [8, 32], strides = [1, 1]} : vector<8x96xf32> to vector<8x32xf32>
    %178 = vector.extract_strided_slice %160 {offsets = [0, 64], sizes = [8, 32], strides = [1, 1]} : vector<8x96xf32> to vector<8x32xf32>
    %179 = vector.broadcast %10 : vector<1x32xf32> to vector<8x32xf32>
    %180 = arith.addf %178, %179 : vector<8x32xf32>
    %181 = arith.mulf %168, %180 : vector<8x32xf32>
    %182 = arith.addf %177, %181 : vector<8x32xf32>
    %183 = math.tanh %182 : vector<8x32xf32>
    %184 = arith.subf %150, %183 : vector<8x32xf32>
    %185 = arith.mulf %176, %184 : vector<8x32xf32>
    %186 = arith.addf %183, %185 : vector<8x32xf32>
    %187 = vector.extract_strided_slice %186 {offsets = [0, 31], sizes = [8, 1], strides = [1, 1]} : vector<8x32xf32> to vector<8x1xf32>
    %188 = arith.index_cast %c4_i32 : i32 to index
    %189 = memref.load %arg6[%188] : memref<32xf32, #tpu.memory_space<smem>>
    %190 = vector.broadcast %189 : f32 to vector<8x1xf32>
    %191 = arith.mulf %187, %190 : vector<8x1xf32>
    %192 = arith.addf %156, %191 : vector<8x1xf32>
    %c5_i32 = arith.constant 5 : i32
    %193 = arith.index_cast %c5_i32 : i32 to index
    %c0_41 = arith.constant 0 : index
    %c0_42 = arith.constant 0 : index
    %194 = vector.load %arg9[%193, %c0_41, %c0_42] : memref<32x8x96xf32, #tpu.memory_space<vmem>>, vector<1x8x96xf32>
    %195 = vector.shape_cast %194 : vector<1x8x96xf32> to vector<8x96xf32>
    %cst_43 = arith.constant dense<0.000000e+00> : vector<8x96xf32>
    %196 = tpu.matmul %186, %9, %cst_43 {dimension_numbers = #tpu.dot_dimension_numbers<[1], [0], [0], [1], [0, 0, 1, 1], [], []>} : vector<8x32xf32>, vector<32x96xf32>, vector<8x96xf32> -> vector<8x96xf32>
    %197 = vector.extract_strided_slice %195 {offsets = [0, 0], sizes = [8, 32], strides = [1, 1]} : vector<8x96xf32> to vector<8x32xf32>
    %198 = vector.extract_strided_slice %196 {offsets = [0, 0], sizes = [8, 32], strides = [1, 1]} : vector<8x96xf32> to vector<8x32xf32>
    %199 = arith.addf %197, %198 : vector<8x32xf32>
    %200 = arith.negf %199 : vector<8x32xf32>
    %201 = math.exp %200 : vector<8x32xf32>
    %cst_44 = arith.constant 1.000000e+00 : f32
    %202 = vector.broadcast %cst_44 : f32 to vector<8x32xf32>
    %203 = arith.addf %202, %201 : vector<8x32xf32>
    %204 = arith.divf %202, %203 : vector<8x32xf32>
    %205 = vector.extract_strided_slice %195 {offsets = [0, 32], sizes = [8, 32], strides = [1, 1]} : vector<8x96xf32> to vector<8x32xf32>
    %206 = vector.extract_strided_slice %196 {offsets = [0, 32], sizes = [8, 32], strides = [1, 1]} : vector<8x96xf32> to vector<8x32xf32>
    %207 = arith.addf %205, %206 : vector<8x32xf32>
    %208 = arith.negf %207 : vector<8x32xf32>
    %209 = math.exp %208 : vector<8x32xf32>
    %cst_45 = arith.constant 1.000000e+00 : f32
    %210 = vector.broadcast %cst_45 : f32 to vector<8x32xf32>
    %211 = arith.addf %210, %209 : vector<8x32xf32>
    %212 = arith.divf %210, %211 : vector<8x32xf32>
    %213 = vector.extract_strided_slice %195 {offsets = [0, 64], sizes = [8, 32], strides = [1, 1]} : vector<8x96xf32> to vector<8x32xf32>
    %214 = vector.extract_strided_slice %196 {offsets = [0, 64], sizes = [8, 32], strides = [1, 1]} : vector<8x96xf32> to vector<8x32xf32>
    %215 = vector.broadcast %10 : vector<1x32xf32> to vector<8x32xf32>
    %216 = arith.addf %214, %215 : vector<8x32xf32>
    %217 = arith.mulf %204, %216 : vector<8x32xf32>
    %218 = arith.addf %213, %217 : vector<8x32xf32>
    %219 = math.tanh %218 : vector<8x32xf32>
    %220 = arith.subf %186, %219 : vector<8x32xf32>
    %221 = arith.mulf %212, %220 : vector<8x32xf32>
    %222 = arith.addf %219, %221 : vector<8x32xf32>
    %223 = vector.extract_strided_slice %222 {offsets = [0, 31], sizes = [8, 1], strides = [1, 1]} : vector<8x32xf32> to vector<8x1xf32>
    %224 = arith.index_cast %c5_i32 : i32 to index
    %225 = memref.load %arg6[%224] : memref<32xf32, #tpu.memory_space<smem>>
    %226 = vector.broadcast %225 : f32 to vector<8x1xf32>
    %227 = arith.mulf %223, %226 : vector<8x1xf32>
    %228 = arith.addf %192, %227 : vector<8x1xf32>
    %c6_i32 = arith.constant 6 : i32
    %229 = arith.index_cast %c6_i32 : i32 to index
    %c0_46 = arith.constant 0 : index
    %c0_47 = arith.constant 0 : index
    %230 = vector.load %arg9[%229, %c0_46, %c0_47] : memref<32x8x96xf32, #tpu.memory_space<vmem>>, vector<1x8x96xf32>
    %231 = vector.shape_cast %230 : vector<1x8x96xf32> to vector<8x96xf32>
    %cst_48 = arith.constant dense<0.000000e+00> : vector<8x96xf32>
    %232 = tpu.matmul %222, %9, %cst_48 {dimension_numbers = #tpu.dot_dimension_numbers<[1], [0], [0], [1], [0, 0, 1, 1], [], []>} : vector<8x32xf32>, vector<32x96xf32>, vector<8x96xf32> -> vector<8x96xf32>
    %233 = vector.extract_strided_slice %231 {offsets = [0, 0], sizes = [8, 32], strides = [1, 1]} : vector<8x96xf32> to vector<8x32xf32>
    %234 = vector.extract_strided_slice %232 {offsets = [0, 0], sizes = [8, 32], strides = [1, 1]} : vector<8x96xf32> to vector<8x32xf32>
    %235 = arith.addf %233, %234 : vector<8x32xf32>
    %236 = arith.negf %235 : vector<8x32xf32>
    %237 = math.exp %236 : vector<8x32xf32>
    %cst_49 = arith.constant 1.000000e+00 : f32
    %238 = vector.broadcast %cst_49 : f32 to vector<8x32xf32>
    %239 = arith.addf %238, %237 : vector<8x32xf32>
    %240 = arith.divf %238, %239 : vector<8x32xf32>
    %241 = vector.extract_strided_slice %231 {offsets = [0, 32], sizes = [8, 32], strides = [1, 1]} : vector<8x96xf32> to vector<8x32xf32>
    %242 = vector.extract_strided_slice %232 {offsets = [0, 32], sizes = [8, 32], strides = [1, 1]} : vector<8x96xf32> to vector<8x32xf32>
    %243 = arith.addf %241, %242 : vector<8x32xf32>
    %244 = arith.negf %243 : vector<8x32xf32>
    %245 = math.exp %244 : vector<8x32xf32>
    %cst_50 = arith.constant 1.000000e+00 : f32
    %246 = vector.broadcast %cst_50 : f32 to vector<8x32xf32>
    %247 = arith.addf %246, %245 : vector<8x32xf32>
    %248 = arith.divf %246, %247 : vector<8x32xf32>
    %249 = vector.extract_strided_slice %231 {offsets = [0, 64], sizes = [8, 32], strides = [1, 1]} : vector<8x96xf32> to vector<8x32xf32>
    %250 = vector.extract_strided_slice %232 {offsets = [0, 64], sizes = [8, 32], strides = [1, 1]} : vector<8x96xf32> to vector<8x32xf32>
    %251 = vector.broadcast %10 : vector<1x32xf32> to vector<8x32xf32>
    %252 = arith.addf %250, %251 : vector<8x32xf32>
    %253 = arith.mulf %240, %252 : vector<8x32xf32>
    %254 = arith.addf %249, %253 : vector<8x32xf32>
    %255 = math.tanh %254 : vector<8x32xf32>
    %256 = arith.subf %222, %255 : vector<8x32xf32>
    %257 = arith.mulf %248, %256 : vector<8x32xf32>
    %258 = arith.addf %255, %257 : vector<8x32xf32>
    %259 = vector.extract_strided_slice %258 {offsets = [0, 31], sizes = [8, 1], strides = [1, 1]} : vector<8x32xf32> to vector<8x1xf32>
    %260 = arith.index_cast %c6_i32 : i32 to index
    %261 = memref.load %arg6[%260] : memref<32xf32, #tpu.memory_space<smem>>
    %262 = vector.broadcast %261 : f32 to vector<8x1xf32>
    %263 = arith.mulf %259, %262 : vector<8x1xf32>
    %264 = arith.addf %228, %263 : vector<8x1xf32>
    %c7_i32 = arith.constant 7 : i32
    %265 = arith.index_cast %c7_i32 : i32 to index
    %c0_51 = arith.constant 0 : index
    %c0_52 = arith.constant 0 : index
    %266 = vector.load %arg9[%265, %c0_51, %c0_52] : memref<32x8x96xf32, #tpu.memory_space<vmem>>, vector<1x8x96xf32>
    %267 = vector.shape_cast %266 : vector<1x8x96xf32> to vector<8x96xf32>
    %cst_53 = arith.constant dense<0.000000e+00> : vector<8x96xf32>
    %268 = tpu.matmul %258, %9, %cst_53 {dimension_numbers = #tpu.dot_dimension_numbers<[1], [0], [0], [1], [0, 0, 1, 1], [], []>} : vector<8x32xf32>, vector<32x96xf32>, vector<8x96xf32> -> vector<8x96xf32>
    %269 = vector.extract_strided_slice %267 {offsets = [0, 0], sizes = [8, 32], strides = [1, 1]} : vector<8x96xf32> to vector<8x32xf32>
    %270 = vector.extract_strided_slice %268 {offsets = [0, 0], sizes = [8, 32], strides = [1, 1]} : vector<8x96xf32> to vector<8x32xf32>
    %271 = arith.addf %269, %270 : vector<8x32xf32>
    %272 = arith.negf %271 : vector<8x32xf32>
    %273 = math.exp %272 : vector<8x32xf32>
    %cst_54 = arith.constant 1.000000e+00 : f32
    %274 = vector.broadcast %cst_54 : f32 to vector<8x32xf32>
    %275 = arith.addf %274, %273 : vector<8x32xf32>
    %276 = arith.divf %274, %275 : vector<8x32xf32>
    %277 = vector.extract_strided_slice %267 {offsets = [0, 32], sizes = [8, 32], strides = [1, 1]} : vector<8x96xf32> to vector<8x32xf32>
    %278 = vector.extract_strided_slice %268 {offsets = [0, 32], sizes = [8, 32], strides = [1, 1]} : vector<8x96xf32> to vector<8x32xf32>
    %279 = arith.addf %277, %278 : vector<8x32xf32>
    %280 = arith.negf %279 : vector<8x32xf32>
    %281 = math.exp %280 : vector<8x32xf32>
    %cst_55 = arith.constant 1.000000e+00 : f32
    %282 = vector.broadcast %cst_55 : f32 to vector<8x32xf32>
    %283 = arith.addf %282, %281 : vector<8x32xf32>
    %284 = arith.divf %282, %283 : vector<8x32xf32>
    %285 = vector.extract_strided_slice %267 {offsets = [0, 64], sizes = [8, 32], strides = [1, 1]} : vector<8x96xf32> to vector<8x32xf32>
    %286 = vector.extract_strided_slice %268 {offsets = [0, 64], sizes = [8, 32], strides = [1, 1]} : vector<8x96xf32> to vector<8x32xf32>
    %287 = vector.broadcast %10 : vector<1x32xf32> to vector<8x32xf32>
    %288 = arith.addf %286, %287 : vector<8x32xf32>
    %289 = arith.mulf %276, %288 : vector<8x32xf32>
    %290 = arith.addf %285, %289 : vector<8x32xf32>
    %291 = math.tanh %290 : vector<8x32xf32>
    %292 = arith.subf %258, %291 : vector<8x32xf32>
    %293 = arith.mulf %284, %292 : vector<8x32xf32>
    %294 = arith.addf %291, %293 : vector<8x32xf32>
    %295 = vector.extract_strided_slice %294 {offsets = [0, 31], sizes = [8, 1], strides = [1, 1]} : vector<8x32xf32> to vector<8x1xf32>
    %296 = arith.index_cast %c7_i32 : i32 to index
    %297 = memref.load %arg6[%296] : memref<32xf32, #tpu.memory_space<smem>>
    %298 = vector.broadcast %297 : f32 to vector<8x1xf32>
    %299 = arith.mulf %295, %298 : vector<8x1xf32>
    %300 = arith.addf %264, %299 : vector<8x1xf32>
    %c8_i32 = arith.constant 8 : i32
    %301 = arith.index_cast %c8_i32 : i32 to index
    %c0_56 = arith.constant 0 : index
    %c0_57 = arith.constant 0 : index
    %302 = vector.load %arg9[%301, %c0_56, %c0_57] : memref<32x8x96xf32, #tpu.memory_space<vmem>>, vector<1x8x96xf32>
    %303 = vector.shape_cast %302 : vector<1x8x96xf32> to vector<8x96xf32>
    %cst_58 = arith.constant dense<0.000000e+00> : vector<8x96xf32>
    %304 = tpu.matmul %294, %9, %cst_58 {dimension_numbers = #tpu.dot_dimension_numbers<[1], [0], [0], [1], [0, 0, 1, 1], [], []>} : vector<8x32xf32>, vector<32x96xf32>, vector<8x96xf32> -> vector<8x96xf32>
    %305 = vector.extract_strided_slice %303 {offsets = [0, 0], sizes = [8, 32], strides = [1, 1]} : vector<8x96xf32> to vector<8x32xf32>
    %306 = vector.extract_strided_slice %304 {offsets = [0, 0], sizes = [8, 32], strides = [1, 1]} : vector<8x96xf32> to vector<8x32xf32>
    %307 = arith.addf %305, %306 : vector<8x32xf32>
    %308 = arith.negf %307 : vector<8x32xf32>
    %309 = math.exp %308 : vector<8x32xf32>
    %cst_59 = arith.constant 1.000000e+00 : f32
    %310 = vector.broadcast %cst_59 : f32 to vector<8x32xf32>
    %311 = arith.addf %310, %309 : vector<8x32xf32>
    %312 = arith.divf %310, %311 : vector<8x32xf32>
    %313 = vector.extract_strided_slice %303 {offsets = [0, 32], sizes = [8, 32], strides = [1, 1]} : vector<8x96xf32> to vector<8x32xf32>
    %314 = vector.extract_strided_slice %304 {offsets = [0, 32], sizes = [8, 32], strides = [1, 1]} : vector<8x96xf32> to vector<8x32xf32>
    %315 = arith.addf %313, %314 : vector<8x32xf32>
    %316 = arith.negf %315 : vector<8x32xf32>
    %317 = math.exp %316 : vector<8x32xf32>
    %cst_60 = arith.constant 1.000000e+00 : f32
    %318 = vector.broadcast %cst_60 : f32 to vector<8x32xf32>
    %319 = arith.addf %318, %317 : vector<8x32xf32>
    %320 = arith.divf %318, %319 : vector<8x32xf32>
    %321 = vector.extract_strided_slice %303 {offsets = [0, 64], sizes = [8, 32], strides = [1, 1]} : vector<8x96xf32> to vector<8x32xf32>
    %322 = vector.extract_strided_slice %304 {offsets = [0, 64], sizes = [8, 32], strides = [1, 1]} : vector<8x96xf32> to vector<8x32xf32>
    %323 = vector.broadcast %10 : vector<1x32xf32> to vector<8x32xf32>
    %324 = arith.addf %322, %323 : vector<8x32xf32>
    %325 = arith.mulf %312, %324 : vector<8x32xf32>
    %326 = arith.addf %321, %325 : vector<8x32xf32>
    %327 = math.tanh %326 : vector<8x32xf32>
    %328 = arith.subf %294, %327 : vector<8x32xf32>
    %329 = arith.mulf %320, %328 : vector<8x32xf32>
    %330 = arith.addf %327, %329 : vector<8x32xf32>
    %331 = vector.extract_strided_slice %330 {offsets = [0, 31], sizes = [8, 1], strides = [1, 1]} : vector<8x32xf32> to vector<8x1xf32>
    %332 = arith.index_cast %c8_i32 : i32 to index
    %333 = memref.load %arg6[%332] : memref<32xf32, #tpu.memory_space<smem>>
    %334 = vector.broadcast %333 : f32 to vector<8x1xf32>
    %335 = arith.mulf %331, %334 : vector<8x1xf32>
    %336 = arith.addf %300, %335 : vector<8x1xf32>
    %c9_i32 = arith.constant 9 : i32
    %337 = arith.index_cast %c9_i32 : i32 to index
    %c0_61 = arith.constant 0 : index
    %c0_62 = arith.constant 0 : index
    %338 = vector.load %arg9[%337, %c0_61, %c0_62] : memref<32x8x96xf32, #tpu.memory_space<vmem>>, vector<1x8x96xf32>
    %339 = vector.shape_cast %338 : vector<1x8x96xf32> to vector<8x96xf32>
    %cst_63 = arith.constant dense<0.000000e+00> : vector<8x96xf32>
    %340 = tpu.matmul %330, %9, %cst_63 {dimension_numbers = #tpu.dot_dimension_numbers<[1], [0], [0], [1], [0, 0, 1, 1], [], []>} : vector<8x32xf32>, vector<32x96xf32>, vector<8x96xf32> -> vector<8x96xf32>
    %341 = vector.extract_strided_slice %339 {offsets = [0, 0], sizes = [8, 32], strides = [1, 1]} : vector<8x96xf32> to vector<8x32xf32>
    %342 = vector.extract_strided_slice %340 {offsets = [0, 0], sizes = [8, 32], strides = [1, 1]} : vector<8x96xf32> to vector<8x32xf32>
    %343 = arith.addf %341, %342 : vector<8x32xf32>
    %344 = arith.negf %343 : vector<8x32xf32>
    %345 = math.exp %344 : vector<8x32xf32>
    %cst_64 = arith.constant 1.000000e+00 : f32
    %346 = vector.broadcast %cst_64 : f32 to vector<8x32xf32>
    %347 = arith.addf %346, %345 : vector<8x32xf32>
    %348 = arith.divf %346, %347 : vector<8x32xf32>
    %349 = vector.extract_strided_slice %339 {offsets = [0, 32], sizes = [8, 32], strides = [1, 1]} : vector<8x96xf32> to vector<8x32xf32>
    %350 = vector.extract_strided_slice %340 {offsets = [0, 32], sizes = [8, 32], strides = [1, 1]} : vector<8x96xf32> to vector<8x32xf32>
    %351 = arith.addf %349, %350 : vector<8x32xf32>
    %352 = arith.negf %351 : vector<8x32xf32>
    %353 = math.exp %352 : vector<8x32xf32>
    %cst_65 = arith.constant 1.000000e+00 : f32
    %354 = vector.broadcast %cst_65 : f32 to vector<8x32xf32>
    %355 = arith.addf %354, %353 : vector<8x32xf32>
    %356 = arith.divf %354, %355 : vector<8x32xf32>
    %357 = vector.extract_strided_slice %339 {offsets = [0, 64], sizes = [8, 32], strides = [1, 1]} : vector<8x96xf32> to vector<8x32xf32>
    %358 = vector.extract_strided_slice %340 {offsets = [0, 64], sizes = [8, 32], strides = [1, 1]} : vector<8x96xf32> to vector<8x32xf32>
    %359 = vector.broadcast %10 : vector<1x32xf32> to vector<8x32xf32>
    %360 = arith.addf %358, %359 : vector<8x32xf32>
    %361 = arith.mulf %348, %360 : vector<8x32xf32>
    %362 = arith.addf %357, %361 : vector<8x32xf32>
    %363 = math.tanh %362 : vector<8x32xf32>
    %364 = arith.subf %330, %363 : vector<8x32xf32>
    %365 = arith.mulf %356, %364 : vector<8x32xf32>
    %366 = arith.addf %363, %365 : vector<8x32xf32>
    %367 = vector.extract_strided_slice %366 {offsets = [0, 31], sizes = [8, 1], strides = [1, 1]} : vector<8x32xf32> to vector<8x1xf32>
    %368 = arith.index_cast %c9_i32 : i32 to index
    %369 = memref.load %arg6[%368] : memref<32xf32, #tpu.memory_space<smem>>
    %370 = vector.broadcast %369 : f32 to vector<8x1xf32>
    %371 = arith.mulf %367, %370 : vector<8x1xf32>
    %372 = arith.addf %336, %371 : vector<8x1xf32>
    %c10_i32 = arith.constant 10 : i32
    %373 = arith.index_cast %c10_i32 : i32 to index
    %c0_66 = arith.constant 0 : index
    %c0_67 = arith.constant 0 : index
    %374 = vector.load %arg9[%373, %c0_66, %c0_67] : memref<32x8x96xf32, #tpu.memory_space<vmem>>, vector<1x8x96xf32>
    %375 = vector.shape_cast %374 : vector<1x8x96xf32> to vector<8x96xf32>
    %cst_68 = arith.constant dense<0.000000e+00> : vector<8x96xf32>
    %376 = tpu.matmul %366, %9, %cst_68 {dimension_numbers = #tpu.dot_dimension_numbers<[1], [0], [0], [1], [0, 0, 1, 1], [], []>} : vector<8x32xf32>, vector<32x96xf32>, vector<8x96xf32> -> vector<8x96xf32>
    %377 = vector.extract_strided_slice %375 {offsets = [0, 0], sizes = [8, 32], strides = [1, 1]} : vector<8x96xf32> to vector<8x32xf32>
    %378 = vector.extract_strided_slice %376 {offsets = [0, 0], sizes = [8, 32], strides = [1, 1]} : vector<8x96xf32> to vector<8x32xf32>
    %379 = arith.addf %377, %378 : vector<8x32xf32>
    %380 = arith.negf %379 : vector<8x32xf32>
    %381 = math.exp %380 : vector<8x32xf32>
    %cst_69 = arith.constant 1.000000e+00 : f32
    %382 = vector.broadcast %cst_69 : f32 to vector<8x32xf32>
    %383 = arith.addf %382, %381 : vector<8x32xf32>
    %384 = arith.divf %382, %383 : vector<8x32xf32>
    %385 = vector.extract_strided_slice %375 {offsets = [0, 32], sizes = [8, 32], strides = [1, 1]} : vector<8x96xf32> to vector<8x32xf32>
    %386 = vector.extract_strided_slice %376 {offsets = [0, 32], sizes = [8, 32], strides = [1, 1]} : vector<8x96xf32> to vector<8x32xf32>
    %387 = arith.addf %385, %386 : vector<8x32xf32>
    %388 = arith.negf %387 : vector<8x32xf32>
    %389 = math.exp %388 : vector<8x32xf32>
    %cst_70 = arith.constant 1.000000e+00 : f32
    %390 = vector.broadcast %cst_70 : f32 to vector<8x32xf32>
    %391 = arith.addf %390, %389 : vector<8x32xf32>
    %392 = arith.divf %390, %391 : vector<8x32xf32>
    %393 = vector.extract_strided_slice %375 {offsets = [0, 64], sizes = [8, 32], strides = [1, 1]} : vector<8x96xf32> to vector<8x32xf32>
    %394 = vector.extract_strided_slice %376 {offsets = [0, 64], sizes = [8, 32], strides = [1, 1]} : vector<8x96xf32> to vector<8x32xf32>
    %395 = vector.broadcast %10 : vector<1x32xf32> to vector<8x32xf32>
    %396 = arith.addf %394, %395 : vector<8x32xf32>
    %397 = arith.mulf %384, %396 : vector<8x32xf32>
    %398 = arith.addf %393, %397 : vector<8x32xf32>
    %399 = math.tanh %398 : vector<8x32xf32>
    %400 = arith.subf %366, %399 : vector<8x32xf32>
    %401 = arith.mulf %392, %400 : vector<8x32xf32>
    %402 = arith.addf %399, %401 : vector<8x32xf32>
    %403 = vector.extract_strided_slice %402 {offsets = [0, 31], sizes = [8, 1], strides = [1, 1]} : vector<8x32xf32> to vector<8x1xf32>
    %404 = arith.index_cast %c10_i32 : i32 to index
    %405 = memref.load %arg6[%404] : memref<32xf32, #tpu.memory_space<smem>>
    %406 = vector.broadcast %405 : f32 to vector<8x1xf32>
    %407 = arith.mulf %403, %406 : vector<8x1xf32>
    %408 = arith.addf %372, %407 : vector<8x1xf32>
    %c11_i32 = arith.constant 11 : i32
    %409 = arith.index_cast %c11_i32 : i32 to index
    %c0_71 = arith.constant 0 : index
    %c0_72 = arith.constant 0 : index
    %410 = vector.load %arg9[%409, %c0_71, %c0_72] : memref<32x8x96xf32, #tpu.memory_space<vmem>>, vector<1x8x96xf32>
    %411 = vector.shape_cast %410 : vector<1x8x96xf32> to vector<8x96xf32>
    %cst_73 = arith.constant dense<0.000000e+00> : vector<8x96xf32>
    %412 = tpu.matmul %402, %9, %cst_73 {dimension_numbers = #tpu.dot_dimension_numbers<[1], [0], [0], [1], [0, 0, 1, 1], [], []>} : vector<8x32xf32>, vector<32x96xf32>, vector<8x96xf32> -> vector<8x96xf32>
    %413 = vector.extract_strided_slice %411 {offsets = [0, 0], sizes = [8, 32], strides = [1, 1]} : vector<8x96xf32> to vector<8x32xf32>
    %414 = vector.extract_strided_slice %412 {offsets = [0, 0], sizes = [8, 32], strides = [1, 1]} : vector<8x96xf32> to vector<8x32xf32>
    %415 = arith.addf %413, %414 : vector<8x32xf32>
    %416 = arith.negf %415 : vector<8x32xf32>
    %417 = math.exp %416 : vector<8x32xf32>
    %cst_74 = arith.constant 1.000000e+00 : f32
    %418 = vector.broadcast %cst_74 : f32 to vector<8x32xf32>
    %419 = arith.addf %418, %417 : vector<8x32xf32>
    %420 = arith.divf %418, %419 : vector<8x32xf32>
    %421 = vector.extract_strided_slice %411 {offsets = [0, 32], sizes = [8, 32], strides = [1, 1]} : vector<8x96xf32> to vector<8x32xf32>
    %422 = vector.extract_strided_slice %412 {offsets = [0, 32], sizes = [8, 32], strides = [1, 1]} : vector<8x96xf32> to vector<8x32xf32>
    %423 = arith.addf %421, %422 : vector<8x32xf32>
    %424 = arith.negf %423 : vector<8x32xf32>
    %425 = math.exp %424 : vector<8x32xf32>
    %cst_75 = arith.constant 1.000000e+00 : f32
    %426 = vector.broadcast %cst_75 : f32 to vector<8x32xf32>
    %427 = arith.addf %426, %425 : vector<8x32xf32>
    %428 = arith.divf %426, %427 : vector<8x32xf32>
    %429 = vector.extract_strided_slice %411 {offsets = [0, 64], sizes = [8, 32], strides = [1, 1]} : vector<8x96xf32> to vector<8x32xf32>
    %430 = vector.extract_strided_slice %412 {offsets = [0, 64], sizes = [8, 32], strides = [1, 1]} : vector<8x96xf32> to vector<8x32xf32>
    %431 = vector.broadcast %10 : vector<1x32xf32> to vector<8x32xf32>
    %432 = arith.addf %430, %431 : vector<8x32xf32>
    %433 = arith.mulf %420, %432 : vector<8x32xf32>
    %434 = arith.addf %429, %433 : vector<8x32xf32>
    %435 = math.tanh %434 : vector<8x32xf32>
    %436 = arith.subf %402, %435 : vector<8x32xf32>
    %437 = arith.mulf %428, %436 : vector<8x32xf32>
    %438 = arith.addf %435, %437 : vector<8x32xf32>
    %439 = vector.extract_strided_slice %438 {offsets = [0, 31], sizes = [8, 1], strides = [1, 1]} : vector<8x32xf32> to vector<8x1xf32>
    %440 = arith.index_cast %c11_i32 : i32 to index
    %441 = memref.load %arg6[%440] : memref<32xf32, #tpu.memory_space<smem>>
    %442 = vector.broadcast %441 : f32 to vector<8x1xf32>
    %443 = arith.mulf %439, %442 : vector<8x1xf32>
    %444 = arith.addf %408, %443 : vector<8x1xf32>
    %c12_i32 = arith.constant 12 : i32
    %445 = arith.index_cast %c12_i32 : i32 to index
    %c0_76 = arith.constant 0 : index
    %c0_77 = arith.constant 0 : index
    %446 = vector.load %arg9[%445, %c0_76, %c0_77] : memref<32x8x96xf32, #tpu.memory_space<vmem>>, vector<1x8x96xf32>
    %447 = vector.shape_cast %446 : vector<1x8x96xf32> to vector<8x96xf32>
    %cst_78 = arith.constant dense<0.000000e+00> : vector<8x96xf32>
    %448 = tpu.matmul %438, %9, %cst_78 {dimension_numbers = #tpu.dot_dimension_numbers<[1], [0], [0], [1], [0, 0, 1, 1], [], []>} : vector<8x32xf32>, vector<32x96xf32>, vector<8x96xf32> -> vector<8x96xf32>
    %449 = vector.extract_strided_slice %447 {offsets = [0, 0], sizes = [8, 32], strides = [1, 1]} : vector<8x96xf32> to vector<8x32xf32>
    %450 = vector.extract_strided_slice %448 {offsets = [0, 0], sizes = [8, 32], strides = [1, 1]} : vector<8x96xf32> to vector<8x32xf32>
    %451 = arith.addf %449, %450 : vector<8x32xf32>
    %452 = arith.negf %451 : vector<8x32xf32>
    %453 = math.exp %452 : vector<8x32xf32>
    %cst_79 = arith.constant 1.000000e+00 : f32
    %454 = vector.broadcast %cst_79 : f32 to vector<8x32xf32>
    %455 = arith.addf %454, %453 : vector<8x32xf32>
    %456 = arith.divf %454, %455 : vector<8x32xf32>
    %457 = vector.extract_strided_slice %447 {offsets = [0, 32], sizes = [8, 32], strides = [1, 1]} : vector<8x96xf32> to vector<8x32xf32>
    %458 = vector.extract_strided_slice %448 {offsets = [0, 32], sizes = [8, 32], strides = [1, 1]} : vector<8x96xf32> to vector<8x32xf32>
    %459 = arith.addf %457, %458 : vector<8x32xf32>
    %460 = arith.negf %459 : vector<8x32xf32>
    %461 = math.exp %460 : vector<8x32xf32>
    %cst_80 = arith.constant 1.000000e+00 : f32
    %462 = vector.broadcast %cst_80 : f32 to vector<8x32xf32>
    %463 = arith.addf %462, %461 : vector<8x32xf32>
    %464 = arith.divf %462, %463 : vector<8x32xf32>
    %465 = vector.extract_strided_slice %447 {offsets = [0, 64], sizes = [8, 32], strides = [1, 1]} : vector<8x96xf32> to vector<8x32xf32>
    %466 = vector.extract_strided_slice %448 {offsets = [0, 64], sizes = [8, 32], strides = [1, 1]} : vector<8x96xf32> to vector<8x32xf32>
    %467 = vector.broadcast %10 : vector<1x32xf32> to vector<8x32xf32>
    %468 = arith.addf %466, %467 : vector<8x32xf32>
    %469 = arith.mulf %456, %468 : vector<8x32xf32>
    %470 = arith.addf %465, %469 : vector<8x32xf32>
    %471 = math.tanh %470 : vector<8x32xf32>
    %472 = arith.subf %438, %471 : vector<8x32xf32>
    %473 = arith.mulf %464, %472 : vector<8x32xf32>
    %474 = arith.addf %471, %473 : vector<8x32xf32>
    %475 = vector.extract_strided_slice %474 {offsets = [0, 31], sizes = [8, 1], strides = [1, 1]} : vector<8x32xf32> to vector<8x1xf32>
    %476 = arith.index_cast %c12_i32 : i32 to index
    %477 = memref.load %arg6[%476] : memref<32xf32, #tpu.memory_space<smem>>
    %478 = vector.broadcast %477 : f32 to vector<8x1xf32>
    %479 = arith.mulf %475, %478 : vector<8x1xf32>
    %480 = arith.addf %444, %479 : vector<8x1xf32>
    %c13_i32 = arith.constant 13 : i32
    %481 = arith.index_cast %c13_i32 : i32 to index
    %c0_81 = arith.constant 0 : index
    %c0_82 = arith.constant 0 : index
    %482 = vector.load %arg9[%481, %c0_81, %c0_82] : memref<32x8x96xf32, #tpu.memory_space<vmem>>, vector<1x8x96xf32>
    %483 = vector.shape_cast %482 : vector<1x8x96xf32> to vector<8x96xf32>
    %cst_83 = arith.constant dense<0.000000e+00> : vector<8x96xf32>
    %484 = tpu.matmul %474, %9, %cst_83 {dimension_numbers = #tpu.dot_dimension_numbers<[1], [0], [0], [1], [0, 0, 1, 1], [], []>} : vector<8x32xf32>, vector<32x96xf32>, vector<8x96xf32> -> vector<8x96xf32>
    %485 = vector.extract_strided_slice %483 {offsets = [0, 0], sizes = [8, 32], strides = [1, 1]} : vector<8x96xf32> to vector<8x32xf32>
    %486 = vector.extract_strided_slice %484 {offsets = [0, 0], sizes = [8, 32], strides = [1, 1]} : vector<8x96xf32> to vector<8x32xf32>
    %487 = arith.addf %485, %486 : vector<8x32xf32>
    %488 = arith.negf %487 : vector<8x32xf32>
    %489 = math.exp %488 : vector<8x32xf32>
    %cst_84 = arith.constant 1.000000e+00 : f32
    %490 = vector.broadcast %cst_84 : f32 to vector<8x32xf32>
    %491 = arith.addf %490, %489 : vector<8x32xf32>
    %492 = arith.divf %490, %491 : vector<8x32xf32>
    %493 = vector.extract_strided_slice %483 {offsets = [0, 32], sizes = [8, 32], strides = [1, 1]} : vector<8x96xf32> to vector<8x32xf32>
    %494 = vector.extract_strided_slice %484 {offsets = [0, 32], sizes = [8, 32], strides = [1, 1]} : vector<8x96xf32> to vector<8x32xf32>
    %495 = arith.addf %493, %494 : vector<8x32xf32>
    %496 = arith.negf %495 : vector<8x32xf32>
    %497 = math.exp %496 : vector<8x32xf32>
    %cst_85 = arith.constant 1.000000e+00 : f32
    %498 = vector.broadcast %cst_85 : f32 to vector<8x32xf32>
    %499 = arith.addf %498, %497 : vector<8x32xf32>
    %500 = arith.divf %498, %499 : vector<8x32xf32>
    %501 = vector.extract_strided_slice %483 {offsets = [0, 64], sizes = [8, 32], strides = [1, 1]} : vector<8x96xf32> to vector<8x32xf32>
    %502 = vector.extract_strided_slice %484 {offsets = [0, 64], sizes = [8, 32], strides = [1, 1]} : vector<8x96xf32> to vector<8x32xf32>
    %503 = vector.broadcast %10 : vector<1x32xf32> to vector<8x32xf32>
    %504 = arith.addf %502, %503 : vector<8x32xf32>
    %505 = arith.mulf %492, %504 : vector<8x32xf32>
    %506 = arith.addf %501, %505 : vector<8x32xf32>
    %507 = math.tanh %506 : vector<8x32xf32>
    %508 = arith.subf %474, %507 : vector<8x32xf32>
    %509 = arith.mulf %500, %508 : vector<8x32xf32>
    %510 = arith.addf %507, %509 : vector<8x32xf32>
    %511 = vector.extract_strided_slice %510 {offsets = [0, 31], sizes = [8, 1], strides = [1, 1]} : vector<8x32xf32> to vector<8x1xf32>
    %512 = arith.index_cast %c13_i32 : i32 to index
    %513 = memref.load %arg6[%512] : memref<32xf32, #tpu.memory_space<smem>>
    %514 = vector.broadcast %513 : f32 to vector<8x1xf32>
    %515 = arith.mulf %511, %514 : vector<8x1xf32>
    %516 = arith.addf %480, %515 : vector<8x1xf32>
    %c14_i32 = arith.constant 14 : i32
    %517 = arith.index_cast %c14_i32 : i32 to index
    %c0_86 = arith.constant 0 : index
    %c0_87 = arith.constant 0 : index
    %518 = vector.load %arg9[%517, %c0_86, %c0_87] : memref<32x8x96xf32, #tpu.memory_space<vmem>>, vector<1x8x96xf32>
    %519 = vector.shape_cast %518 : vector<1x8x96xf32> to vector<8x96xf32>
    %cst_88 = arith.constant dense<0.000000e+00> : vector<8x96xf32>
    %520 = tpu.matmul %510, %9, %cst_88 {dimension_numbers = #tpu.dot_dimension_numbers<[1], [0], [0], [1], [0, 0, 1, 1], [], []>} : vector<8x32xf32>, vector<32x96xf32>, vector<8x96xf32> -> vector<8x96xf32>
    %521 = vector.extract_strided_slice %519 {offsets = [0, 0], sizes = [8, 32], strides = [1, 1]} : vector<8x96xf32> to vector<8x32xf32>
    %522 = vector.extract_strided_slice %520 {offsets = [0, 0], sizes = [8, 32], strides = [1, 1]} : vector<8x96xf32> to vector<8x32xf32>
    %523 = arith.addf %521, %522 : vector<8x32xf32>
    %524 = arith.negf %523 : vector<8x32xf32>
    %525 = math.exp %524 : vector<8x32xf32>
    %cst_89 = arith.constant 1.000000e+00 : f32
    %526 = vector.broadcast %cst_89 : f32 to vector<8x32xf32>
    %527 = arith.addf %526, %525 : vector<8x32xf32>
    %528 = arith.divf %526, %527 : vector<8x32xf32>
    %529 = vector.extract_strided_slice %519 {offsets = [0, 32], sizes = [8, 32], strides = [1, 1]} : vector<8x96xf32> to vector<8x32xf32>
    %530 = vector.extract_strided_slice %520 {offsets = [0, 32], sizes = [8, 32], strides = [1, 1]} : vector<8x96xf32> to vector<8x32xf32>
    %531 = arith.addf %529, %530 : vector<8x32xf32>
    %532 = arith.negf %531 : vector<8x32xf32>
    %533 = math.exp %532 : vector<8x32xf32>
    %cst_90 = arith.constant 1.000000e+00 : f32
    %534 = vector.broadcast %cst_90 : f32 to vector<8x32xf32>
    %535 = arith.addf %534, %533 : vector<8x32xf32>
    %536 = arith.divf %534, %535 : vector<8x32xf32>
    %537 = vector.extract_strided_slice %519 {offsets = [0, 64], sizes = [8, 32], strides = [1, 1]} : vector<8x96xf32> to vector<8x32xf32>
    %538 = vector.extract_strided_slice %520 {offsets = [0, 64], sizes = [8, 32], strides = [1, 1]} : vector<8x96xf32> to vector<8x32xf32>
    %539 = vector.broadcast %10 : vector<1x32xf32> to vector<8x32xf32>
    %540 = arith.addf %538, %539 : vector<8x32xf32>
    %541 = arith.mulf %528, %540 : vector<8x32xf32>
    %542 = arith.addf %537, %541 : vector<8x32xf32>
    %543 = math.tanh %542 : vector<8x32xf32>
    %544 = arith.subf %510, %543 : vector<8x32xf32>
    %545 = arith.mulf %536, %544 : vector<8x32xf32>
    %546 = arith.addf %543, %545 : vector<8x32xf32>
    %547 = vector.extract_strided_slice %546 {offsets = [0, 31], sizes = [8, 1], strides = [1, 1]} : vector<8x32xf32> to vector<8x1xf32>
    %548 = arith.index_cast %c14_i32 : i32 to index
    %549 = memref.load %arg6[%548] : memref<32xf32, #tpu.memory_space<smem>>
    %550 = vector.broadcast %549 : f32 to vector<8x1xf32>
    %551 = arith.mulf %547, %550 : vector<8x1xf32>
    %552 = arith.addf %516, %551 : vector<8x1xf32>
    %c15_i32 = arith.constant 15 : i32
    %553 = arith.index_cast %c15_i32 : i32 to index
    %c0_91 = arith.constant 0 : index
    %c0_92 = arith.constant 0 : index
    %554 = vector.load %arg9[%553, %c0_91, %c0_92] : memref<32x8x96xf32, #tpu.memory_space<vmem>>, vector<1x8x96xf32>
    %555 = vector.shape_cast %554 : vector<1x8x96xf32> to vector<8x96xf32>
    %cst_93 = arith.constant dense<0.000000e+00> : vector<8x96xf32>
    %556 = tpu.matmul %546, %9, %cst_93 {dimension_numbers = #tpu.dot_dimension_numbers<[1], [0], [0], [1], [0, 0, 1, 1], [], []>} : vector<8x32xf32>, vector<32x96xf32>, vector<8x96xf32> -> vector<8x96xf32>
    %557 = vector.extract_strided_slice %555 {offsets = [0, 0], sizes = [8, 32], strides = [1, 1]} : vector<8x96xf32> to vector<8x32xf32>
    %558 = vector.extract_strided_slice %556 {offsets = [0, 0], sizes = [8, 32], strides = [1, 1]} : vector<8x96xf32> to vector<8x32xf32>
    %559 = arith.addf %557, %558 : vector<8x32xf32>
    %560 = arith.negf %559 : vector<8x32xf32>
    %561 = math.exp %560 : vector<8x32xf32>
    %cst_94 = arith.constant 1.000000e+00 : f32
    %562 = vector.broadcast %cst_94 : f32 to vector<8x32xf32>
    %563 = arith.addf %562, %561 : vector<8x32xf32>
    %564 = arith.divf %562, %563 : vector<8x32xf32>
    %565 = vector.extract_strided_slice %555 {offsets = [0, 32], sizes = [8, 32], strides = [1, 1]} : vector<8x96xf32> to vector<8x32xf32>
    %566 = vector.extract_strided_slice %556 {offsets = [0, 32], sizes = [8, 32], strides = [1, 1]} : vector<8x96xf32> to vector<8x32xf32>
    %567 = arith.addf %565, %566 : vector<8x32xf32>
    %568 = arith.negf %567 : vector<8x32xf32>
    %569 = math.exp %568 : vector<8x32xf32>
    %cst_95 = arith.constant 1.000000e+00 : f32
    %570 = vector.broadcast %cst_95 : f32 to vector<8x32xf32>
    %571 = arith.addf %570, %569 : vector<8x32xf32>
    %572 = arith.divf %570, %571 : vector<8x32xf32>
    %573 = vector.extract_strided_slice %555 {offsets = [0, 64], sizes = [8, 32], strides = [1, 1]} : vector<8x96xf32> to vector<8x32xf32>
    %574 = vector.extract_strided_slice %556 {offsets = [0, 64], sizes = [8, 32], strides = [1, 1]} : vector<8x96xf32> to vector<8x32xf32>
    %575 = vector.broadcast %10 : vector<1x32xf32> to vector<8x32xf32>
    %576 = arith.addf %574, %575 : vector<8x32xf32>
    %577 = arith.mulf %564, %576 : vector<8x32xf32>
    %578 = arith.addf %573, %577 : vector<8x32xf32>
    %579 = math.tanh %578 : vector<8x32xf32>
    %580 = arith.subf %546, %579 : vector<8x32xf32>
    %581 = arith.mulf %572, %580 : vector<8x32xf32>
    %582 = arith.addf %579, %581 : vector<8x32xf32>
    %583 = vector.extract_strided_slice %582 {offsets = [0, 31], sizes = [8, 1], strides = [1, 1]} : vector<8x32xf32> to vector<8x1xf32>
    %584 = arith.index_cast %c15_i32 : i32 to index
    %585 = memref.load %arg6[%584] : memref<32xf32, #tpu.memory_space<smem>>
    %586 = vector.broadcast %585 : f32 to vector<8x1xf32>
    %587 = arith.mulf %583, %586 : vector<8x1xf32>
    %588 = arith.addf %552, %587 : vector<8x1xf32>
    %c16_i32 = arith.constant 16 : i32
    %589 = arith.index_cast %c16_i32 : i32 to index
    %c0_96 = arith.constant 0 : index
    %c0_97 = arith.constant 0 : index
    %590 = vector.load %arg9[%589, %c0_96, %c0_97] : memref<32x8x96xf32, #tpu.memory_space<vmem>>, vector<1x8x96xf32>
    %591 = vector.shape_cast %590 : vector<1x8x96xf32> to vector<8x96xf32>
    %cst_98 = arith.constant dense<0.000000e+00> : vector<8x96xf32>
    %592 = tpu.matmul %582, %9, %cst_98 {dimension_numbers = #tpu.dot_dimension_numbers<[1], [0], [0], [1], [0, 0, 1, 1], [], []>} : vector<8x32xf32>, vector<32x96xf32>, vector<8x96xf32> -> vector<8x96xf32>
    %593 = vector.extract_strided_slice %591 {offsets = [0, 0], sizes = [8, 32], strides = [1, 1]} : vector<8x96xf32> to vector<8x32xf32>
    %594 = vector.extract_strided_slice %592 {offsets = [0, 0], sizes = [8, 32], strides = [1, 1]} : vector<8x96xf32> to vector<8x32xf32>
    %595 = arith.addf %593, %594 : vector<8x32xf32>
    %596 = arith.negf %595 : vector<8x32xf32>
    %597 = math.exp %596 : vector<8x32xf32>
    %cst_99 = arith.constant 1.000000e+00 : f32
    %598 = vector.broadcast %cst_99 : f32 to vector<8x32xf32>
    %599 = arith.addf %598, %597 : vector<8x32xf32>
    %600 = arith.divf %598, %599 : vector<8x32xf32>
    %601 = vector.extract_strided_slice %591 {offsets = [0, 32], sizes = [8, 32], strides = [1, 1]} : vector<8x96xf32> to vector<8x32xf32>
    %602 = vector.extract_strided_slice %592 {offsets = [0, 32], sizes = [8, 32], strides = [1, 1]} : vector<8x96xf32> to vector<8x32xf32>
    %603 = arith.addf %601, %602 : vector<8x32xf32>
    %604 = arith.negf %603 : vector<8x32xf32>
    %605 = math.exp %604 : vector<8x32xf32>
    %cst_100 = arith.constant 1.000000e+00 : f32
    %606 = vector.broadcast %cst_100 : f32 to vector<8x32xf32>
    %607 = arith.addf %606, %605 : vector<8x32xf32>
    %608 = arith.divf %606, %607 : vector<8x32xf32>
    %609 = vector.extract_strided_slice %591 {offsets = [0, 64], sizes = [8, 32], strides = [1, 1]} : vector<8x96xf32> to vector<8x32xf32>
    %610 = vector.extract_strided_slice %592 {offsets = [0, 64], sizes = [8, 32], strides = [1, 1]} : vector<8x96xf32> to vector<8x32xf32>
    %611 = vector.broadcast %10 : vector<1x32xf32> to vector<8x32xf32>
    %612 = arith.addf %610, %611 : vector<8x32xf32>
    %613 = arith.mulf %600, %612 : vector<8x32xf32>
    %614 = arith.addf %609, %613 : vector<8x32xf32>
    %615 = math.tanh %614 : vector<8x32xf32>
    %616 = arith.subf %582, %615 : vector<8x32xf32>
    %617 = arith.mulf %608, %616 : vector<8x32xf32>
    %618 = arith.addf %615, %617 : vector<8x32xf32>
    %619 = vector.extract_strided_slice %618 {offsets = [0, 31], sizes = [8, 1], strides = [1, 1]} : vector<8x32xf32> to vector<8x1xf32>
    %620 = arith.index_cast %c16_i32 : i32 to index
    %621 = memref.load %arg6[%620] : memref<32xf32, #tpu.memory_space<smem>>
    %622 = vector.broadcast %621 : f32 to vector<8x1xf32>
    %623 = arith.mulf %619, %622 : vector<8x1xf32>
    %624 = arith.addf %588, %623 : vector<8x1xf32>
    %c17_i32 = arith.constant 17 : i32
    %625 = arith.index_cast %c17_i32 : i32 to index
    %c0_101 = arith.constant 0 : index
    %c0_102 = arith.constant 0 : index
    %626 = vector.load %arg9[%625, %c0_101, %c0_102] : memref<32x8x96xf32, #tpu.memory_space<vmem>>, vector<1x8x96xf32>
    %627 = vector.shape_cast %626 : vector<1x8x96xf32> to vector<8x96xf32>
    %cst_103 = arith.constant dense<0.000000e+00> : vector<8x96xf32>
    %628 = tpu.matmul %618, %9, %cst_103 {dimension_numbers = #tpu.dot_dimension_numbers<[1], [0], [0], [1], [0, 0, 1, 1], [], []>} : vector<8x32xf32>, vector<32x96xf32>, vector<8x96xf32> -> vector<8x96xf32>
    %629 = vector.extract_strided_slice %627 {offsets = [0, 0], sizes = [8, 32], strides = [1, 1]} : vector<8x96xf32> to vector<8x32xf32>
    %630 = vector.extract_strided_slice %628 {offsets = [0, 0], sizes = [8, 32], strides = [1, 1]} : vector<8x96xf32> to vector<8x32xf32>
    %631 = arith.addf %629, %630 : vector<8x32xf32>
    %632 = arith.negf %631 : vector<8x32xf32>
    %633 = math.exp %632 : vector<8x32xf32>
    %cst_104 = arith.constant 1.000000e+00 : f32
    %634 = vector.broadcast %cst_104 : f32 to vector<8x32xf32>
    %635 = arith.addf %634, %633 : vector<8x32xf32>
    %636 = arith.divf %634, %635 : vector<8x32xf32>
    %637 = vector.extract_strided_slice %627 {offsets = [0, 32], sizes = [8, 32], strides = [1, 1]} : vector<8x96xf32> to vector<8x32xf32>
    %638 = vector.extract_strided_slice %628 {offsets = [0, 32], sizes = [8, 32], strides = [1, 1]} : vector<8x96xf32> to vector<8x32xf32>
    %639 = arith.addf %637, %638 : vector<8x32xf32>
    %640 = arith.negf %639 : vector<8x32xf32>
    %641 = math.exp %640 : vector<8x32xf32>
    %cst_105 = arith.constant 1.000000e+00 : f32
    %642 = vector.broadcast %cst_105 : f32 to vector<8x32xf32>
    %643 = arith.addf %642, %641 : vector<8x32xf32>
    %644 = arith.divf %642, %643 : vector<8x32xf32>
    %645 = vector.extract_strided_slice %627 {offsets = [0, 64], sizes = [8, 32], strides = [1, 1]} : vector<8x96xf32> to vector<8x32xf32>
    %646 = vector.extract_strided_slice %628 {offsets = [0, 64], sizes = [8, 32], strides = [1, 1]} : vector<8x96xf32> to vector<8x32xf32>
    %647 = vector.broadcast %10 : vector<1x32xf32> to vector<8x32xf32>
    %648 = arith.addf %646, %647 : vector<8x32xf32>
    %649 = arith.mulf %636, %648 : vector<8x32xf32>
    %650 = arith.addf %645, %649 : vector<8x32xf32>
    %651 = math.tanh %650 : vector<8x32xf32>
    %652 = arith.subf %618, %651 : vector<8x32xf32>
    %653 = arith.mulf %644, %652 : vector<8x32xf32>
    %654 = arith.addf %651, %653 : vector<8x32xf32>
    %655 = vector.extract_strided_slice %654 {offsets = [0, 31], sizes = [8, 1], strides = [1, 1]} : vector<8x32xf32> to vector<8x1xf32>
    %656 = arith.index_cast %c17_i32 : i32 to index
    %657 = memref.load %arg6[%656] : memref<32xf32, #tpu.memory_space<smem>>
    %658 = vector.broadcast %657 : f32 to vector<8x1xf32>
    %659 = arith.mulf %655, %658 : vector<8x1xf32>
    %660 = arith.addf %624, %659 : vector<8x1xf32>
    %c18_i32 = arith.constant 18 : i32
    %661 = arith.index_cast %c18_i32 : i32 to index
    %c0_106 = arith.constant 0 : index
    %c0_107 = arith.constant 0 : index
    %662 = vector.load %arg9[%661, %c0_106, %c0_107] : memref<32x8x96xf32, #tpu.memory_space<vmem>>, vector<1x8x96xf32>
    %663 = vector.shape_cast %662 : vector<1x8x96xf32> to vector<8x96xf32>
    %cst_108 = arith.constant dense<0.000000e+00> : vector<8x96xf32>
    %664 = tpu.matmul %654, %9, %cst_108 {dimension_numbers = #tpu.dot_dimension_numbers<[1], [0], [0], [1], [0, 0, 1, 1], [], []>} : vector<8x32xf32>, vector<32x96xf32>, vector<8x96xf32> -> vector<8x96xf32>
    %665 = vector.extract_strided_slice %663 {offsets = [0, 0], sizes = [8, 32], strides = [1, 1]} : vector<8x96xf32> to vector<8x32xf32>
    %666 = vector.extract_strided_slice %664 {offsets = [0, 0], sizes = [8, 32], strides = [1, 1]} : vector<8x96xf32> to vector<8x32xf32>
    %667 = arith.addf %665, %666 : vector<8x32xf32>
    %668 = arith.negf %667 : vector<8x32xf32>
    %669 = math.exp %668 : vector<8x32xf32>
    %cst_109 = arith.constant 1.000000e+00 : f32
    %670 = vector.broadcast %cst_109 : f32 to vector<8x32xf32>
    %671 = arith.addf %670, %669 : vector<8x32xf32>
    %672 = arith.divf %670, %671 : vector<8x32xf32>
    %673 = vector.extract_strided_slice %663 {offsets = [0, 32], sizes = [8, 32], strides = [1, 1]} : vector<8x96xf32> to vector<8x32xf32>
    %674 = vector.extract_strided_slice %664 {offsets = [0, 32], sizes = [8, 32], strides = [1, 1]} : vector<8x96xf32> to vector<8x32xf32>
    %675 = arith.addf %673, %674 : vector<8x32xf32>
    %676 = arith.negf %675 : vector<8x32xf32>
    %677 = math.exp %676 : vector<8x32xf32>
    %cst_110 = arith.constant 1.000000e+00 : f32
    %678 = vector.broadcast %cst_110 : f32 to vector<8x32xf32>
    %679 = arith.addf %678, %677 : vector<8x32xf32>
    %680 = arith.divf %678, %679 : vector<8x32xf32>
    %681 = vector.extract_strided_slice %663 {offsets = [0, 64], sizes = [8, 32], strides = [1, 1]} : vector<8x96xf32> to vector<8x32xf32>
    %682 = vector.extract_strided_slice %664 {offsets = [0, 64], sizes = [8, 32], strides = [1, 1]} : vector<8x96xf32> to vector<8x32xf32>
    %683 = vector.broadcast %10 : vector<1x32xf32> to vector<8x32xf32>
    %684 = arith.addf %682, %683 : vector<8x32xf32>
    %685 = arith.mulf %672, %684 : vector<8x32xf32>
    %686 = arith.addf %681, %685 : vector<8x32xf32>
    %687 = math.tanh %686 : vector<8x32xf32>
    %688 = arith.subf %654, %687 : vector<8x32xf32>
    %689 = arith.mulf %680, %688 : vector<8x32xf32>
    %690 = arith.addf %687, %689 : vector<8x32xf32>
    %691 = vector.extract_strided_slice %690 {offsets = [0, 31], sizes = [8, 1], strides = [1, 1]} : vector<8x32xf32> to vector<8x1xf32>
    %692 = arith.index_cast %c18_i32 : i32 to index
    %693 = memref.load %arg6[%692] : memref<32xf32, #tpu.memory_space<smem>>
    %694 = vector.broadcast %693 : f32 to vector<8x1xf32>
    %695 = arith.mulf %691, %694 : vector<8x1xf32>
    %696 = arith.addf %660, %695 : vector<8x1xf32>
    %c19_i32 = arith.constant 19 : i32
    %697 = arith.index_cast %c19_i32 : i32 to index
    %c0_111 = arith.constant 0 : index
    %c0_112 = arith.constant 0 : index
    %698 = vector.load %arg9[%697, %c0_111, %c0_112] : memref<32x8x96xf32, #tpu.memory_space<vmem>>, vector<1x8x96xf32>
    %699 = vector.shape_cast %698 : vector<1x8x96xf32> to vector<8x96xf32>
    %cst_113 = arith.constant dense<0.000000e+00> : vector<8x96xf32>
    %700 = tpu.matmul %690, %9, %cst_113 {dimension_numbers = #tpu.dot_dimension_numbers<[1], [0], [0], [1], [0, 0, 1, 1], [], []>} : vector<8x32xf32>, vector<32x96xf32>, vector<8x96xf32> -> vector<8x96xf32>
    %701 = vector.extract_strided_slice %699 {offsets = [0, 0], sizes = [8, 32], strides = [1, 1]} : vector<8x96xf32> to vector<8x32xf32>
    %702 = vector.extract_strided_slice %700 {offsets = [0, 0], sizes = [8, 32], strides = [1, 1]} : vector<8x96xf32> to vector<8x32xf32>
    %703 = arith.addf %701, %702 : vector<8x32xf32>
    %704 = arith.negf %703 : vector<8x32xf32>
    %705 = math.exp %704 : vector<8x32xf32>
    %cst_114 = arith.constant 1.000000e+00 : f32
    %706 = vector.broadcast %cst_114 : f32 to vector<8x32xf32>
    %707 = arith.addf %706, %705 : vector<8x32xf32>
    %708 = arith.divf %706, %707 : vector<8x32xf32>
    %709 = vector.extract_strided_slice %699 {offsets = [0, 32], sizes = [8, 32], strides = [1, 1]} : vector<8x96xf32> to vector<8x32xf32>
    %710 = vector.extract_strided_slice %700 {offsets = [0, 32], sizes = [8, 32], strides = [1, 1]} : vector<8x96xf32> to vector<8x32xf32>
    %711 = arith.addf %709, %710 : vector<8x32xf32>
    %712 = arith.negf %711 : vector<8x32xf32>
    %713 = math.exp %712 : vector<8x32xf32>
    %cst_115 = arith.constant 1.000000e+00 : f32
    %714 = vector.broadcast %cst_115 : f32 to vector<8x32xf32>
    %715 = arith.addf %714, %713 : vector<8x32xf32>
    %716 = arith.divf %714, %715 : vector<8x32xf32>
    %717 = vector.extract_strided_slice %699 {offsets = [0, 64], sizes = [8, 32], strides = [1, 1]} : vector<8x96xf32> to vector<8x32xf32>
    %718 = vector.extract_strided_slice %700 {offsets = [0, 64], sizes = [8, 32], strides = [1, 1]} : vector<8x96xf32> to vector<8x32xf32>
    %719 = vector.broadcast %10 : vector<1x32xf32> to vector<8x32xf32>
    %720 = arith.addf %718, %719 : vector<8x32xf32>
    %721 = arith.mulf %708, %720 : vector<8x32xf32>
    %722 = arith.addf %717, %721 : vector<8x32xf32>
    %723 = math.tanh %722 : vector<8x32xf32>
    %724 = arith.subf %690, %723 : vector<8x32xf32>
    %725 = arith.mulf %716, %724 : vector<8x32xf32>
    %726 = arith.addf %723, %725 : vector<8x32xf32>
    %727 = vector.extract_strided_slice %726 {offsets = [0, 31], sizes = [8, 1], strides = [1, 1]} : vector<8x32xf32> to vector<8x1xf32>
    %728 = arith.index_cast %c19_i32 : i32 to index
    %729 = memref.load %arg6[%728] : memref<32xf32, #tpu.memory_space<smem>>
    %730 = vector.broadcast %729 : f32 to vector<8x1xf32>
    %731 = arith.mulf %727, %730 : vector<8x1xf32>
    %732 = arith.addf %696, %731 : vector<8x1xf32>
    %c20_i32 = arith.constant 20 : i32
    %733 = arith.index_cast %c20_i32 : i32 to index
    %c0_116 = arith.constant 0 : index
    %c0_117 = arith.constant 0 : index
    %734 = vector.load %arg9[%733, %c0_116, %c0_117] : memref<32x8x96xf32, #tpu.memory_space<vmem>>, vector<1x8x96xf32>
    %735 = vector.shape_cast %734 : vector<1x8x96xf32> to vector<8x96xf32>
    %cst_118 = arith.constant dense<0.000000e+00> : vector<8x96xf32>
    %736 = tpu.matmul %726, %9, %cst_118 {dimension_numbers = #tpu.dot_dimension_numbers<[1], [0], [0], [1], [0, 0, 1, 1], [], []>} : vector<8x32xf32>, vector<32x96xf32>, vector<8x96xf32> -> vector<8x96xf32>
    %737 = vector.extract_strided_slice %735 {offsets = [0, 0], sizes = [8, 32], strides = [1, 1]} : vector<8x96xf32> to vector<8x32xf32>
    %738 = vector.extract_strided_slice %736 {offsets = [0, 0], sizes = [8, 32], strides = [1, 1]} : vector<8x96xf32> to vector<8x32xf32>
    %739 = arith.addf %737, %738 : vector<8x32xf32>
    %740 = arith.negf %739 : vector<8x32xf32>
    %741 = math.exp %740 : vector<8x32xf32>
    %cst_119 = arith.constant 1.000000e+00 : f32
    %742 = vector.broadcast %cst_119 : f32 to vector<8x32xf32>
    %743 = arith.addf %742, %741 : vector<8x32xf32>
    %744 = arith.divf %742, %743 : vector<8x32xf32>
    %745 = vector.extract_strided_slice %735 {offsets = [0, 32], sizes = [8, 32], strides = [1, 1]} : vector<8x96xf32> to vector<8x32xf32>
    %746 = vector.extract_strided_slice %736 {offsets = [0, 32], sizes = [8, 32], strides = [1, 1]} : vector<8x96xf32> to vector<8x32xf32>
    %747 = arith.addf %745, %746 : vector<8x32xf32>
    %748 = arith.negf %747 : vector<8x32xf32>
    %749 = math.exp %748 : vector<8x32xf32>
    %cst_120 = arith.constant 1.000000e+00 : f32
    %750 = vector.broadcast %cst_120 : f32 to vector<8x32xf32>
    %751 = arith.addf %750, %749 : vector<8x32xf32>
    %752 = arith.divf %750, %751 : vector<8x32xf32>
    %753 = vector.extract_strided_slice %735 {offsets = [0, 64], sizes = [8, 32], strides = [1, 1]} : vector<8x96xf32> to vector<8x32xf32>
    %754 = vector.extract_strided_slice %736 {offsets = [0, 64], sizes = [8, 32], strides = [1, 1]} : vector<8x96xf32> to vector<8x32xf32>
    %755 = vector.broadcast %10 : vector<1x32xf32> to vector<8x32xf32>
    %756 = arith.addf %754, %755 : vector<8x32xf32>
    %757 = arith.mulf %744, %756 : vector<8x32xf32>
    %758 = arith.addf %753, %757 : vector<8x32xf32>
    %759 = math.tanh %758 : vector<8x32xf32>
    %760 = arith.subf %726, %759 : vector<8x32xf32>
    %761 = arith.mulf %752, %760 : vector<8x32xf32>
    %762 = arith.addf %759, %761 : vector<8x32xf32>
    %763 = vector.extract_strided_slice %762 {offsets = [0, 31], sizes = [8, 1], strides = [1, 1]} : vector<8x32xf32> to vector<8x1xf32>
    %764 = arith.index_cast %c20_i32 : i32 to index
    %765 = memref.load %arg6[%764] : memref<32xf32, #tpu.memory_space<smem>>
    %766 = vector.broadcast %765 : f32 to vector<8x1xf32>
    %767 = arith.mulf %763, %766 : vector<8x1xf32>
    %768 = arith.addf %732, %767 : vector<8x1xf32>
    %c21_i32 = arith.constant 21 : i32
    %769 = arith.index_cast %c21_i32 : i32 to index
    %c0_121 = arith.constant 0 : index
    %c0_122 = arith.constant 0 : index
    %770 = vector.load %arg9[%769, %c0_121, %c0_122] : memref<32x8x96xf32, #tpu.memory_space<vmem>>, vector<1x8x96xf32>
    %771 = vector.shape_cast %770 : vector<1x8x96xf32> to vector<8x96xf32>
    %cst_123 = arith.constant dense<0.000000e+00> : vector<8x96xf32>
    %772 = tpu.matmul %762, %9, %cst_123 {dimension_numbers = #tpu.dot_dimension_numbers<[1], [0], [0], [1], [0, 0, 1, 1], [], []>} : vector<8x32xf32>, vector<32x96xf32>, vector<8x96xf32> -> vector<8x96xf32>
    %773 = vector.extract_strided_slice %771 {offsets = [0, 0], sizes = [8, 32], strides = [1, 1]} : vector<8x96xf32> to vector<8x32xf32>
    %774 = vector.extract_strided_slice %772 {offsets = [0, 0], sizes = [8, 32], strides = [1, 1]} : vector<8x96xf32> to vector<8x32xf32>
    %775 = arith.addf %773, %774 : vector<8x32xf32>
    %776 = arith.negf %775 : vector<8x32xf32>
    %777 = math.exp %776 : vector<8x32xf32>
    %cst_124 = arith.constant 1.000000e+00 : f32
    %778 = vector.broadcast %cst_124 : f32 to vector<8x32xf32>
    %779 = arith.addf %778, %777 : vector<8x32xf32>
    %780 = arith.divf %778, %779 : vector<8x32xf32>
    %781 = vector.extract_strided_slice %771 {offsets = [0, 32], sizes = [8, 32], strides = [1, 1]} : vector<8x96xf32> to vector<8x32xf32>
    %782 = vector.extract_strided_slice %772 {offsets = [0, 32], sizes = [8, 32], strides = [1, 1]} : vector<8x96xf32> to vector<8x32xf32>
    %783 = arith.addf %781, %782 : vector<8x32xf32>
    %784 = arith.negf %783 : vector<8x32xf32>
    %785 = math.exp %784 : vector<8x32xf32>
    %cst_125 = arith.constant 1.000000e+00 : f32
    %786 = vector.broadcast %cst_125 : f32 to vector<8x32xf32>
    %787 = arith.addf %786, %785 : vector<8x32xf32>
    %788 = arith.divf %786, %787 : vector<8x32xf32>
    %789 = vector.extract_strided_slice %771 {offsets = [0, 64], sizes = [8, 32], strides = [1, 1]} : vector<8x96xf32> to vector<8x32xf32>
    %790 = vector.extract_strided_slice %772 {offsets = [0, 64], sizes = [8, 32], strides = [1, 1]} : vector<8x96xf32> to vector<8x32xf32>
    %791 = vector.broadcast %10 : vector<1x32xf32> to vector<8x32xf32>
    %792 = arith.addf %790, %791 : vector<8x32xf32>
    %793 = arith.mulf %780, %792 : vector<8x32xf32>
    %794 = arith.addf %789, %793 : vector<8x32xf32>
    %795 = math.tanh %794 : vector<8x32xf32>
    %796 = arith.subf %762, %795 : vector<8x32xf32>
    %797 = arith.mulf %788, %796 : vector<8x32xf32>
    %798 = arith.addf %795, %797 : vector<8x32xf32>
    %799 = vector.extract_strided_slice %798 {offsets = [0, 31], sizes = [8, 1], strides = [1, 1]} : vector<8x32xf32> to vector<8x1xf32>
    %800 = arith.index_cast %c21_i32 : i32 to index
    %801 = memref.load %arg6[%800] : memref<32xf32, #tpu.memory_space<smem>>
    %802 = vector.broadcast %801 : f32 to vector<8x1xf32>
    %803 = arith.mulf %799, %802 : vector<8x1xf32>
    %804 = arith.addf %768, %803 : vector<8x1xf32>
    %c22_i32 = arith.constant 22 : i32
    %805 = arith.index_cast %c22_i32 : i32 to index
    %c0_126 = arith.constant 0 : index
    %c0_127 = arith.constant 0 : index
    %806 = vector.load %arg9[%805, %c0_126, %c0_127] : memref<32x8x96xf32, #tpu.memory_space<vmem>>, vector<1x8x96xf32>
    %807 = vector.shape_cast %806 : vector<1x8x96xf32> to vector<8x96xf32>
    %cst_128 = arith.constant dense<0.000000e+00> : vector<8x96xf32>
    %808 = tpu.matmul %798, %9, %cst_128 {dimension_numbers = #tpu.dot_dimension_numbers<[1], [0], [0], [1], [0, 0, 1, 1], [], []>} : vector<8x32xf32>, vector<32x96xf32>, vector<8x96xf32> -> vector<8x96xf32>
    %809 = vector.extract_strided_slice %807 {offsets = [0, 0], sizes = [8, 32], strides = [1, 1]} : vector<8x96xf32> to vector<8x32xf32>
    %810 = vector.extract_strided_slice %808 {offsets = [0, 0], sizes = [8, 32], strides = [1, 1]} : vector<8x96xf32> to vector<8x32xf32>
    %811 = arith.addf %809, %810 : vector<8x32xf32>
    %812 = arith.negf %811 : vector<8x32xf32>
    %813 = math.exp %812 : vector<8x32xf32>
    %cst_129 = arith.constant 1.000000e+00 : f32
    %814 = vector.broadcast %cst_129 : f32 to vector<8x32xf32>
    %815 = arith.addf %814, %813 : vector<8x32xf32>
    %816 = arith.divf %814, %815 : vector<8x32xf32>
    %817 = vector.extract_strided_slice %807 {offsets = [0, 32], sizes = [8, 32], strides = [1, 1]} : vector<8x96xf32> to vector<8x32xf32>
    %818 = vector.extract_strided_slice %808 {offsets = [0, 32], sizes = [8, 32], strides = [1, 1]} : vector<8x96xf32> to vector<8x32xf32>
    %819 = arith.addf %817, %818 : vector<8x32xf32>
    %820 = arith.negf %819 : vector<8x32xf32>
    %821 = math.exp %820 : vector<8x32xf32>
    %cst_130 = arith.constant 1.000000e+00 : f32
    %822 = vector.broadcast %cst_130 : f32 to vector<8x32xf32>
    %823 = arith.addf %822, %821 : vector<8x32xf32>
    %824 = arith.divf %822, %823 : vector<8x32xf32>
    %825 = vector.extract_strided_slice %807 {offsets = [0, 64], sizes = [8, 32], strides = [1, 1]} : vector<8x96xf32> to vector<8x32xf32>
    %826 = vector.extract_strided_slice %808 {offsets = [0, 64], sizes = [8, 32], strides = [1, 1]} : vector<8x96xf32> to vector<8x32xf32>
    %827 = vector.broadcast %10 : vector<1x32xf32> to vector<8x32xf32>
    %828 = arith.addf %826, %827 : vector<8x32xf32>
    %829 = arith.mulf %816, %828 : vector<8x32xf32>
    %830 = arith.addf %825, %829 : vector<8x32xf32>
    %831 = math.tanh %830 : vector<8x32xf32>
    %832 = arith.subf %798, %831 : vector<8x32xf32>
    %833 = arith.mulf %824, %832 : vector<8x32xf32>
    %834 = arith.addf %831, %833 : vector<8x32xf32>
    %835 = vector.extract_strided_slice %834 {offsets = [0, 31], sizes = [8, 1], strides = [1, 1]} : vector<8x32xf32> to vector<8x1xf32>
    %836 = arith.index_cast %c22_i32 : i32 to index
    %837 = memref.load %arg6[%836] : memref<32xf32, #tpu.memory_space<smem>>
    %838 = vector.broadcast %837 : f32 to vector<8x1xf32>
    %839 = arith.mulf %835, %838 : vector<8x1xf32>
    %840 = arith.addf %804, %839 : vector<8x1xf32>
    %c23_i32 = arith.constant 23 : i32
    %841 = arith.index_cast %c23_i32 : i32 to index
    %c0_131 = arith.constant 0 : index
    %c0_132 = arith.constant 0 : index
    %842 = vector.load %arg9[%841, %c0_131, %c0_132] : memref<32x8x96xf32, #tpu.memory_space<vmem>>, vector<1x8x96xf32>
    %843 = vector.shape_cast %842 : vector<1x8x96xf32> to vector<8x96xf32>
    %cst_133 = arith.constant dense<0.000000e+00> : vector<8x96xf32>
    %844 = tpu.matmul %834, %9, %cst_133 {dimension_numbers = #tpu.dot_dimension_numbers<[1], [0], [0], [1], [0, 0, 1, 1], [], []>} : vector<8x32xf32>, vector<32x96xf32>, vector<8x96xf32> -> vector<8x96xf32>
    %845 = vector.extract_strided_slice %843 {offsets = [0, 0], sizes = [8, 32], strides = [1, 1]} : vector<8x96xf32> to vector<8x32xf32>
    %846 = vector.extract_strided_slice %844 {offsets = [0, 0], sizes = [8, 32], strides = [1, 1]} : vector<8x96xf32> to vector<8x32xf32>
    %847 = arith.addf %845, %846 : vector<8x32xf32>
    %848 = arith.negf %847 : vector<8x32xf32>
    %849 = math.exp %848 : vector<8x32xf32>
    %cst_134 = arith.constant 1.000000e+00 : f32
    %850 = vector.broadcast %cst_134 : f32 to vector<8x32xf32>
    %851 = arith.addf %850, %849 : vector<8x32xf32>
    %852 = arith.divf %850, %851 : vector<8x32xf32>
    %853 = vector.extract_strided_slice %843 {offsets = [0, 32], sizes = [8, 32], strides = [1, 1]} : vector<8x96xf32> to vector<8x32xf32>
    %854 = vector.extract_strided_slice %844 {offsets = [0, 32], sizes = [8, 32], strides = [1, 1]} : vector<8x96xf32> to vector<8x32xf32>
    %855 = arith.addf %853, %854 : vector<8x32xf32>
    %856 = arith.negf %855 : vector<8x32xf32>
    %857 = math.exp %856 : vector<8x32xf32>
    %cst_135 = arith.constant 1.000000e+00 : f32
    %858 = vector.broadcast %cst_135 : f32 to vector<8x32xf32>
    %859 = arith.addf %858, %857 : vector<8x32xf32>
    %860 = arith.divf %858, %859 : vector<8x32xf32>
    %861 = vector.extract_strided_slice %843 {offsets = [0, 64], sizes = [8, 32], strides = [1, 1]} : vector<8x96xf32> to vector<8x32xf32>
    %862 = vector.extract_strided_slice %844 {offsets = [0, 64], sizes = [8, 32], strides = [1, 1]} : vector<8x96xf32> to vector<8x32xf32>
    %863 = vector.broadcast %10 : vector<1x32xf32> to vector<8x32xf32>
    %864 = arith.addf %862, %863 : vector<8x32xf32>
    %865 = arith.mulf %852, %864 : vector<8x32xf32>
    %866 = arith.addf %861, %865 : vector<8x32xf32>
    %867 = math.tanh %866 : vector<8x32xf32>
    %868 = arith.subf %834, %867 : vector<8x32xf32>
    %869 = arith.mulf %860, %868 : vector<8x32xf32>
    %870 = arith.addf %867, %869 : vector<8x32xf32>
    %871 = vector.extract_strided_slice %870 {offsets = [0, 31], sizes = [8, 1], strides = [1, 1]} : vector<8x32xf32> to vector<8x1xf32>
    %872 = arith.index_cast %c23_i32 : i32 to index
    %873 = memref.load %arg6[%872] : memref<32xf32, #tpu.memory_space<smem>>
    %874 = vector.broadcast %873 : f32 to vector<8x1xf32>
    %875 = arith.mulf %871, %874 : vector<8x1xf32>
    %876 = arith.addf %840, %875 : vector<8x1xf32>
    %c24_i32 = arith.constant 24 : i32
    %877 = arith.index_cast %c24_i32 : i32 to index
    %c0_136 = arith.constant 0 : index
    %c0_137 = arith.constant 0 : index
    %878 = vector.load %arg9[%877, %c0_136, %c0_137] : memref<32x8x96xf32, #tpu.memory_space<vmem>>, vector<1x8x96xf32>
    %879 = vector.shape_cast %878 : vector<1x8x96xf32> to vector<8x96xf32>
    %cst_138 = arith.constant dense<0.000000e+00> : vector<8x96xf32>
    %880 = tpu.matmul %870, %9, %cst_138 {dimension_numbers = #tpu.dot_dimension_numbers<[1], [0], [0], [1], [0, 0, 1, 1], [], []>} : vector<8x32xf32>, vector<32x96xf32>, vector<8x96xf32> -> vector<8x96xf32>
    %881 = vector.extract_strided_slice %879 {offsets = [0, 0], sizes = [8, 32], strides = [1, 1]} : vector<8x96xf32> to vector<8x32xf32>
    %882 = vector.extract_strided_slice %880 {offsets = [0, 0], sizes = [8, 32], strides = [1, 1]} : vector<8x96xf32> to vector<8x32xf32>
    %883 = arith.addf %881, %882 : vector<8x32xf32>
    %884 = arith.negf %883 : vector<8x32xf32>
    %885 = math.exp %884 : vector<8x32xf32>
    %cst_139 = arith.constant 1.000000e+00 : f32
    %886 = vector.broadcast %cst_139 : f32 to vector<8x32xf32>
    %887 = arith.addf %886, %885 : vector<8x32xf32>
    %888 = arith.divf %886, %887 : vector<8x32xf32>
    %889 = vector.extract_strided_slice %879 {offsets = [0, 32], sizes = [8, 32], strides = [1, 1]} : vector<8x96xf32> to vector<8x32xf32>
    %890 = vector.extract_strided_slice %880 {offsets = [0, 32], sizes = [8, 32], strides = [1, 1]} : vector<8x96xf32> to vector<8x32xf32>
    %891 = arith.addf %889, %890 : vector<8x32xf32>
    %892 = arith.negf %891 : vector<8x32xf32>
    %893 = math.exp %892 : vector<8x32xf32>
    %cst_140 = arith.constant 1.000000e+00 : f32
    %894 = vector.broadcast %cst_140 : f32 to vector<8x32xf32>
    %895 = arith.addf %894, %893 : vector<8x32xf32>
    %896 = arith.divf %894, %895 : vector<8x32xf32>
    %897 = vector.extract_strided_slice %879 {offsets = [0, 64], sizes = [8, 32], strides = [1, 1]} : vector<8x96xf32> to vector<8x32xf32>
    %898 = vector.extract_strided_slice %880 {offsets = [0, 64], sizes = [8, 32], strides = [1, 1]} : vector<8x96xf32> to vector<8x32xf32>
    %899 = vector.broadcast %10 : vector<1x32xf32> to vector<8x32xf32>
    %900 = arith.addf %898, %899 : vector<8x32xf32>
    %901 = arith.mulf %888, %900 : vector<8x32xf32>
    %902 = arith.addf %897, %901 : vector<8x32xf32>
    %903 = math.tanh %902 : vector<8x32xf32>
    %904 = arith.subf %870, %903 : vector<8x32xf32>
    %905 = arith.mulf %896, %904 : vector<8x32xf32>
    %906 = arith.addf %903, %905 : vector<8x32xf32>
    %907 = vector.extract_strided_slice %906 {offsets = [0, 31], sizes = [8, 1], strides = [1, 1]} : vector<8x32xf32> to vector<8x1xf32>
    %908 = arith.index_cast %c24_i32 : i32 to index
    %909 = memref.load %arg6[%908] : memref<32xf32, #tpu.memory_space<smem>>
    %910 = vector.broadcast %909 : f32 to vector<8x1xf32>
    %911 = arith.mulf %907, %910 : vector<8x1xf32>
    %912 = arith.addf %876, %911 : vector<8x1xf32>
    %c25_i32 = arith.constant 25 : i32
    %913 = arith.index_cast %c25_i32 : i32 to index
    %c0_141 = arith.constant 0 : index
    %c0_142 = arith.constant 0 : index
    %914 = vector.load %arg9[%913, %c0_141, %c0_142] : memref<32x8x96xf32, #tpu.memory_space<vmem>>, vector<1x8x96xf32>
    %915 = vector.shape_cast %914 : vector<1x8x96xf32> to vector<8x96xf32>
    %cst_143 = arith.constant dense<0.000000e+00> : vector<8x96xf32>
    %916 = tpu.matmul %906, %9, %cst_143 {dimension_numbers = #tpu.dot_dimension_numbers<[1], [0], [0], [1], [0, 0, 1, 1], [], []>} : vector<8x32xf32>, vector<32x96xf32>, vector<8x96xf32> -> vector<8x96xf32>
    %917 = vector.extract_strided_slice %915 {offsets = [0, 0], sizes = [8, 32], strides = [1, 1]} : vector<8x96xf32> to vector<8x32xf32>
    %918 = vector.extract_strided_slice %916 {offsets = [0, 0], sizes = [8, 32], strides = [1, 1]} : vector<8x96xf32> to vector<8x32xf32>
    %919 = arith.addf %917, %918 : vector<8x32xf32>
    %920 = arith.negf %919 : vector<8x32xf32>
    %921 = math.exp %920 : vector<8x32xf32>
    %cst_144 = arith.constant 1.000000e+00 : f32
    %922 = vector.broadcast %cst_144 : f32 to vector<8x32xf32>
    %923 = arith.addf %922, %921 : vector<8x32xf32>
    %924 = arith.divf %922, %923 : vector<8x32xf32>
    %925 = vector.extract_strided_slice %915 {offsets = [0, 32], sizes = [8, 32], strides = [1, 1]} : vector<8x96xf32> to vector<8x32xf32>
    %926 = vector.extract_strided_slice %916 {offsets = [0, 32], sizes = [8, 32], strides = [1, 1]} : vector<8x96xf32> to vector<8x32xf32>
    %927 = arith.addf %925, %926 : vector<8x32xf32>
    %928 = arith.negf %927 : vector<8x32xf32>
    %929 = math.exp %928 : vector<8x32xf32>
    %cst_145 = arith.constant 1.000000e+00 : f32
    %930 = vector.broadcast %cst_145 : f32 to vector<8x32xf32>
    %931 = arith.addf %930, %929 : vector<8x32xf32>
    %932 = arith.divf %930, %931 : vector<8x32xf32>
    %933 = vector.extract_strided_slice %915 {offsets = [0, 64], sizes = [8, 32], strides = [1, 1]} : vector<8x96xf32> to vector<8x32xf32>
    %934 = vector.extract_strided_slice %916 {offsets = [0, 64], sizes = [8, 32], strides = [1, 1]} : vector<8x96xf32> to vector<8x32xf32>
    %935 = vector.broadcast %10 : vector<1x32xf32> to vector<8x32xf32>
    %936 = arith.addf %934, %935 : vector<8x32xf32>
    %937 = arith.mulf %924, %936 : vector<8x32xf32>
    %938 = arith.addf %933, %937 : vector<8x32xf32>
    %939 = math.tanh %938 : vector<8x32xf32>
    %940 = arith.subf %906, %939 : vector<8x32xf32>
    %941 = arith.mulf %932, %940 : vector<8x32xf32>
    %942 = arith.addf %939, %941 : vector<8x32xf32>
    %943 = vector.extract_strided_slice %942 {offsets = [0, 31], sizes = [8, 1], strides = [1, 1]} : vector<8x32xf32> to vector<8x1xf32>
    %944 = arith.index_cast %c25_i32 : i32 to index
    %945 = memref.load %arg6[%944] : memref<32xf32, #tpu.memory_space<smem>>
    %946 = vector.broadcast %945 : f32 to vector<8x1xf32>
    %947 = arith.mulf %943, %946 : vector<8x1xf32>
    %948 = arith.addf %912, %947 : vector<8x1xf32>
    %c26_i32 = arith.constant 26 : i32
    %949 = arith.index_cast %c26_i32 : i32 to index
    %c0_146 = arith.constant 0 : index
    %c0_147 = arith.constant 0 : index
    %950 = vector.load %arg9[%949, %c0_146, %c0_147] : memref<32x8x96xf32, #tpu.memory_space<vmem>>, vector<1x8x96xf32>
    %951 = vector.shape_cast %950 : vector<1x8x96xf32> to vector<8x96xf32>
    %cst_148 = arith.constant dense<0.000000e+00> : vector<8x96xf32>
    %952 = tpu.matmul %942, %9, %cst_148 {dimension_numbers = #tpu.dot_dimension_numbers<[1], [0], [0], [1], [0, 0, 1, 1], [], []>} : vector<8x32xf32>, vector<32x96xf32>, vector<8x96xf32> -> vector<8x96xf32>
    %953 = vector.extract_strided_slice %951 {offsets = [0, 0], sizes = [8, 32], strides = [1, 1]} : vector<8x96xf32> to vector<8x32xf32>
    %954 = vector.extract_strided_slice %952 {offsets = [0, 0], sizes = [8, 32], strides = [1, 1]} : vector<8x96xf32> to vector<8x32xf32>
    %955 = arith.addf %953, %954 : vector<8x32xf32>
    %956 = arith.negf %955 : vector<8x32xf32>
    %957 = math.exp %956 : vector<8x32xf32>
    %cst_149 = arith.constant 1.000000e+00 : f32
    %958 = vector.broadcast %cst_149 : f32 to vector<8x32xf32>
    %959 = arith.addf %958, %957 : vector<8x32xf32>
    %960 = arith.divf %958, %959 : vector<8x32xf32>
    %961 = vector.extract_strided_slice %951 {offsets = [0, 32], sizes = [8, 32], strides = [1, 1]} : vector<8x96xf32> to vector<8x32xf32>
    %962 = vector.extract_strided_slice %952 {offsets = [0, 32], sizes = [8, 32], strides = [1, 1]} : vector<8x96xf32> to vector<8x32xf32>
    %963 = arith.addf %961, %962 : vector<8x32xf32>
    %964 = arith.negf %963 : vector<8x32xf32>
    %965 = math.exp %964 : vector<8x32xf32>
    %cst_150 = arith.constant 1.000000e+00 : f32
    %966 = vector.broadcast %cst_150 : f32 to vector<8x32xf32>
    %967 = arith.addf %966, %965 : vector<8x32xf32>
    %968 = arith.divf %966, %967 : vector<8x32xf32>
    %969 = vector.extract_strided_slice %951 {offsets = [0, 64], sizes = [8, 32], strides = [1, 1]} : vector<8x96xf32> to vector<8x32xf32>
    %970 = vector.extract_strided_slice %952 {offsets = [0, 64], sizes = [8, 32], strides = [1, 1]} : vector<8x96xf32> to vector<8x32xf32>
    %971 = vector.broadcast %10 : vector<1x32xf32> to vector<8x32xf32>
    %972 = arith.addf %970, %971 : vector<8x32xf32>
    %973 = arith.mulf %960, %972 : vector<8x32xf32>
    %974 = arith.addf %969, %973 : vector<8x32xf32>
    %975 = math.tanh %974 : vector<8x32xf32>
    %976 = arith.subf %942, %975 : vector<8x32xf32>
    %977 = arith.mulf %968, %976 : vector<8x32xf32>
    %978 = arith.addf %975, %977 : vector<8x32xf32>
    %979 = vector.extract_strided_slice %978 {offsets = [0, 31], sizes = [8, 1], strides = [1, 1]} : vector<8x32xf32> to vector<8x1xf32>
    %980 = arith.index_cast %c26_i32 : i32 to index
    %981 = memref.load %arg6[%980] : memref<32xf32, #tpu.memory_space<smem>>
    %982 = vector.broadcast %981 : f32 to vector<8x1xf32>
    %983 = arith.mulf %979, %982 : vector<8x1xf32>
    %984 = arith.addf %948, %983 : vector<8x1xf32>
    %c27_i32 = arith.constant 27 : i32
    %985 = arith.index_cast %c27_i32 : i32 to index
    %c0_151 = arith.constant 0 : index
    %c0_152 = arith.constant 0 : index
    %986 = vector.load %arg9[%985, %c0_151, %c0_152] : memref<32x8x96xf32, #tpu.memory_space<vmem>>, vector<1x8x96xf32>
    %987 = vector.shape_cast %986 : vector<1x8x96xf32> to vector<8x96xf32>
    %cst_153 = arith.constant dense<0.000000e+00> : vector<8x96xf32>
    %988 = tpu.matmul %978, %9, %cst_153 {dimension_numbers = #tpu.dot_dimension_numbers<[1], [0], [0], [1], [0, 0, 1, 1], [], []>} : vector<8x32xf32>, vector<32x96xf32>, vector<8x96xf32> -> vector<8x96xf32>
    %989 = vector.extract_strided_slice %987 {offsets = [0, 0], sizes = [8, 32], strides = [1, 1]} : vector<8x96xf32> to vector<8x32xf32>
    %990 = vector.extract_strided_slice %988 {offsets = [0, 0], sizes = [8, 32], strides = [1, 1]} : vector<8x96xf32> to vector<8x32xf32>
    %991 = arith.addf %989, %990 : vector<8x32xf32>
    %992 = arith.negf %991 : vector<8x32xf32>
    %993 = math.exp %992 : vector<8x32xf32>
    %cst_154 = arith.constant 1.000000e+00 : f32
    %994 = vector.broadcast %cst_154 : f32 to vector<8x32xf32>
    %995 = arith.addf %994, %993 : vector<8x32xf32>
    %996 = arith.divf %994, %995 : vector<8x32xf32>
    %997 = vector.extract_strided_slice %987 {offsets = [0, 32], sizes = [8, 32], strides = [1, 1]} : vector<8x96xf32> to vector<8x32xf32>
    %998 = vector.extract_strided_slice %988 {offsets = [0, 32], sizes = [8, 32], strides = [1, 1]} : vector<8x96xf32> to vector<8x32xf32>
    %999 = arith.addf %997, %998 : vector<8x32xf32>
    %1000 = arith.negf %999 : vector<8x32xf32>
    %1001 = math.exp %1000 : vector<8x32xf32>
    %cst_155 = arith.constant 1.000000e+00 : f32
    %1002 = vector.broadcast %cst_155 : f32 to vector<8x32xf32>
    %1003 = arith.addf %1002, %1001 : vector<8x32xf32>
    %1004 = arith.divf %1002, %1003 : vector<8x32xf32>
    %1005 = vector.extract_strided_slice %987 {offsets = [0, 64], sizes = [8, 32], strides = [1, 1]} : vector<8x96xf32> to vector<8x32xf32>
    %1006 = vector.extract_strided_slice %988 {offsets = [0, 64], sizes = [8, 32], strides = [1, 1]} : vector<8x96xf32> to vector<8x32xf32>
    %1007 = vector.broadcast %10 : vector<1x32xf32> to vector<8x32xf32>
    %1008 = arith.addf %1006, %1007 : vector<8x32xf32>
    %1009 = arith.mulf %996, %1008 : vector<8x32xf32>
    %1010 = arith.addf %1005, %1009 : vector<8x32xf32>
    %1011 = math.tanh %1010 : vector<8x32xf32>
    %1012 = arith.subf %978, %1011 : vector<8x32xf32>
    %1013 = arith.mulf %1004, %1012 : vector<8x32xf32>
    %1014 = arith.addf %1011, %1013 : vector<8x32xf32>
    %1015 = vector.extract_strided_slice %1014 {offsets = [0, 31], sizes = [8, 1], strides = [1, 1]} : vector<8x32xf32> to vector<8x1xf32>
    %1016 = arith.index_cast %c27_i32 : i32 to index
    %1017 = memref.load %arg6[%1016] : memref<32xf32, #tpu.memory_space<smem>>
    %1018 = vector.broadcast %1017 : f32 to vector<8x1xf32>
    %1019 = arith.mulf %1015, %1018 : vector<8x1xf32>
    %1020 = arith.addf %984, %1019 : vector<8x1xf32>
    %c28_i32 = arith.constant 28 : i32
    %1021 = arith.index_cast %c28_i32 : i32 to index
    %c0_156 = arith.constant 0 : index
    %c0_157 = arith.constant 0 : index
    %1022 = vector.load %arg9[%1021, %c0_156, %c0_157] : memref<32x8x96xf32, #tpu.memory_space<vmem>>, vector<1x8x96xf32>
    %1023 = vector.shape_cast %1022 : vector<1x8x96xf32> to vector<8x96xf32>
    %cst_158 = arith.constant dense<0.000000e+00> : vector<8x96xf32>
    %1024 = tpu.matmul %1014, %9, %cst_158 {dimension_numbers = #tpu.dot_dimension_numbers<[1], [0], [0], [1], [0, 0, 1, 1], [], []>} : vector<8x32xf32>, vector<32x96xf32>, vector<8x96xf32> -> vector<8x96xf32>
    %1025 = vector.extract_strided_slice %1023 {offsets = [0, 0], sizes = [8, 32], strides = [1, 1]} : vector<8x96xf32> to vector<8x32xf32>
    %1026 = vector.extract_strided_slice %1024 {offsets = [0, 0], sizes = [8, 32], strides = [1, 1]} : vector<8x96xf32> to vector<8x32xf32>
    %1027 = arith.addf %1025, %1026 : vector<8x32xf32>
    %1028 = arith.negf %1027 : vector<8x32xf32>
    %1029 = math.exp %1028 : vector<8x32xf32>
    %cst_159 = arith.constant 1.000000e+00 : f32
    %1030 = vector.broadcast %cst_159 : f32 to vector<8x32xf32>
    %1031 = arith.addf %1030, %1029 : vector<8x32xf32>
    %1032 = arith.divf %1030, %1031 : vector<8x32xf32>
    %1033 = vector.extract_strided_slice %1023 {offsets = [0, 32], sizes = [8, 32], strides = [1, 1]} : vector<8x96xf32> to vector<8x32xf32>
    %1034 = vector.extract_strided_slice %1024 {offsets = [0, 32], sizes = [8, 32], strides = [1, 1]} : vector<8x96xf32> to vector<8x32xf32>
    %1035 = arith.addf %1033, %1034 : vector<8x32xf32>
    %1036 = arith.negf %1035 : vector<8x32xf32>
    %1037 = math.exp %1036 : vector<8x32xf32>
    %cst_160 = arith.constant 1.000000e+00 : f32
    %1038 = vector.broadcast %cst_160 : f32 to vector<8x32xf32>
    %1039 = arith.addf %1038, %1037 : vector<8x32xf32>
    %1040 = arith.divf %1038, %1039 : vector<8x32xf32>
    %1041 = vector.extract_strided_slice %1023 {offsets = [0, 64], sizes = [8, 32], strides = [1, 1]} : vector<8x96xf32> to vector<8x32xf32>
    %1042 = vector.extract_strided_slice %1024 {offsets = [0, 64], sizes = [8, 32], strides = [1, 1]} : vector<8x96xf32> to vector<8x32xf32>
    %1043 = vector.broadcast %10 : vector<1x32xf32> to vector<8x32xf32>
    %1044 = arith.addf %1042, %1043 : vector<8x32xf32>
    %1045 = arith.mulf %1032, %1044 : vector<8x32xf32>
    %1046 = arith.addf %1041, %1045 : vector<8x32xf32>
    %1047 = math.tanh %1046 : vector<8x32xf32>
    %1048 = arith.subf %1014, %1047 : vector<8x32xf32>
    %1049 = arith.mulf %1040, %1048 : vector<8x32xf32>
    %1050 = arith.addf %1047, %1049 : vector<8x32xf32>
    %1051 = vector.extract_strided_slice %1050 {offsets = [0, 31], sizes = [8, 1], strides = [1, 1]} : vector<8x32xf32> to vector<8x1xf32>
    %1052 = arith.index_cast %c28_i32 : i32 to index
    %1053 = memref.load %arg6[%1052] : memref<32xf32, #tpu.memory_space<smem>>
    %1054 = vector.broadcast %1053 : f32 to vector<8x1xf32>
    %1055 = arith.mulf %1051, %1054 : vector<8x1xf32>
    %1056 = arith.addf %1020, %1055 : vector<8x1xf32>
    %c29_i32 = arith.constant 29 : i32
    %1057 = arith.index_cast %c29_i32 : i32 to index
    %c0_161 = arith.constant 0 : index
    %c0_162 = arith.constant 0 : index
    %1058 = vector.load %arg9[%1057, %c0_161, %c0_162] : memref<32x8x96xf32, #tpu.memory_space<vmem>>, vector<1x8x96xf32>
    %1059 = vector.shape_cast %1058 : vector<1x8x96xf32> to vector<8x96xf32>
    %cst_163 = arith.constant dense<0.000000e+00> : vector<8x96xf32>
    %1060 = tpu.matmul %1050, %9, %cst_163 {dimension_numbers = #tpu.dot_dimension_numbers<[1], [0], [0], [1], [0, 0, 1, 1], [], []>} : vector<8x32xf32>, vector<32x96xf32>, vector<8x96xf32> -> vector<8x96xf32>
    %1061 = vector.extract_strided_slice %1059 {offsets = [0, 0], sizes = [8, 32], strides = [1, 1]} : vector<8x96xf32> to vector<8x32xf32>
    %1062 = vector.extract_strided_slice %1060 {offsets = [0, 0], sizes = [8, 32], strides = [1, 1]} : vector<8x96xf32> to vector<8x32xf32>
    %1063 = arith.addf %1061, %1062 : vector<8x32xf32>
    %1064 = arith.negf %1063 : vector<8x32xf32>
    %1065 = math.exp %1064 : vector<8x32xf32>
    %cst_164 = arith.constant 1.000000e+00 : f32
    %1066 = vector.broadcast %cst_164 : f32 to vector<8x32xf32>
    %1067 = arith.addf %1066, %1065 : vector<8x32xf32>
    %1068 = arith.divf %1066, %1067 : vector<8x32xf32>
    %1069 = vector.extract_strided_slice %1059 {offsets = [0, 32], sizes = [8, 32], strides = [1, 1]} : vector<8x96xf32> to vector<8x32xf32>
    %1070 = vector.extract_strided_slice %1060 {offsets = [0, 32], sizes = [8, 32], strides = [1, 1]} : vector<8x96xf32> to vector<8x32xf32>
    %1071 = arith.addf %1069, %1070 : vector<8x32xf32>
    %1072 = arith.negf %1071 : vector<8x32xf32>
    %1073 = math.exp %1072 : vector<8x32xf32>
    %cst_165 = arith.constant 1.000000e+00 : f32
    %1074 = vector.broadcast %cst_165 : f32 to vector<8x32xf32>
    %1075 = arith.addf %1074, %1073 : vector<8x32xf32>
    %1076 = arith.divf %1074, %1075 : vector<8x32xf32>
    %1077 = vector.extract_strided_slice %1059 {offsets = [0, 64], sizes = [8, 32], strides = [1, 1]} : vector<8x96xf32> to vector<8x32xf32>
    %1078 = vector.extract_strided_slice %1060 {offsets = [0, 64], sizes = [8, 32], strides = [1, 1]} : vector<8x96xf32> to vector<8x32xf32>
    %1079 = vector.broadcast %10 : vector<1x32xf32> to vector<8x32xf32>
    %1080 = arith.addf %1078, %1079 : vector<8x32xf32>
    %1081 = arith.mulf %1068, %1080 : vector<8x32xf32>
    %1082 = arith.addf %1077, %1081 : vector<8x32xf32>
    %1083 = math.tanh %1082 : vector<8x32xf32>
    %1084 = arith.subf %1050, %1083 : vector<8x32xf32>
    %1085 = arith.mulf %1076, %1084 : vector<8x32xf32>
    %1086 = arith.addf %1083, %1085 : vector<8x32xf32>
    %1087 = vector.extract_strided_slice %1086 {offsets = [0, 31], sizes = [8, 1], strides = [1, 1]} : vector<8x32xf32> to vector<8x1xf32>
    %1088 = arith.index_cast %c29_i32 : i32 to index
    %1089 = memref.load %arg6[%1088] : memref<32xf32, #tpu.memory_space<smem>>
    %1090 = vector.broadcast %1089 : f32 to vector<8x1xf32>
    %1091 = arith.mulf %1087, %1090 : vector<8x1xf32>
    %1092 = arith.addf %1056, %1091 : vector<8x1xf32>
    %c30_i32 = arith.constant 30 : i32
    %1093 = arith.index_cast %c30_i32 : i32 to index
    %c0_166 = arith.constant 0 : index
    %c0_167 = arith.constant 0 : index
    %1094 = vector.load %arg9[%1093, %c0_166, %c0_167] : memref<32x8x96xf32, #tpu.memory_space<vmem>>, vector<1x8x96xf32>
    %1095 = vector.shape_cast %1094 : vector<1x8x96xf32> to vector<8x96xf32>
    %cst_168 = arith.constant dense<0.000000e+00> : vector<8x96xf32>
    %1096 = tpu.matmul %1086, %9, %cst_168 {dimension_numbers = #tpu.dot_dimension_numbers<[1], [0], [0], [1], [0, 0, 1, 1], [], []>} : vector<8x32xf32>, vector<32x96xf32>, vector<8x96xf32> -> vector<8x96xf32>
    %1097 = vector.extract_strided_slice %1095 {offsets = [0, 0], sizes = [8, 32], strides = [1, 1]} : vector<8x96xf32> to vector<8x32xf32>
    %1098 = vector.extract_strided_slice %1096 {offsets = [0, 0], sizes = [8, 32], strides = [1, 1]} : vector<8x96xf32> to vector<8x32xf32>
    %1099 = arith.addf %1097, %1098 : vector<8x32xf32>
    %1100 = arith.negf %1099 : vector<8x32xf32>
    %1101 = math.exp %1100 : vector<8x32xf32>
    %cst_169 = arith.constant 1.000000e+00 : f32
    %1102 = vector.broadcast %cst_169 : f32 to vector<8x32xf32>
    %1103 = arith.addf %1102, %1101 : vector<8x32xf32>
    %1104 = arith.divf %1102, %1103 : vector<8x32xf32>
    %1105 = vector.extract_strided_slice %1095 {offsets = [0, 32], sizes = [8, 32], strides = [1, 1]} : vector<8x96xf32> to vector<8x32xf32>
    %1106 = vector.extract_strided_slice %1096 {offsets = [0, 32], sizes = [8, 32], strides = [1, 1]} : vector<8x96xf32> to vector<8x32xf32>
    %1107 = arith.addf %1105, %1106 : vector<8x32xf32>
    %1108 = arith.negf %1107 : vector<8x32xf32>
    %1109 = math.exp %1108 : vector<8x32xf32>
    %cst_170 = arith.constant 1.000000e+00 : f32
    %1110 = vector.broadcast %cst_170 : f32 to vector<8x32xf32>
    %1111 = arith.addf %1110, %1109 : vector<8x32xf32>
    %1112 = arith.divf %1110, %1111 : vector<8x32xf32>
    %1113 = vector.extract_strided_slice %1095 {offsets = [0, 64], sizes = [8, 32], strides = [1, 1]} : vector<8x96xf32> to vector<8x32xf32>
    %1114 = vector.extract_strided_slice %1096 {offsets = [0, 64], sizes = [8, 32], strides = [1, 1]} : vector<8x96xf32> to vector<8x32xf32>
    %1115 = vector.broadcast %10 : vector<1x32xf32> to vector<8x32xf32>
    %1116 = arith.addf %1114, %1115 : vector<8x32xf32>
    %1117 = arith.mulf %1104, %1116 : vector<8x32xf32>
    %1118 = arith.addf %1113, %1117 : vector<8x32xf32>
    %1119 = math.tanh %1118 : vector<8x32xf32>
    %1120 = arith.subf %1086, %1119 : vector<8x32xf32>
    %1121 = arith.mulf %1112, %1120 : vector<8x32xf32>
    %1122 = arith.addf %1119, %1121 : vector<8x32xf32>
    %1123 = vector.extract_strided_slice %1122 {offsets = [0, 31], sizes = [8, 1], strides = [1, 1]} : vector<8x32xf32> to vector<8x1xf32>
    %1124 = arith.index_cast %c30_i32 : i32 to index
    %1125 = memref.load %arg6[%1124] : memref<32xf32, #tpu.memory_space<smem>>
    %1126 = vector.broadcast %1125 : f32 to vector<8x1xf32>
    %1127 = arith.mulf %1123, %1126 : vector<8x1xf32>
    %1128 = arith.addf %1092, %1127 : vector<8x1xf32>
    %c31_i32 = arith.constant 31 : i32
    %1129 = arith.index_cast %c31_i32 : i32 to index
    %c0_171 = arith.constant 0 : index
    %c0_172 = arith.constant 0 : index
    %1130 = vector.load %arg9[%1129, %c0_171, %c0_172] : memref<32x8x96xf32, #tpu.memory_space<vmem>>, vector<1x8x96xf32>
    %1131 = vector.shape_cast %1130 : vector<1x8x96xf32> to vector<8x96xf32>
    %cst_173 = arith.constant dense<0.000000e+00> : vector<8x96xf32>
    %1132 = tpu.matmul %1122, %9, %cst_173 {dimension_numbers = #tpu.dot_dimension_numbers<[1], [0], [0], [1], [0, 0, 1, 1], [], []>} : vector<8x32xf32>, vector<32x96xf32>, vector<8x96xf32> -> vector<8x96xf32>
    %1133 = vector.extract_strided_slice %1131 {offsets = [0, 0], sizes = [8, 32], strides = [1, 1]} : vector<8x96xf32> to vector<8x32xf32>
    %1134 = vector.extract_strided_slice %1132 {offsets = [0, 0], sizes = [8, 32], strides = [1, 1]} : vector<8x96xf32> to vector<8x32xf32>
    %1135 = arith.addf %1133, %1134 : vector<8x32xf32>
    %1136 = arith.negf %1135 : vector<8x32xf32>
    %1137 = math.exp %1136 : vector<8x32xf32>
    %cst_174 = arith.constant 1.000000e+00 : f32
    %1138 = vector.broadcast %cst_174 : f32 to vector<8x32xf32>
    %1139 = arith.addf %1138, %1137 : vector<8x32xf32>
    %1140 = arith.divf %1138, %1139 : vector<8x32xf32>
    %1141 = vector.extract_strided_slice %1131 {offsets = [0, 32], sizes = [8, 32], strides = [1, 1]} : vector<8x96xf32> to vector<8x32xf32>
    %1142 = vector.extract_strided_slice %1132 {offsets = [0, 32], sizes = [8, 32], strides = [1, 1]} : vector<8x96xf32> to vector<8x32xf32>
    %1143 = arith.addf %1141, %1142 : vector<8x32xf32>
    %1144 = arith.negf %1143 : vector<8x32xf32>
    %1145 = math.exp %1144 : vector<8x32xf32>
    %cst_175 = arith.constant 1.000000e+00 : f32
    %1146 = vector.broadcast %cst_175 : f32 to vector<8x32xf32>
    %1147 = arith.addf %1146, %1145 : vector<8x32xf32>
    %1148 = arith.divf %1146, %1147 : vector<8x32xf32>
    %1149 = vector.extract_strided_slice %1131 {offsets = [0, 64], sizes = [8, 32], strides = [1, 1]} : vector<8x96xf32> to vector<8x32xf32>
    %1150 = vector.extract_strided_slice %1132 {offsets = [0, 64], sizes = [8, 32], strides = [1, 1]} : vector<8x96xf32> to vector<8x32xf32>
    %1151 = vector.broadcast %10 : vector<1x32xf32> to vector<8x32xf32>
    %1152 = arith.addf %1150, %1151 : vector<8x32xf32>
    %1153 = arith.mulf %1140, %1152 : vector<8x32xf32>
    %1154 = arith.addf %1149, %1153 : vector<8x32xf32>
    %1155 = math.tanh %1154 : vector<8x32xf32>
    %1156 = arith.subf %1122, %1155 : vector<8x32xf32>
    %1157 = arith.mulf %1148, %1156 : vector<8x32xf32>
    %1158 = arith.addf %1155, %1157 : vector<8x32xf32>
    %1159 = vector.extract_strided_slice %1158 {offsets = [0, 31], sizes = [8, 1], strides = [1, 1]} : vector<8x32xf32> to vector<8x1xf32>
    %1160 = arith.index_cast %c31_i32 : i32 to index
    %1161 = memref.load %arg6[%1160] : memref<32xf32, #tpu.memory_space<smem>>
    %1162 = vector.broadcast %1161 : f32 to vector<8x1xf32>
    %1163 = arith.mulf %1159, %1162 : vector<8x1xf32>
    %1164 = arith.addf %1128, %1163 : vector<8x1xf32>
    %c32_i32 = arith.constant 32 : i32
    %c0_176 = arith.constant 0 : index
    %1165 = memref.load %arg7[%c0_176] : memref<1xf32, #tpu.memory_space<smem>>
    %1166 = vector.broadcast %1165 : f32 to vector<8x1xf32>
    %1167 = arith.addf %1164, %1166 : vector<8x1xf32>
    %c0_177 = arith.constant 0 : index
    %c0_178 = arith.constant 0 : index
    %1168 = vector.load %arg8[%c0_177, %c0_178] : memref<8x1xf32, #tpu.memory_space<vmem>>, vector<8x1xf32>
    tpu.vector_store %arg8[%c0_177, %c0_178], %1167 {strides = array<i32>} : memref<8x1xf32, #tpu.memory_space<vmem>>, vector<8x1xf32>,
    return
  }
}

</mosaic_0001>

<llo_original>
// kernel: rnn_forward.1
$region0: #{rnn_forward.1}
  #allocation0 [shape = 'u32[]', space=smem, size = 0x4, offset = 0x4, fixed_abs, tag = 'smem constant byte address 0x4 - core index']
  #allocation1 [shape = 'u32[72,128]{1,0:T(1,128)}', space=vmem, size = 0x9000, scoped, tag = 'internal scratch']
  #allocation2 [shape = 'f32[32,8,96]{2,1,0:T(8,128)}', space=vmem, size = 0x20000, scoped, tag = 'scratch operand']
  #allocation3 [shape = 'f32[1]{0:T(128)S(6)}', space=smem, size = 0x200, scoped, tag = 'scoped memory for rnn_forward.1']
  %s0 = inlined_call_operand.vmem [shape: f32[32,8,16], index: 0, kind: input, shape index: {}]
  %s1 = inlined_call_operand.vmem [shape: f32[16,96], index: 1, kind: input, shape index: {}]
  %s2 = inlined_call_operand.vmem [shape: f32[32,96], index: 2, kind: input, shape index: {}]
  %s3 = inlined_call_operand.vmem [shape: f32[1,96], index: 3, kind: input, shape index: {}]
  %s4 = inlined_call_operand.vmem [shape: f32[1,32], index: 4, kind: input, shape index: {}]
  %s5 = inlined_call_operand.vmem [shape: f32[8,32], index: 5, kind: input, shape index: {}]
  %s6 = inlined_call_operand.vmem [shape: f32[32], index: 6, kind: input, shape index: {}]
  %s7 = inlined_call_operand.<no memory space> [shape: f32[1], index: 7, kind: input, shape index: {}]
  %s8 = inlined_call_operand.vmem [shape: f32[8,1], index: 8, kind: output, shape index: {}]
  %s9 = sld [smem:[#allocation0]]
  $region46: #{rnn_forward.1} parent=0
    _
  %s11 = ssub.s32 1, %s9
  %s12 = scalar_select 0, %s11, %s9
  %13 = sst [smem:[#allocation3]] %s7
  $region1: #{rnn_forward.1} parent=0
    #allocation4 [shape = 'u8[512]{0}', space=smem, size = 0x200, scoped, tag = 'input window, operand 6, single buffered']
    #allocation5 [shape = 's32[1]{0}', space=sflag, size = 0x4, scoped, tag = 'scoped memory for rnn_forward.1']
    %14 = vsyncpa [#allocation5], 0
    // Predicated region
    $region2: #{rnn_forward.1} parent=1 // pred_check
      _
    $region3: #{rnn_forward.1} parent=1 // pred_check_branch
      %16 = sbr.rel (0) target = $region5
    $region4: #{rnn_forward.1} parent=1 // pred_region
      _
    $region5: #{rnn_forward.1} parent=1 // pred_fallthru
      _
    // Predicated region
    $region6: #{rnn_forward.1} parent=1 // pred_check
      _
    $region7: #{rnn_forward.1} parent=1 // pred_check_branch
      %18 = sbr.rel (0) target = $region9
    $region8: #{rnn_forward.1} parent=1 // pred_region
      _
    $region9: #{rnn_forward.1} parent=1 // pred_fallthru
      _
    // Predicated region
    $region10: #{rnn_forward.1} parent=1 // pred_check
      _
    $region11: #{rnn_forward.1} parent=1 // pred_check_branch
      %20 = sbr.rel (0) target = $region13
    $region12: #{rnn_forward.1} parent=1 // pred_region
      _
    $region13: #{rnn_forward.1} parent=1 // pred_fallthru
      _
    // Predicated region
    $region14: #{rnn_forward.1} parent=1 // pred_check
      _
    $region15: #{rnn_forward.1} parent=1 // pred_check_branch
      %22 = sbr.rel (0) target = $region17
    $region16: #{rnn_forward.1} parent=1 // pred_region
      _
    $region17: #{rnn_forward.1} parent=1 // pred_fallthru
      _
    // Predicated region
    $region18: #{rnn_forward.1} parent=1 // pred_check
      _
    $region19: #{rnn_forward.1} parent=1 // pred_check_branch
      %24 = sbr.rel (0) target = $region21
    $region20: #{rnn_forward.1} parent=1 // pred_region
      _
    $region21: #{rnn_forward.1} parent=1 // pred_fallthru
      _
    // Predicated region
    $region22: #{rnn_forward.1} parent=1 // pred_check
      _
    $region23: #{rnn_forward.1} parent=1 // pred_check_branch
      %26 = sbr.rel (0) target = $region25
    $region24: #{rnn_forward.1} parent=1 // pred_region
      _
    $region25: #{rnn_forward.1} parent=1 // pred_fallthru
      _
    // Predicated region
    $region26: #{rnn_forward.1} parent=1 // pred_check
      _
    $region27: #{rnn_forward.1} parent=1 // pred_check_branch
      %28 = sbr.rel (0) target = $region29
    $region28: #{rnn_forward.1} parent=1 // pred_region
      %30 = vsyncadd [#allocation5], 0
      %s32 = sshll.u32 %s6, 4
      %s33 = int_to_ptr.vmem [resolvable:$true] %s32
      %35 = dma.vmem_to_smem %s33, 16, [#allocation4], [#allocation5]
    $region29: #{rnn_forward.1} parent=1 // pred_fallthru
      _
    // Predicated region
    $region30: #{rnn_forward.1} parent=1 // pred_check
      _
    $region31: #{rnn_forward.1} parent=1 // pred_check_branch
      %37 = sbr.rel (0) target = $region33
    $region32: #{rnn_forward.1} parent=1 // pred_region
      _
    $region33: #{rnn_forward.1} parent=1 // pred_fallthru
      _
    // Predicated region
    $region34: #{rnn_forward.1} parent=1 // pred_check
      _
    $region35: #{rnn_forward.1} parent=1 // pred_check_branch
      %39 = sbr.rel (0) target = $region37
    $region36: #{rnn_forward.1} parent=1 // pred_region
      %41 = dma.done [#allocation5], 16
    $region37: #{rnn_forward.1} parent=1 // pred_fallthru
      _
    %42 = sfence
    %v43 = vld [vmem:[%s0] sm:$0xff]
    %v44 = vld [vmem:[%s0 + $0x8] sm:$0xff]
    %v45 = vld [vmem:[%s0 + $0x10] sm:$0xff]
    %v46 = vld [vmem:[%s0 + $0x18] sm:$0xff]
    %v47 = vld [vmem:[%s0 + $0x20] sm:$0xff]
    %v48 = vld [vmem:[%s0 + $0x28] sm:$0xff]
    %v49 = vld [vmem:[%s0 + $0x30] sm:$0xff]
    %v50 = vld [vmem:[%s0 + $0x38] sm:$0xff]
    %v51 = vld [vmem:[%s0 + $0x40] sm:$0xff]
    %v52 = vld [vmem:[%s0 + $0x48] sm:$0xff]
    %v53 = vld [vmem:[%s0 + $0x50] sm:$0xff]
    %v54 = vld [vmem:[%s0 + $0x58] sm:$0xff]
    %v55 = vld [vmem:[%s0 + $0x60] sm:$0xff]
    %v56 = vld [vmem:[%s0 + $0x68] sm:$0xff]
    %v57 = vld [vmem:[%s0 + $0x70] sm:$0xff]
    %v58 = vld [vmem:[%s0 + $0x78] sm:$0xff]
    %v59 = vld [vmem:[%s0 + $0x80] sm:$0xff]
    %v60 = vld [vmem:[%s0 + $0x88] sm:$0xff]
    %v61 = vld [vmem:[%s0 + $0x90] sm:$0xff]
    %v62 = vld [vmem:[%s0 + $0x98] sm:$0xff]
    %v63 = vld [vmem:[%s0 + $0xa0] sm:$0xff]
    %v64 = vld [vmem:[%s0 + $0xa8] sm:$0xff]
    %v65 = vld [vmem:[%s0 + $0xb0] sm:$0xff]
    %v66 = vld [vmem:[%s0 + $0xb8] sm:$0xff]
    %v67 = vld [vmem:[%s0 + $0xc0] sm:$0xff]
    %v68 = vld [vmem:[%s0 + $0xc8] sm:$0xff]
    %v69 = vld [vmem:[%s0 + $0xd0] sm:$0xff]
    %v70 = vld [vmem:[%s0 + $0xd8] sm:$0xff]
    %v71 = vld [vmem:[%s0 + $0xe0] sm:$0xff]
    %v72 = vld [vmem:[%s0 + $0xe8] sm:$0xff]
    %v73 = vld [vmem:[%s0 + $0xf0] sm:$0xff]
    %v74 = vld [vmem:[%s0 + $0xf8] sm:$0xff]
    %v75 = vld [vmem:[%s1] sm:$0xff]
    %v76 = vld [vmem:[%s1 + $0x8] sm:$0xff]
    %v77 = vld [vmem:[%s3] sm:$0x1]
    %v79 = vperm.slane %v77, 0
    %vm81 = vcmask 130048
    %v83 = vsel %vm81, %v43, 0
    %v86 = vsel %vm81, %v44, 0
    %v89 = vsel %vm81, %v45, 0
    %v92 = vsel %vm81, %v46, 0
    %v95 = vsel %vm81, %v47, 0
    %v98 = vsel %vm81, %v48, 0
    %v101 = vsel %vm81, %v49, 0
    %v104 = vsel %vm81, %v50, 0
    %v107 = vsel %vm81, %v51, 0
    %v110 = vsel %vm81, %v52, 0
    %v113 = vsel %vm81, %v53, 0
    %v116 = vsel %vm81, %v54, 0
    %v119 = vsel %vm81, %v55, 0
    %v122 = vsel %vm81, %v56, 0
    %v125 = vsel %vm81, %v57, 0
    %v128 = vsel %vm81, %v58, 0
    %v131 = vsel %vm81, %v59, 0
    %v134 = vsel %vm81, %v60, 0
    %v137 = vsel %vm81, %v61, 0
    %v140 = vsel %vm81, %v62, 0
    %v143 = vsel %vm81, %v63, 0
    %v146 = vsel %vm81, %v64, 0
    %v149 = vsel %vm81, %v65, 0
    %v152 = vsel %vm81, %v66, 0
    %v155 = vsel %vm81, %v67, 0
    %v158 = vsel %vm81, %v68, 0
    %v161 = vsel %vm81, %v69, 0
    %v164 = vsel %vm81, %v70, 0
    %v167 = vsel %vm81, %v71, 0
    %v170 = vsel %vm81, %v72, 0
    %v173 = vsel %vm81, %v73, 0
    %v176 = vsel %vm81, %v74, 0
    %178 = vmatpush.msra.mxu0 0.0
    %179 = vmatpush.msra.mxu0 0.0
    %180 = vmatpush.msra.mxu0 0.0
    %181 = vmatpush.msra.mxu0 0.0
    %182 = vmatpush.msra.mxu0 0.0
    %183 = vmatpush.msra.mxu0 0.0
    %184 = vmatpush.msra.mxu0 0.0
    %185 = vmatpush.msra.mxu0 0.0
    %186 = vmatpush.msra.mxu0 0.0
    %187 = vmatpush.msra.mxu0 0.0
    %188 = vmatpush.msra.mxu0 0.0
    %189 = vmatpush.msra.mxu0 0.0
    %190 = vmatpush.msra.mxu0 0.0
    %191 = vmatpush.msra.mxu0 0.0
    %192 = vmatpush.msra.mxu0 %v76
    %193 = vmatpush.msra.mxu0 %v75
    %194 = vmatmul.f32.gmra.mxu0 %v83
    %v195 = vpop.f32.mrf.mxu0
    %v196 = vadd.f32 %v79, %v195
    %197 = vmatmul.f32.gmra.mxu0 %v86
    %v198 = vpop.f32.mrf.mxu0
    %v199 = vadd.f32 %v79, %v198
    %200 = vmatmul.f32.gmra.mxu0 %v89
    %v201 = vpop.f32.mrf.mxu0
    %v202 = vadd.f32 %v79, %v201
    %203 = vmatmul.f32.gmra.mxu0 %v92
    %v204 = vpop.f32.mrf.mxu0
    %v205 = vadd.f32 %v79, %v204
    %206 = vmatmul.f32.gmra.mxu0 %v95
    %v207 = vpop.f32.mrf.mxu0
    %v208 = vadd.f32 %v79, %v207
    %209 = vmatmul.f32.gmra.mxu0 %v98
    %v210 = vpop.f32.mrf.mxu0
    %v211 = vadd.f32 %v79, %v210
    %212 = vmatmul.f32.gmra.mxu0 %v101
    %v213 = vpop.f32.mrf.mxu0
    %v214 = vadd.f32 %v79, %v213
    %215 = vmatmul.f32.gmra.mxu0 %v104
    %v216 = vpop.f32.mrf.mxu0
    %v217 = vadd.f32 %v79, %v216
    %218 = vmatmul.f32.gmra.mxu0 %v107
    %v219 = vpop.f32.mrf.mxu0
    %v220 = vadd.f32 %v79, %v219
    %221 = vmatmul.f32.gmra.mxu0 %v110
    %v222 = vpop.f32.mrf.mxu0
    %v223 = vadd.f32 %v79, %v222
    %224 = vmatmul.f32.gmra.mxu0 %v113
    %v225 = vpop.f32.mrf.mxu0
    %v226 = vadd.f32 %v79, %v225
    %227 = vmatmul.f32.gmra.mxu0 %v116
    %v228 = vpop.f32.mrf.mxu0
    %v229 = vadd.f32 %v79, %v228
    %230 = vmatmul.f32.gmra.mxu0 %v119
    %v231 = vpop.f32.mrf.mxu0
    %v232 = vadd.f32 %v79, %v231
    %233 = vmatmul.f32.gmra.mxu0 %v122
    %v234 = vpop.f32.mrf.mxu0
    %v235 = vadd.f32 %v79, %v234
    %236 = vmatmul.f32.gmra.mxu0 %v125
    %v237 = vpop.f32.mrf.mxu0
    %v238 = vadd.f32 %v79, %v237
    %239 = vmatmul.f32.gmra.mxu0 %v128
    %v240 = vpop.f32.mrf.mxu0
    %v241 = vadd.f32 %v79, %v240
    %242 = vmatmul.f32.gmra.mxu0 %v131
    %v243 = vpop.f32.mrf.mxu0
    %v244 = vadd.f32 %v79, %v243
    %245 = vmatmul.f32.gmra.mxu0 %v134
    %v246 = vpop.f32.mrf.mxu0
    %v247 = vadd.f32 %v79, %v246
    %248 = vmatmul.f32.gmra.mxu0 %v137
    %v249 = vpop.f32.mrf.mxu0
    %v250 = vadd.f32 %v79, %v249
    %251 = vmatmul.f32.gmra.mxu0 %v140
    %v252 = vpop.f32.mrf.mxu0
    %v253 = vadd.f32 %v79, %v252
    %254 = vmatmul.f32.gmra.mxu0 %v143
    %v255 = vpop.f32.mrf.mxu0
    %v256 = vadd.f32 %v79, %v255
    %257 = vmatmul.f32.gmra.mxu0 %v146
    %v258 = vpop.f32.mrf.mxu0
    %v259 = vadd.f32 %v79, %v258
    %260 = vmatmul.f32.gmra.mxu0 %v149
    %v261 = vpop.f32.mrf.mxu0
    %v262 = vadd.f32 %v79, %v261
    %263 = vmatmul.f32.gmra.mxu0 %v152
    %v264 = vpop.f32.mrf.mxu0
    %v265 = vadd.f32 %v79, %v264
    %266 = vmatmul.f32.gmra.mxu0 %v155
    %v267 = vpop.f32.mrf.mxu0
    %v268 = vadd.f32 %v79, %v267
    %269 = vmatmul.f32.gmra.mxu0 %v158
    %v270 = vpop.f32.mrf.mxu0
    %v271 = vadd.f32 %v79, %v270
    %272 = vmatmul.f32.gmra.mxu0 %v161
    %v273 = vpop.f32.mrf.mxu0
    %v274 = vadd.f32 %v79, %v273
    %275 = vmatmul.f32.gmra.mxu0 %v164
    %v276 = vpop.f32.mrf.mxu0
    %v277 = vadd.f32 %v79, %v276
    %278 = vmatmul.f32.gmra.mxu0 %v167
    %v279 = vpop.f32.mrf.mxu0
    %v280 = vadd.f32 %v79, %v279
    %281 = vmatmul.f32.gmra.mxu0 %v170
    %v282 = vpop.f32.mrf.mxu0
    %v283 = vadd.f32 %v79, %v282
    %284 = vmatmul.f32.gmra.mxu0 %v173
    %v285 = vpop.f32.mrf.mxu0
    %v286 = vadd.f32 %v79, %v285
    %287 = vmatmul.f32.gmra.mxu0 %v176
    %v288 = vpop.f32.mrf.mxu0
    %v289 = vadd.f32 %v79, %v288
    %290 = vdwg.mxu0
    %vm291 = vcmask 785408
    %292 = vst.msk [vmem:[#allocation2] sm:$0xff] %vm291, %v196
    %293 = vst.msk [vmem:[#allocation2 + $0x8] sm:$0xff] %vm291, %v199
    %294 = vst.msk [vmem:[#allocation2 + $0x10] sm:$0xff] %vm291, %v202
    %295 = vst.msk [vmem:[#allocation2 + $0x18] sm:$0xff] %vm291, %v205
    %296 = vst.msk [vmem:[#allocation2 + $0x20] sm:$0xff] %vm291, %v208
    %297 = vst.msk [vmem:[#allocation2 + $0x28] sm:$0xff] %vm291, %v211
    %298 = vst.msk [vmem:[#allocation2 + $0x30] sm:$0xff] %vm291, %v214
    %299 = vst.msk [vmem:[#allocation2 + $0x38] sm:$0xff] %vm291, %v217
    %300 = vst.msk [vmem:[#allocation2 + $0x40] sm:$0xff] %vm291, %v220
    %301 = vst.msk [vmem:[#allocation2 + $0x48] sm:$0xff] %vm291, %v223
    %302 = vst.msk [vmem:[#allocation2 + $0x50] sm:$0xff] %vm291, %v226
    %303 = vst.msk [vmem:[#allocation2 + $0x58] sm:$0xff] %vm291, %v229
    %304 = vst.msk [vmem:[#allocation2 + $0x60] sm:$0xff] %vm291, %v232
    %305 = vst.msk [vmem:[#allocation2 + $0x68] sm:$0xff] %vm291, %v235
    %306 = vst.msk [vmem:[#allocation2 + $0x70] sm:$0xff] %vm291, %v238
    %307 = vst.msk [vmem:[#allocation2 + $0x78] sm:$0xff] %vm291, %v241
    %308 = vst.msk [vmem:[#allocation2 + $0x80] sm:$0xff] %vm291, %v244
    %309 = vst.msk [vmem:[#allocation2 + $0x88] sm:$0xff] %vm291, %v247
    %310 = vst.msk [vmem:[#allocation2 + $0x90] sm:$0xff] %vm291, %v250
    %311 = vst.msk [vmem:[#allocation2 + $0x98] sm:$0xff] %vm291, %v253
    %312 = vst.msk [vmem:[#allocation2 + $0xa0] sm:$0xff] %vm291, %v256
    %313 = vst.msk [vmem:[#allocation2 + $0xa8] sm:$0xff] %vm291, %v259
    %314 = vst.msk [vmem:[#allocation2 + $0xb0] sm:$0xff] %vm291, %v262
    %315 = vst.msk [vmem:[#allocation2 + $0xb8] sm:$0xff] %vm291, %v265
    %316 = vst.msk [vmem:[#allocation2 + $0xc0] sm:$0xff] %vm291, %v268
    %317 = vst.msk [vmem:[#allocation2 + $0xc8] sm:$0xff] %vm291, %v271
    %318 = vst.msk [vmem:[#allocation2 + $0xd0] sm:$0xff] %vm291, %v274
    %319 = vst.msk [vmem:[#allocation2 + $0xd8] sm:$0xff] %vm291, %v277
    %320 = vst.msk [vmem:[#allocation2 + $0xe0] sm:$0xff] %vm291, %v280
    %321 = vst.msk [vmem:[#allocation2 + $0xe8] sm:$0xff] %vm291, %v283
    %322 = vst.msk [vmem:[#allocation2 + $0xf0] sm:$0xff] %vm291, %v286
    %323 = vst.msk [vmem:[#allocation2 + $0xf8] sm:$0xff] %vm291, %v289
    %v324 = vld [vmem:[%s2] sm:$0xff]
    %v325 = vld [vmem:[%s2 + $0x8] sm:$0xff]
    %v326 = vld [vmem:[%s2 + $0x10] sm:$0xff]
    %v327 = vld [vmem:[%s2 + $0x18] sm:$0xff]
    %v328 = vld [vmem:[%s4] sm:$0x1]
    %v329 = vld [vmem:[%s5] sm:$0xff]
    %v330 = vld [vmem:[#allocation2] sm:$0xff]
    %vm331 = vcmask 261120
    %v333 = vsel %vm331, %v329, 0
    %335 = vmatpush.msra.mxu0 0.0
    %336 = vmatpush.msra.mxu0 0.0
    %337 = vmatpush.msra.mxu0 0.0
    %338 = vmatpush.msra.mxu0 0.0
    %339 = vmatpush.msra.mxu0 0.0
    %340 = vmatpush.msra.mxu0 0.0
    %341 = vmatpush.msra.mxu0 0.0
    %342 = vmatpush.msra.mxu0 0.0
    %343 = vmatpush.msra.mxu0 0.0
    %344 = vmatpush.msra.mxu0 0.0
    %345 = vmatpush.msra.mxu0 0.0
    %346 = vmatpush.msra.mxu0 0.0
    %347 = vmatpush.msra.mxu0 %v327
    %348 = vmatpush.msra.mxu0 %v326
    %349 = vmatpush.msra.mxu0 %v325
    %350 = vmatpush.msra.mxu0 %v324
    %351 = vmatmul.f32.gmra.mxu0 %v333
    %v352 = vpop.f32.mrf.mxu0
    %v353 = vadd.f32 0.0, %v352
    %354 = vdwg.mxu0
    %v355 = vadd.f32 %v330, %v353
    %v356 = vxor.u32 %v355, 2147483648
    %v357 = vmul.f32 %v356, 1.442695
    %v358 = vpow.pop %v357
    %v359 = vadd.f32 %v358, 1.0
    %v360 = vrcp.pop %v359
    %v361 = vmul.f32 %v359, %v360
    %v362 = vsub.f32 1.0, %v361
    %v363 = vmul.f32 %v360, %v362
    %v364 = vadd.f32 %v360, %v363
    %vm365 = vweird.f32 %v359
    %vm366 = vweird.f32 %v360
    %vm367 = vmor %vm365, %vm366
    %v368 = vsel %vm367, %v360, %v364
    %v369 = vand.u32 2147483647, %v359
    %vm370 = vcmp.eq.f32.partialorder %v369, 8.507059e+37
    %v371 = vand.u32 %v359, 2147483648
    %v372 = vor.u32 1.1754944e-38, %v371
    %v373 = vsel %vm370, %v372, %v368
    %v374 = vmul.f32 1.0, %v373
    %v376 = vperm.slane %v328, 0
    %377 = vrot.lane.b32.xlu0 %v376, 64
    %v378 = vpop.permute.xlu0 %377
    %v380 = vadd.f32 %v353, %v378
    %382 = vrot.lane.b32.xlu0 %v380, 64
    %v383 = vpop.permute.xlu0 %382
    %v385 = vmul.f32 %v374, %v383
    %387 = vrot.lane.b32.xlu0 %v385, 64
    %v388 = vpop.permute.xlu0 %387
    %v390 = vadd.f32 %v330, %v388
    %v391 = vtanh.pop %v390
    %393 = vrot.lane.b32.xlu0 %v391, 64
    %v394 = vpop.permute.xlu0 %393
    %v396 = vsub.f32 %v329, %v394
    %398 = vrot.lane.b32.xlu0 %v396, 32
    %v399 = vpop.permute.xlu0 %398
    %v401 = vmul.f32 %v374, %v399
    %403 = vrot.lane.b32.xlu0 %v401, 32
    %v404 = vpop.permute.xlu0 %403
    %v406 = vadd.f32 %v391, %v404
    %s407 = sld [smem:[#allocation4]]
    %v408 = vstv %s407
    %v409 = vmul.f32 %v406, %v408
    %v410 = vadd.f32 %v409, 0.0
    %s411 = scalar_lea.vmem [#allocation2], 8
    %v412 = vld [vmem:[%s411] sm:$0xff]
    %414 = vrot.lane.b32.xlu0 %v406, 64
    %v415 = vpop.permute.xlu0 %414
    %v416 = vsel %vm331, %v415, 0
    %418 = vmatpush.msra.mxu0 0.0
    %419 = vmatpush.msra.mxu0 0.0
    %420 = vmatpush.msra.mxu0 0.0
    %421 = vmatpush.msra.mxu0 0.0
    %422 = vmatpush.msra.mxu0 0.0
    %423 = vmatpush.msra.mxu0 0.0
    %424 = vmatpush.msra.mxu0 0.0
    %425 = vmatpush.msra.mxu0 0.0
    %426 = vmatpush.msra.mxu0 0.0
    %427 = vmatpush.msra.mxu0 0.0
    %428 = vmatpush.msra.mxu0 0.0
    %429 = vmatpush.msra.mxu0 0.0
    %430 = vmatpush.msra.mxu0 %v327
    %431 = vmatpush.msra.mxu0 %v326
    %432 = vmatpush.msra.mxu0 %v325
    %433 = vmatpush.msra.mxu0 %v324
    %434 = vmatmul.f32.gmra.mxu0 %v416
    %v435 = vpop.f32.mrf.mxu0
    %v436 = vadd.f32 0.0, %v435
    %437 = vdwg.mxu0
    %v438 = vadd.f32 %v412, %v436
    %v439 = vxor.u32 %v438, 2147483648
    %v440 = vmul.f32 %v439, 1.442695
    %v441 = vpow.pop %v440
    %v442 = vadd.f32 %v441, 1.0
    %v443 = vrcp.pop %v442
    %v444 = vmul.f32 %v442, %v443
    %v445 = vsub.f32 1.0, %v444
    %v446 = vmul.f32 %v443, %v445
    %v447 = vadd.f32 %v443, %v446
    %vm448 = vweird.f32 %v442
    %vm449 = vweird.f32 %v443
    %vm450 = vmor %vm448, %vm449
    %v451 = vsel %vm450, %v443, %v447
    %v452 = vand.u32 2147483647, %v442
    %vm453 = vcmp.eq.f32.partialorder %v452, 8.507059e+37
    %v454 = vand.u32 %v442, 2147483648
    %v455 = vor.u32 1.1754944e-38, %v454
    %v456 = vsel %vm453, %v455, %v451
    %v457 = vmul.f32 1.0, %v456
    %v458 = vadd.f32 %v436, %v378
    %460 = vrot.lane.b32.xlu0 %v458, 64
    %v461 = vpop.permute.xlu0 %460
    %v463 = vmul.f32 %v457, %v461
    %465 = vrot.lane.b32.xlu0 %v463, 64
    %v466 = vpop.permute.xlu0 %465
    %v468 = vadd.f32 %v412, %v466
    %v469 = vtanh.pop %v468
    %v470 = vsub.f32 %v406, %v469
    %472 = vrot.lane.b32.xlu0 %v470, 96
    %v473 = vpop.permute.xlu0 %472
    %v475 = vmul.f32 %v457, %v473
    %477 = vrot.lane.b32.xlu0 %v475, 32
    %v478 = vpop.permute.xlu0 %477
    %v480 = vadd.f32 %v469, %v478
    %s481 = sld [smem:[#allocation4 + $0x1]]
    %v482 = vstv %s481
    %v483 = vmul.f32 %v480, %v482
    %v484 = vadd.f32 %v410, %v483
    %s485 = scalar_lea.vmem [#allocation2], 16
    %v486 = vld [vmem:[%s485] sm:$0xff]
    %488 = vrot.lane.b32.xlu0 %v480, 64
    %v489 = vpop.permute.xlu0 %488
    %v490 = vsel %vm331, %v489, 0
    %492 = vmatpush.msra.mxu0 0.0
    %493 = vmatpush.msra.mxu0 0.0
    %494 = vmatpush.msra.mxu0 0.0
    %495 = vmatpush.msra.mxu0 0.0
    %496 = vmatpush.msra.mxu0 0.0
    %497 = vmatpush.msra.mxu0 0.0
    %498 = vmatpush.msra.mxu0 0.0
    %499 = vmatpush.msra.mxu0 0.0
    %500 = vmatpush.msra.mxu0 0.0
    %501 = vmatpush.msra.mxu0 0.0
    %502 = vmatpush.msra.mxu0 0.0
    %503 = vmatpush.msra.mxu0 0.0
    %504 = vmatpush.msra.mxu0 %v327
    %505 = vmatpush.msra.mxu0 %v326
    %506 = vmatpush.msra.mxu0 %v325
    %507 = vmatpush.msra.mxu0 %v324
    %508 = vmatmul.f32.gmra.mxu0 %v490
    %v509 = vpop.f32.mrf.mxu0
    %v510 = vadd.f32 0.0, %v509
    %511 = vdwg.mxu0
    %v512 = vadd.f32 %v486, %v510
    %v513 = vxor.u32 %v512, 2147483648
    %v514 = vmul.f32 %v513, 1.442695
    %v515 = vpow.pop %v514
    %v516 = vadd.f32 %v515, 1.0
    %v517 = vrcp.pop %v516
    %v518 = vmul.f32 %v516, %v517
    %v519 = vsub.f32 1.0, %v518
    %v520 = vmul.f32 %v517, %v519
    %v521 = vadd.f32 %v517, %v520
    %vm522 = vweird.f32 %v516
    %vm523 = vweird.f32 %v517
    %vm524 = vmor %vm522, %vm523
    %v525 = vsel %vm524, %v517, %v521
    %v526 = vand.u32 2147483647, %v516
    %vm527 = vcmp.eq.f32.partialorder %v526, 8.507059e+37
    %v528 = vand.u32 %v516, 2147483648
    %v529 = vor.u32 1.1754944e-38, %v528
    %v530 = vsel %vm527, %v529, %v525
    %v531 = vmul.f32 1.0, %v530
    %v532 = vadd.f32 %v510, %v378
    %534 = vrot.lane.b32.xlu0 %v532, 64
    %v535 = vpop.permute.xlu0 %534
    %v537 = vmul.f32 %v531, %v535
    %539 = vrot.lane.b32.xlu0 %v537, 64
    %v540 = vpop.permute.xlu0 %539
    %v542 = vadd.f32 %v486, %v540
    %v543 = vtanh.pop %v542
    %v544 = vsub.f32 %v480, %v543
    %546 = vrot.lane.b32.xlu0 %v544, 96
    %v547 = vpop.permute.xlu0 %546
    %v549 = vmul.f32 %v531, %v547
    %551 = vrot.lane.b32.xlu0 %v549, 32
    %v552 = vpop.permute.xlu0 %551
    %v554 = vadd.f32 %v543, %v552
    %s555 = sld [smem:[#allocation4 + $0x2]]
    %v556 = vstv %s555
    %v557 = vmul.f32 %v554, %v556
    %v558 = vadd.f32 %v484, %v557
    %s559 = scalar_lea.vmem [#allocation2], 24
    %v560 = vld [vmem:[%s559] sm:$0xff]
    %562 = vrot.lane.b32.xlu0 %v554, 64
    %v563 = vpop.permute.xlu0 %562
    %v564 = vsel %vm331, %v563, 0
    %566 = vmatpush.msra.mxu0 0.0
    %567 = vmatpush.msra.mxu0 0.0
    %568 = vmatpush.msra.mxu0 0.0
    %569 = vmatpush.msra.mxu0 0.0
    %570 = vmatpush.msra.mxu0 0.0
    %571 = vmatpush.msra.mxu0 0.0
    %572 = vmatpush.msra.mxu0 0.0
    %573 = vmatpush.msra.mxu0 0.0
    %574 = vmatpush.msra.mxu0 0.0
    %575 = vmatpush.msra.mxu0 0.0
    %576 = vmatpush.msra.mxu0 0.0
    %577 = vmatpush.msra.mxu0 0.0
    %578 = vmatpush.msra.mxu0 %v327
    %579 = vmatpush.msra.mxu0 %v326
    %580 = vmatpush.msra.mxu0 %v325
    %581 = vmatpush.msra.mxu0 %v324
    %582 = vmatmul.f32.gmra.mxu0 %v564
    %v583 = vpop.f32.mrf.mxu0
    %v584 = vadd.f32 0.0, %v583
    %585 = vdwg.mxu0
    %v586 = vadd.f32 %v560, %v584
    %v587 = vxor.u32 %v586, 2147483648
    %v588 = vmul.f32 %v587, 1.442695
    %v589 = vpow.pop %v588
    %v590 = vadd.f32 %v589, 1.0
    %v591 = vrcp.pop %v590
    %v592 = vmul.f32 %v590, %v591
    %v593 = vsub.f32 1.0, %v592
    %v594 = vmul.f32 %v591, %v593
    %v595 = vadd.f32 %v591, %v594
    %vm596 = vweird.f32 %v590
    %vm597 = vweird.f32 %v591
    %vm598 = vmor %vm596, %vm597
    %v599 = vsel %vm598, %v591, %v595
    %v600 = vand.u32 2147483647, %v590
    %vm601 = vcmp.eq.f32.partialorder %v600, 8.507059e+37
    %v602 = vand.u32 %v590, 2147483648
    %v603 = vor.u32 1.1754944e-38, %v602
    %v604 = vsel %vm601, %v603, %v599
    %v605 = vmul.f32 1.0, %v604
    %v606 = vadd.f32 %v584, %v378
    %608 = vrot.lane.b32.xlu0 %v606, 64
    %v609 = vpop.permute.xlu0 %608
    %v611 = vmul.f32 %v605, %v609
    %613 = vrot.lane.b32.xlu0 %v611, 64
    %v614 = vpop.permute.xlu0 %613
    %v616 = vadd.f32 %v560, %v614
    %v617 = vtanh.pop %v616
    %v618 = vsub.f32 %v554, %v617
    %620 = vrot.lane.b32.xlu0 %v618, 96
    %v621 = vpop.permute.xlu0 %620
    %v623 = vmul.f32 %v605, %v621
    %625 = vrot.lane.b32.xlu0 %v623, 32
    %v626 = vpop.permute.xlu0 %625
    %v628 = vadd.f32 %v617, %v626
    %s629 = sld [smem:[#allocation4 + $0x3]]
    %v630 = vstv %s629
    %v631 = vmul.f32 %v628, %v630
    %v632 = vadd.f32 %v558, %v631
    %s633 = scalar_lea.vmem [#allocation2], 32
    %v634 = vld [vmem:[%s633] sm:$0xff]
    %636 = vrot.lane.b32.xlu0 %v628, 64
    %v637 = vpop.permute.xlu0 %636
    %v638 = vsel %vm331, %v637, 0
    %640 = vmatpush.msra.mxu0 0.0
    %641 = vmatpush.msra.mxu0 0.0
    %642 = vmatpush.msra.mxu0 0.0
    %643 = vmatpush.msra.mxu0 0.0
    %644 = vmatpush.msra.mxu0 0.0
    %645 = vmatpush.msra.mxu0 0.0
    %646 = vmatpush.msra.mxu0 0.0
    %647 = vmatpush.msra.mxu0 0.0
    %648 = vmatpush.msra.mxu0 0.0
    %649 = vmatpush.msra.mxu0 0.0
    %650 = vmatpush.msra.mxu0 0.0
    %651 = vmatpush.msra.mxu0 0.0
    %652 = vmatpush.msra.mxu0 %v327
    %653 = vmatpush.msra.mxu0 %v326
    %654 = vmatpush.msra.mxu0 %v325
    %655 = vmatpush.msra.mxu0 %v324
    %656 = vmatmul.f32.gmra.mxu0 %v638
    %v657 = vpop.f32.mrf.mxu0
    %v658 = vadd.f32 0.0, %v657
    %659 = vdwg.mxu0
    %v660 = vadd.f32 %v634, %v658
    %v661 = vxor.u32 %v660, 2147483648
    %v662 = vmul.f32 %v661, 1.442695
    %v663 = vpow.pop %v662
    %v664 = vadd.f32 %v663, 1.0
    %v665 = vrcp.pop %v664
    %v666 = vmul.f32 %v664, %v665
    %v667 = vsub.f32 1.0, %v666
    %v668 = vmul.f32 %v665, %v667
    %v669 = vadd.f32 %v665, %v668
    %vm670 = vweird.f32 %v664
    %vm671 = vweird.f32 %v665
    %vm672 = vmor %vm670, %vm671
    %v673 = vsel %vm672, %v665, %v669
    %v674 = vand.u32 2147483647, %v664
    %vm675 = vcmp.eq.f32.partialorder %v674, 8.507059e+37
    %v676 = vand.u32 %v664, 2147483648
    %v677 = vor.u32 1.1754944e-38, %v676
    %v678 = vsel %vm675, %v677, %v673
    %v679 = vmul.f32 1.0, %v678
    %v680 = vadd.f32 %v658, %v378
    %682 = vrot.lane.b32.xlu0 %v680, 64
    %v683 = vpop.permute.xlu0 %682
    %v685 = vmul.f32 %v679, %v683
    %687 = vrot.lane.b32.xlu0 %v685, 64
    %v688 = vpop.permute.xlu0 %687
    %v690 = vadd.f32 %v634, %v688
    %v691 = vtanh.pop %v690
    %v692 = vsub.f32 %v628, %v691
    %694 = vrot.lane.b32.xlu0 %v692, 96
    %v695 = vpop.permute.xlu0 %694
    %v697 = vmul.f32 %v679, %v695
    %699 = vrot.lane.b32.xlu0 %v697, 32
    %v700 = vpop.permute.xlu0 %699
    %v702 = vadd.f32 %v691, %v700
    %s703 = sld [smem:[#allocation4 + $0x4]]
    %v704 = vstv %s703
    %v705 = vmul.f32 %v702, %v704
    %v706 = vadd.f32 %v632, %v705
    %s707 = scalar_lea.vmem [#allocation2], 40
    %v708 = vld [vmem:[%s707] sm:$0xff]
    %710 = vrot.lane.b32.xlu0 %v702, 64
    %v711 = vpop.permute.xlu0 %710
    %v712 = vsel %vm331, %v711, 0
    %714 = vmatpush.msra.mxu0 0.0
    %715 = vmatpush.msra.mxu0 0.0
    %716 = vmatpush.msra.mxu0 0.0
    %717 = vmatpush.msra.mxu0 0.0
    %718 = vmatpush.msra.mxu0 0.0
    %719 = vmatpush.msra.mxu0 0.0
    %720 = vmatpush.msra.mxu0 0.0
    %721 = vmatpush.msra.mxu0 0.0
    %722 = vmatpush.msra.mxu0 0.0
    %723 = vmatpush.msra.mxu0 0.0
    %724 = vmatpush.msra.mxu0 0.0
    %725 = vmatpush.msra.mxu0 0.0
    %726 = vmatpush.msra.mxu0 %v327
    %727 = vmatpush.msra.mxu0 %v326
    %728 = vmatpush.msra.mxu0 %v325
    %729 = vmatpush.msra.mxu0 %v324
    %730 = vmatmul.f32.gmra.mxu0 %v712
    %v731 = vpop.f32.mrf.mxu0
    %v732 = vadd.f32 0.0, %v731
    %733 = vdwg.mxu0
    %v734 = vadd.f32 %v708, %v732
    %v735 = vxor.u32 %v734, 2147483648
    %v736 = vmul.f32 %v735, 1.442695
    %v737 = vpow.pop %v736
    %v738 = vadd.f32 %v737, 1.0
    %v739 = vrcp.pop %v738
    %v740 = vmul.f32 %v738, %v739
    %v741 = vsub.f32 1.0, %v740
    %v742 = vmul.f32 %v739, %v741
    %v743 = vadd.f32 %v739, %v742
    %vm744 = vweird.f32 %v738
    %vm745 = vweird.f32 %v739
    %vm746 = vmor %vm744, %vm745
    %v747 = vsel %vm746, %v739, %v743
    %v748 = vand.u32 2147483647, %v738
    %vm749 = vcmp.eq.f32.partialorder %v748, 8.507059e+37
    %v750 = vand.u32 %v738, 2147483648
    %v751 = vor.u32 1.1754944e-38, %v750
    %v752 = vsel %vm749, %v751, %v747
    %v753 = vmul.f32 1.0, %v752
    %v754 = vadd.f32 %v732, %v378
    %756 = vrot.lane.b32.xlu0 %v754, 64
    %v757 = vpop.permute.xlu0 %756
    %v759 = vmul.f32 %v753, %v757
    %761 = vrot.lane.b32.xlu0 %v759, 64
    %v762 = vpop.permute.xlu0 %761
    %v764 = vadd.f32 %v708, %v762
    %v765 = vtanh.pop %v764
    %v766 = vsub.f32 %v702, %v765
    %768 = vrot.lane.b32.xlu0 %v766, 96
    %v769 = vpop.permute.xlu0 %768
    %v771 = vmul.f32 %v753, %v769
    %773 = vrot.lane.b32.xlu0 %v771, 32
    %v774 = vpop.permute.xlu0 %773
    %v776 = vadd.f32 %v765, %v774
    %s777 = sld [smem:[#allocation4 + $0x5]]
    %v778 = vstv %s777
    %v779 = vmul.f32 %v776, %v778
    %v780 = vadd.f32 %v706, %v779
    %s781 = scalar_lea.vmem [#allocation2], 48
    %v782 = vld [vmem:[%s781] sm:$0xff]
    %784 = vrot.lane.b32.xlu0 %v776, 64
    %v785 = vpop.permute.xlu0 %784
    %v786 = vsel %vm331, %v785, 0
    %788 = vmatpush.msra.mxu0 0.0
    %789 = vmatpush.msra.mxu0 0.0
    %790 = vmatpush.msra.mxu0 0.0
    %791 = vmatpush.msra.mxu0 0.0
    %792 = vmatpush.msra.mxu0 0.0
    %793 = vmatpush.msra.mxu0 0.0
    %794 = vmatpush.msra.mxu0 0.0
    %795 = vmatpush.msra.mxu0 0.0
    %796 = vmatpush.msra.mxu0 0.0
    %797 = vmatpush.msra.mxu0 0.0
    %798 = vmatpush.msra.mxu0 0.0
    %799 = vmatpush.msra.mxu0 0.0
    %800 = vmatpush.msra.mxu0 %v327
    %801 = vmatpush.msra.mxu0 %v326
    %802 = vmatpush.msra.mxu0 %v325
    %803 = vmatpush.msra.mxu0 %v324
    %804 = vmatmul.f32.gmra.mxu0 %v786
    %v805 = vpop.f32.mrf.mxu0
    %v806 = vadd.f32 0.0, %v805
    %807 = vdwg.mxu0
    %v808 = vadd.f32 %v782, %v806
    %v809 = vxor.u32 %v808, 2147483648
    %v810 = vmul.f32 %v809, 1.442695
    %v811 = vpow.pop %v810
    %v812 = vadd.f32 %v811, 1.0
    %v813 = vrcp.pop %v812
    %v814 = vmul.f32 %v812, %v813
    %v815 = vsub.f32 1.0, %v814
    %v816 = vmul.f32 %v813, %v815
    %v817 = vadd.f32 %v813, %v816
    %vm818 = vweird.f32 %v812
    %vm819 = vweird.f32 %v813
    %vm820 = vmor %vm818, %vm819
    %v821 = vsel %vm820, %v813, %v817
    %v822 = vand.u32 2147483647, %v812
    %vm823 = vcmp.eq.f32.partialorder %v822, 8.507059e+37
    %v824 = vand.u32 %v812, 2147483648
    %v825 = vor.u32 1.1754944e-38, %v824
    %v826 = vsel %vm823, %v825, %v821
    %v827 = vmul.f32 1.0, %v826
    %v828 = vadd.f32 %v806, %v378
    %830 = vrot.lane.b32.xlu0 %v828, 64
    %v831 = vpop.permute.xlu0 %830
    %v833 = vmul.f32 %v827, %v831
    %835 = vrot.lane.b32.xlu0 %v833, 64
    %v836 = vpop.permute.xlu0 %835
    %v838 = vadd.f32 %v782, %v836
    %v839 = vtanh.pop %v838
    %v840 = vsub.f32 %v776, %v839
    %842 = vrot.lane.b32.xlu0 %v840, 96
    %v843 = vpop.permute.xlu0 %842
    %v845 = vmul.f32 %v827, %v843
    %847 = vrot.lane.b32.xlu0 %v845, 32
    %v848 = vpop.permute.xlu0 %847
    %v850 = vadd.f32 %v839, %v848
    %s851 = sld [smem:[#allocation4 + $0x6]]
    %v852 = vstv %s851
    %v853 = vmul.f32 %v850, %v852
    %v854 = vadd.f32 %v780, %v853
    %s855 = scalar_lea.vmem [#allocation2], 56
    %v856 = vld [vmem:[%s855] sm:$0xff]
    %858 = vrot.lane.b32.xlu0 %v850, 64
    %v859 = vpop.permute.xlu0 %858
    %v860 = vsel %vm331, %v859, 0
    %862 = vmatpush.msra.mxu0 0.0
    %863 = vmatpush.msra.mxu0 0.0
    %864 = vmatpush.msra.mxu0 0.0
    %865 = vmatpush.msra.mxu0 0.0
    %866 = vmatpush.msra.mxu0 0.0
    %867 = vmatpush.msra.mxu0 0.0
    %868 = vmatpush.msra.mxu0 0.0
    %869 = vmatpush.msra.mxu0 0.0
    %870 = vmatpush.msra.mxu0 0.0
    %871 = vmatpush.msra.mxu0 0.0
    %872 = vmatpush.msra.mxu0 0.0
    %873 = vmatpush.msra.mxu0 0.0
    %874 = vmatpush.msra.mxu0 %v327
    %875 = vmatpush.msra.mxu0 %v326
    %876 = vmatpush.msra.mxu0 %v325
    %877 = vmatpush.msra.mxu0 %v324
    %878 = vmatmul.f32.gmra.mxu0 %v860
    %v879 = vpop.f32.mrf.mxu0
    %v880 = vadd.f32 0.0, %v879
    %881 = vdwg.mxu0
    %v882 = vadd.f32 %v856, %v880
    %v883 = vxor.u32 %v882, 2147483648
    %v884 = vmul.f32 %v883, 1.442695
    %v885 = vpow.pop %v884
    %v886 = vadd.f32 %v885, 1.0
    %v887 = vrcp.pop %v886
    %v888 = vmul.f32 %v886, %v887
    %v889 = vsub.f32 1.0, %v888
    %v890 = vmul.f32 %v887, %v889
    %v891 = vadd.f32 %v887, %v890
    %vm892 = vweird.f32 %v886
    %vm893 = vweird.f32 %v887
    %vm894 = vmor %vm892, %vm893
    %v895 = vsel %vm894, %v887, %v891
    %v896 = vand.u32 2147483647, %v886
    %vm897 = vcmp.eq.f32.partialorder %v896, 8.507059e+37
    %v898 = vand.u32 %v886, 2147483648
    %v899 = vor.u32 1.1754944e-38, %v898
    %v900 = vsel %vm897, %v899, %v895
    %v901 = vmul.f32 1.0, %v900
    %v902 = vadd.f32 %v880, %v378
    %904 = vrot.lane.b32.xlu0 %v902, 64
    %v905 = vpop.permute.xlu0 %904
    %v907 = vmul.f32 %v901, %v905
    %909 = vrot.lane.b32.xlu0 %v907, 64
    %v910 = vpop.permute.xlu0 %909
    %v912 = vadd.f32 %v856, %v910
    %v913 = vtanh.pop %v912
    %v914 = vsub.f32 %v850, %v913
    %916 = vrot.lane.b32.xlu0 %v914, 96
    %v917 = vpop.permute.xlu0 %916
    %v919 = vmul.f32 %v901, %v917
    %921 = vrot.lane.b32.xlu0 %v919, 32
    %v922 = vpop.permute.xlu0 %921
    %v924 = vadd.f32 %v913, %v922
    %s925 = sld [smem:[#allocation4 + $0x7]]
    %v926 = vstv %s925
    %v927 = vmul.f32 %v924, %v926
    %v928 = vadd.f32 %v854, %v927
    %s929 = scalar_lea.vmem [#allocation2], 64
    %v930 = vld [vmem:[%s929] sm:$0xff]
    %932 = vrot.lane.b32.xlu0 %v924, 64
    %v933 = vpop.permute.xlu0 %932
    %v934 = vsel %vm331, %v933, 0
    %936 = vmatpush.msra.mxu0 0.0
    %937 = vmatpush.msra.mxu0 0.0
    %938 = vmatpush.msra.mxu0 0.0
    %939 = vmatpush.msra.mxu0 0.0
    %940 = vmatpush.msra.mxu0 0.0
    %941 = vmatpush.msra.mxu0 0.0
    %942 = vmatpush.msra.mxu0 0.0
    %943 = vmatpush.msra.mxu0 0.0
    %944 = vmatpush.msra.mxu0 0.0
    %945 = vmatpush.msra.mxu0 0.0
    %946 = vmatpush.msra.mxu0 0.0
    %947 = vmatpush.msra.mxu0 0.0
    %948 = vmatpush.msra.mxu0 %v327
    %949 = vmatpush.msra.mxu0 %v326
    %950 = vmatpush.msra.mxu0 %v325
    %951 = vmatpush.msra.mxu0 %v324
    %952 = vmatmul.f32.gmra.mxu0 %v934
    %v953 = vpop.f32.mrf.mxu0
    %v954 = vadd.f32 0.0, %v953
    %955 = vdwg.mxu0
    %v956 = vadd.f32 %v930, %v954
    %v957 = vxor.u32 %v956, 2147483648
    %v958 = vmul.f32 %v957, 1.442695
    %v959 = vpow.pop %v958
    %v960 = vadd.f32 %v959, 1.0
    %v961 = vrcp.pop %v960
    %v962 = vmul.f32 %v960, %v961
    %v963 = vsub.f32 1.0, %v962
    %v964 = vmul.f32 %v961, %v963
    %v965 = vadd.f32 %v961, %v964
    %vm966 = vweird.f32 %v960
    %vm967 = vweird.f32 %v961
    %vm968 = vmor %vm966, %vm967
    %v969 = vsel %vm968, %v961, %v965
    %v970 = vand.u32 2147483647, %v960
    %vm971 = vcmp.eq.f32.partialorder %v970, 8.507059e+37
    %v972 = vand.u32 %v960, 2147483648
    %v973 = vor.u32 1.1754944e-38, %v972
    %v974 = vsel %vm971, %v973, %v969
    %v975 = vmul.f32 1.0, %v974
    %v976 = vadd.f32 %v954, %v378
    %978 = vrot.lane.b32.xlu0 %v976, 64
    %v979 = vpop.permute.xlu0 %978
    %v981 = vmul.f32 %v975, %v979
    %983 = vrot.lane.b32.xlu0 %v981, 64
    %v984 = vpop.permute.xlu0 %983
    %v986 = vadd.f32 %v930, %v984
    %v987 = vtanh.pop %v986
    %v988 = vsub.f32 %v924, %v987
    %990 = vrot.lane.b32.xlu0 %v988, 96
    %v991 = vpop.permute.xlu0 %990
    %v993 = vmul.f32 %v975, %v991
    %995 = vrot.lane.b32.xlu0 %v993, 32
    %v996 = vpop.permute.xlu0 %995
    %v998 = vadd.f32 %v987, %v996
    %s999 = sld [smem:[#allocation4 + $0x8]]
    %v1000 = vstv %s999
    %v1001 = vmul.f32 %v998, %v1000
    %v1002 = vadd.f32 %v928, %v1001
    %s1003 = scalar_lea.vmem [#allocation2], 72
    %v1004 = vld [vmem:[%s1003] sm:$0xff]
    %1006 = vrot.lane.b32.xlu0 %v998, 64
    %v1007 = vpop.permute.xlu0 %1006
    %v1008 = vsel %vm331, %v1007, 0
    %1010 = vmatpush.msra.mxu0 0.0
    %1011 = vmatpush.msra.mxu0 0.0
    %1012 = vmatpush.msra.mxu0 0.0
    %1013 = vmatpush.msra.mxu0 0.0
    %1014 = vmatpush.msra.mxu0 0.0
    %1015 = vmatpush.msra.mxu0 0.0
    %1016 = vmatpush.msra.mxu0 0.0
    %1017 = vmatpush.msra.mxu0 0.0
    %1018 = vmatpush.msra.mxu0 0.0
    %1019 = vmatpush.msra.mxu0 0.0
    %1020 = vmatpush.msra.mxu0 0.0
    %1021 = vmatpush.msra.mxu0 0.0
    %1022 = vmatpush.msra.mxu0 %v327
    %1023 = vmatpush.msra.mxu0 %v326
    %1024 = vmatpush.msra.mxu0 %v325
    %1025 = vmatpush.msra.mxu0 %v324
    %1026 = vmatmul.f32.gmra.mxu0 %v1008
    %v1027 = vpop.f32.mrf.mxu0
    %v1028 = vadd.f32 0.0, %v1027
    %1029 = vdwg.mxu0
    %v1030 = vadd.f32 %v1004, %v1028
    %v1031 = vxor.u32 %v1030, 2147483648
    %v1032 = vmul.f32 %v1031, 1.442695
    %v1033 = vpow.pop %v1032
    %v1034 = vadd.f32 %v1033, 1.0
    %v1035 = vrcp.pop %v1034
    %v1036 = vmul.f32 %v1034, %v1035
    %v1037 = vsub.f32 1.0, %v1036
    %v1038 = vmul.f32 %v1035, %v1037
    %v1039 = vadd.f32 %v1035, %v1038
    %vm1040 = vweird.f32 %v1034
    %vm1041 = vweird.f32 %v1035
    %vm1042 = vmor %vm1040, %vm1041
    %v1043 = vsel %vm1042, %v1035, %v1039
    %v1044 = vand.u32 2147483647, %v1034
    %vm1045 = vcmp.eq.f32.partialorder %v1044, 8.507059e+37
    %v1046 = vand.u32 %v1034, 2147483648
    %v1047 = vor.u32 1.1754944e-38, %v1046
    %v1048 = vsel %vm1045, %v1047, %v1043
    %v1049 = vmul.f32 1.0, %v1048
    %v1050 = vadd.f32 %v1028, %v378
    %1052 = vrot.lane.b32.xlu0 %v1050, 64
    %v1053 = vpop.permute.xlu0 %1052
    %v1055 = vmul.f32 %v1049, %v1053
    %1057 = vrot.lane.b32.xlu0 %v1055, 64
    %v1058 = vpop.permute.xlu0 %1057
    %v1060 = vadd.f32 %v1004, %v1058
    %v1061 = vtanh.pop %v1060
    %v1062 = vsub.f32 %v998, %v1061
    %1064 = vrot.lane.b32.xlu0 %v1062, 96
    %v1065 = vpop.permute.xlu0 %1064
    %v1067 = vmul.f32 %v1049, %v1065
    %1069 = vrot.lane.b32.xlu0 %v1067, 32
    %v1070 = vpop.permute.xlu0 %1069
    %v1072 = vadd.f32 %v1061, %v1070
    %s1073 = sld [smem:[#allocation4 + $0x9]]
    %v1074 = vstv %s1073
    %v1075 = vmul.f32 %v1072, %v1074
    %v1076 = vadd.f32 %v1002, %v1075
    %s1077 = scalar_lea.vmem [#allocation2], 80
    %v1078 = vld [vmem:[%s1077] sm:$0xff]
    %1080 = vrot.lane.b32.xlu0 %v1072, 64
    %v1081 = vpop.permute.xlu0 %1080
    %v1082 = vsel %vm331, %v1081, 0
    %1084 = vmatpush.msra.mxu0 0.0
    %1085 = vmatpush.msra.mxu0 0.0
    %1086 = vmatpush.msra.mxu0 0.0
    %1087 = vmatpush.msra.mxu0 0.0
    %1088 = vmatpush.msra.mxu0 0.0
    %1089 = vmatpush.msra.mxu0 0.0
    %1090 = vmatpush.msra.mxu0 0.0
    %1091 = vmatpush.msra.mxu0 0.0
    %1092 = vmatpush.msra.mxu0 0.0
    %1093 = vmatpush.msra.mxu0 0.0
    %1094 = vmatpush.msra.mxu0 0.0
    %1095 = vmatpush.msra.mxu0 0.0
    %1096 = vmatpush.msra.mxu0 %v327
    %1097 = vmatpush.msra.mxu0 %v326
    %1098 = vmatpush.msra.mxu0 %v325
    %1099 = vmatpush.msra.mxu0 %v324
    %1100 = vmatmul.f32.gmra.mxu0 %v1082
    %v1101 = vpop.f32.mrf.mxu0
    %v1102 = vadd.f32 0.0, %v1101
    %1103 = vdwg.mxu0
    %v1104 = vadd.f32 %v1078, %v1102
    %v1105 = vxor.u32 %v1104, 2147483648
    %v1106 = vmul.f32 %v1105, 1.442695
    %v1107 = vpow.pop %v1106
    %v1108 = vadd.f32 %v1107, 1.0
    %v1109 = vrcp.pop %v1108
    %v1110 = vmul.f32 %v1108, %v1109
    %v1111 = vsub.f32 1.0, %v1110
    %v1112 = vmul.f32 %v1109, %v1111
    %v1113 = vadd.f32 %v1109, %v1112
    %vm1114 = vweird.f32 %v1108
    %vm1115 = vweird.f32 %v1109
    %vm1116 = vmor %vm1114, %vm1115
    %v1117 = vsel %vm1116, %v1109, %v1113
    %v1118 = vand.u32 2147483647, %v1108
    %vm1119 = vcmp.eq.f32.partialorder %v1118, 8.507059e+37
    %v1120 = vand.u32 %v1108, 2147483648
    %v1121 = vor.u32 1.1754944e-38, %v1120
    %v1122 = vsel %vm1119, %v1121, %v1117
    %v1123 = vmul.f32 1.0, %v1122
    %v1124 = vadd.f32 %v1102, %v378
    %1126 = vrot.lane.b32.xlu0 %v1124, 64
    %v1127 = vpop.permute.xlu0 %1126
    %v1129 = vmul.f32 %v1123, %v1127
    %1131 = vrot.lane.b32.xlu0 %v1129, 64
    %v1132 = vpop.permute.xlu0 %1131
    %v1134 = vadd.f32 %v1078, %v1132
    %v1135 = vtanh.pop %v1134
    %v1136 = vsub.f32 %v1072, %v1135
    %1138 = vrot.lane.b32.xlu0 %v1136, 96
    %v1139 = vpop.permute.xlu0 %1138
    %v1141 = vmul.f32 %v1123, %v1139
    %1143 = vrot.lane.b32.xlu0 %v1141, 32
    %v1144 = vpop.permute.xlu0 %1143
    %v1146 = vadd.f32 %v1135, %v1144
    %s1147 = sld [smem:[#allocation4 + $0xa]]
    %v1148 = vstv %s1147
    %v1149 = vmul.f32 %v1146, %v1148
    %v1150 = vadd.f32 %v1076, %v1149
    %s1151 = scalar_lea.vmem [#allocation2], 88
    %v1152 = vld [vmem:[%s1151] sm:$0xff]
    %1154 = vrot.lane.b32.xlu0 %v1146, 64
    %v1155 = vpop.permute.xlu0 %1154
    %v1156 = vsel %vm331, %v1155, 0
    %1158 = vmatpush.msra.mxu0 0.0
    %1159 = vmatpush.msra.mxu0 0.0
    %1160 = vmatpush.msra.mxu0 0.0
    %1161 = vmatpush.msra.mxu0 0.0
    %1162 = vmatpush.msra.mxu0 0.0
    %1163 = vmatpush.msra.mxu0 0.0
    %1164 = vmatpush.msra.mxu0 0.0
    %1165 = vmatpush.msra.mxu0 0.0
    %1166 = vmatpush.msra.mxu0 0.0
    %1167 = vmatpush.msra.mxu0 0.0
    %1168 = vmatpush.msra.mxu0 0.0
    %1169 = vmatpush.msra.mxu0 0.0
    %1170 = vmatpush.msra.mxu0 %v327
    %1171 = vmatpush.msra.mxu0 %v326
    %1172 = vmatpush.msra.mxu0 %v325
    %1173 = vmatpush.msra.mxu0 %v324
    %1174 = vmatmul.f32.gmra.mxu0 %v1156
    %v1175 = vpop.f32.mrf.mxu0
    %v1176 = vadd.f32 0.0, %v1175
    %1177 = vdwg.mxu0
    %v1178 = vadd.f32 %v1152, %v1176
    %v1179 = vxor.u32 %v1178, 2147483648
    %v1180 = vmul.f32 %v1179, 1.442695
    %v1181 = vpow.pop %v1180
    %v1182 = vadd.f32 %v1181, 1.0
    %v1183 = vrcp.pop %v1182
    %v1184 = vmul.f32 %v1182, %v1183
    %v1185 = vsub.f32 1.0, %v1184
    %v1186 = vmul.f32 %v1183, %v1185
    %v1187 = vadd.f32 %v1183, %v1186
    %vm1188 = vweird.f32 %v1182
    %vm1189 = vweird.f32 %v1183
    %vm1190 = vmor %vm1188, %vm1189
    %v1191 = vsel %vm1190, %v1183, %v1187
    %v1192 = vand.u32 2147483647, %v1182
    %vm1193 = vcmp.eq.f32.partialorder %v1192, 8.507059e+37
    %v1194 = vand.u32 %v1182, 2147483648
    %v1195 = vor.u32 1.1754944e-38, %v1194
    %v1196 = vsel %vm1193, %v1195, %v1191
    %v1197 = vmul.f32 1.0, %v1196
    %v1198 = vadd.f32 %v1176, %v378
    %1200 = vrot.lane.b32.xlu0 %v1198, 64
    %v1201 = vpop.permute.xlu0 %1200
    %v1203 = vmul.f32 %v1197, %v1201
    %1205 = vrot.lane.b32.xlu0 %v1203, 64
    %v1206 = vpop.permute.xlu0 %1205
    %v1208 = vadd.f32 %v1152, %v1206
    %v1209 = vtanh.pop %v1208
    %v1210 = vsub.f32 %v1146, %v1209
    %1212 = vrot.lane.b32.xlu0 %v1210, 96
    %v1213 = vpop.permute.xlu0 %1212
    %v1215 = vmul.f32 %v1197, %v1213
    %1217 = vrot.lane.b32.xlu0 %v1215, 32
    %v1218 = vpop.permute.xlu0 %1217
    %v1220 = vadd.f32 %v1209, %v1218
    %s1221 = sld [smem:[#allocation4 + $0xb]]
    %v1222 = vstv %s1221
    %v1223 = vmul.f32 %v1220, %v1222
    %v1224 = vadd.f32 %v1150, %v1223
    %s1225 = scalar_lea.vmem [#allocation2], 96
    %v1226 = vld [vmem:[%s1225] sm:$0xff]
    %1228 = vrot.lane.b32.xlu0 %v1220, 64
    %v1229 = vpop.permute.xlu0 %1228
    %v1230 = vsel %vm331, %v1229, 0
    %1232 = vmatpush.msra.mxu0 0.0
    %1233 = vmatpush.msra.mxu0 0.0
    %1234 = vmatpush.msra.mxu0 0.0
    %1235 = vmatpush.msra.mxu0 0.0
    %1236 = vmatpush.msra.mxu0 0.0
    %1237 = vmatpush.msra.mxu0 0.0
    %1238 = vmatpush.msra.mxu0 0.0
    %1239 = vmatpush.msra.mxu0 0.0
    %1240 = vmatpush.msra.mxu0 0.0
    %1241 = vmatpush.msra.mxu0 0.0
    %1242 = vmatpush.msra.mxu0 0.0
    %1243 = vmatpush.msra.mxu0 0.0
    %1244 = vmatpush.msra.mxu0 %v327
    %1245 = vmatpush.msra.mxu0 %v326
    %1246 = vmatpush.msra.mxu0 %v325
    %1247 = vmatpush.msra.mxu0 %v324
    %1248 = vmatmul.f32.gmra.mxu0 %v1230
    %v1249 = vpop.f32.mrf.mxu0
    %v1250 = vadd.f32 0.0, %v1249
    %1251 = vdwg.mxu0
    %v1252 = vadd.f32 %v1226, %v1250
    %v1253 = vxor.u32 %v1252, 2147483648
    %v1254 = vmul.f32 %v1253, 1.442695
    %v1255 = vpow.pop %v1254
    %v1256 = vadd.f32 %v1255, 1.0
    %v1257 = vrcp.pop %v1256
    %v1258 = vmul.f32 %v1256, %v1257
    %v1259 = vsub.f32 1.0, %v1258
    %v1260 = vmul.f32 %v1257, %v1259
    %v1261 = vadd.f32 %v1257, %v1260
    %vm1262 = vweird.f32 %v1256
    %vm1263 = vweird.f32 %v1257
    %vm1264 = vmor %vm1262, %vm1263
    %v1265 = vsel %vm1264, %v1257, %v1261
    %v1266 = vand.u32 2147483647, %v1256
    %vm1267 = vcmp.eq.f32.partialorder %v1266, 8.507059e+37
    %v1268 = vand.u32 %v1256, 2147483648
    %v1269 = vor.u32 1.1754944e-38, %v1268
    %v1270 = vsel %vm1267, %v1269, %v1265
    %v1271 = vmul.f32 1.0, %v1270
    %v1272 = vadd.f32 %v1250, %v378
    %1274 = vrot.lane.b32.xlu0 %v1272, 64
    %v1275 = vpop.permute.xlu0 %1274
    %v1277 = vmul.f32 %v1271, %v1275
    %1279 = vrot.lane.b32.xlu0 %v1277, 64
    %v1280 = vpop.permute.xlu0 %1279
    %v1282 = vadd.f32 %v1226, %v1280
    %v1283 = vtanh.pop %v1282
    %v1284 = vsub.f32 %v1220, %v1283
    %1286 = vrot.lane.b32.xlu0 %v1284, 96
    %v1287 = vpop.permute.xlu0 %1286
    %v1289 = vmul.f32 %v1271, %v1287
    %1291 = vrot.lane.b32.xlu0 %v1289, 32
    %v1292 = vpop.permute.xlu0 %1291
    %v1294 = vadd.f32 %v1283, %v1292
    %s1295 = sld [smem:[#allocation4 + $0xc]]
    %v1296 = vstv %s1295
    %v1297 = vmul.f32 %v1294, %v1296
    %v1298 = vadd.f32 %v1224, %v1297
    %s1299 = scalar_lea.vmem [#allocation2], 104
    %v1300 = vld [vmem:[%s1299] sm:$0xff]
    %1302 = vrot.lane.b32.xlu0 %v1294, 64
    %v1303 = vpop.permute.xlu0 %1302
    %v1304 = vsel %vm331, %v1303, 0
    %1306 = vmatpush.msra.mxu0 0.0
    %1307 = vmatpush.msra.mxu0 0.0
    %1308 = vmatpush.msra.mxu0 0.0
    %1309 = vmatpush.msra.mxu0 0.0
    %1310 = vmatpush.msra.mxu0 0.0
    %1311 = vmatpush.msra.mxu0 0.0
    %1312 = vmatpush.msra.mxu0 0.0
    %1313 = vmatpush.msra.mxu0 0.0
    %1314 = vmatpush.msra.mxu0 0.0
    %1315 = vmatpush.msra.mxu0 0.0
    %1316 = vmatpush.msra.mxu0 0.0
    %1317 = vmatpush.msra.mxu0 0.0
    %1318 = vmatpush.msra.mxu0 %v327
    %1319 = vmatpush.msra.mxu0 %v326
    %1320 = vmatpush.msra.mxu0 %v325
    %1321 = vmatpush.msra.mxu0 %v324
    %1322 = vmatmul.f32.gmra.mxu0 %v1304
    %v1323 = vpop.f32.mrf.mxu0
    %v1324 = vadd.f32 0.0, %v1323
    %1325 = vdwg.mxu0
    %v1326 = vadd.f32 %v1300, %v1324
    %v1327 = vxor.u32 %v1326, 2147483648
    %v1328 = vmul.f32 %v1327, 1.442695
    %v1329 = vpow.pop %v1328
    %v1330 = vadd.f32 %v1329, 1.0
    %v1331 = vrcp.pop %v1330
    %v1332 = vmul.f32 %v1330, %v1331
    %v1333 = vsub.f32 1.0, %v1332
    %v1334 = vmul.f32 %v1331, %v1333
    %v1335 = vadd.f32 %v1331, %v1334
    %vm1336 = vweird.f32 %v1330
    %vm1337 = vweird.f32 %v1331
    %vm1338 = vmor %vm1336, %vm1337
    %v1339 = vsel %vm1338, %v1331, %v1335
    %v1340 = vand.u32 2147483647, %v1330
    %vm1341 = vcmp.eq.f32.partialorder %v1340, 8.507059e+37
    %v1342 = vand.u32 %v1330, 2147483648
    %v1343 = vor.u32 1.1754944e-38, %v1342
    %v1344 = vsel %vm1341, %v1343, %v1339
    %v1345 = vmul.f32 1.0, %v1344
    %v1346 = vadd.f32 %v1324, %v378
    %1348 = vrot.lane.b32.xlu0 %v1346, 64
    %v1349 = vpop.permute.xlu0 %1348
    %v1351 = vmul.f32 %v1345, %v1349
    %1353 = vrot.lane.b32.xlu0 %v1351, 64
    %v1354 = vpop.permute.xlu0 %1353
    %v1356 = vadd.f32 %v1300, %v1354
    %v1357 = vtanh.pop %v1356
    %v1358 = vsub.f32 %v1294, %v1357
    %1360 = vrot.lane.b32.xlu0 %v1358, 96
    %v1361 = vpop.permute.xlu0 %1360
    %v1363 = vmul.f32 %v1345, %v1361
    %1365 = vrot.lane.b32.xlu0 %v1363, 32
    %v1366 = vpop.permute.xlu0 %1365
    %v1368 = vadd.f32 %v1357, %v1366
    %s1369 = sld [smem:[#allocation4 + $0xd]]
    %v1370 = vstv %s1369
    %v1371 = vmul.f32 %v1368, %v1370
    %v1372 = vadd.f32 %v1298, %v1371
    %s1373 = scalar_lea.vmem [#allocation2], 112
    %v1374 = vld [vmem:[%s1373] sm:$0xff]
    %1376 = vrot.lane.b32.xlu0 %v1368, 64
    %v1377 = vpop.permute.xlu0 %1376
    %v1378 = vsel %vm331, %v1377, 0
    %1380 = vmatpush.msra.mxu0 0.0
    %1381 = vmatpush.msra.mxu0 0.0
    %1382 = vmatpush.msra.mxu0 0.0
    %1383 = vmatpush.msra.mxu0 0.0
    %1384 = vmatpush.msra.mxu0 0.0
    %1385 = vmatpush.msra.mxu0 0.0
    %1386 = vmatpush.msra.mxu0 0.0
    %1387 = vmatpush.msra.mxu0 0.0
    %1388 = vmatpush.msra.mxu0 0.0
    %1389 = vmatpush.msra.mxu0 0.0
    %1390 = vmatpush.msra.mxu0 0.0
    %1391 = vmatpush.msra.mxu0 0.0
    %1392 = vmatpush.msra.mxu0 %v327
    %1393 = vmatpush.msra.mxu0 %v326
    %1394 = vmatpush.msra.mxu0 %v325
    %1395 = vmatpush.msra.mxu0 %v324
    %1396 = vmatmul.f32.gmra.mxu0 %v1378
    %v1397 = vpop.f32.mrf.mxu0
    %v1398 = vadd.f32 0.0, %v1397
    %1399 = vdwg.mxu0
    %v1400 = vadd.f32 %v1374, %v1398
    %v1401 = vxor.u32 %v1400, 2147483648
    %v1402 = vmul.f32 %v1401, 1.442695
    %v1403 = vpow.pop %v1402
    %v1404 = vadd.f32 %v1403, 1.0
    %v1405 = vrcp.pop %v1404
    %v1406 = vmul.f32 %v1404, %v1405
    %v1407 = vsub.f32 1.0, %v1406
    %v1408 = vmul.f32 %v1405, %v1407
    %v1409 = vadd.f32 %v1405, %v1408
    %vm1410 = vweird.f32 %v1404
    %vm1411 = vweird.f32 %v1405
    %vm1412 = vmor %vm1410, %vm1411
    %v1413 = vsel %vm1412, %v1405, %v1409
    %v1414 = vand.u32 2147483647, %v1404
    %vm1415 = vcmp.eq.f32.partialorder %v1414, 8.507059e+37
    %v1416 = vand.u32 %v1404, 2147483648
    %v1417 = vor.u32 1.1754944e-38, %v1416
    %v1418 = vsel %vm1415, %v1417, %v1413
    %v1419 = vmul.f32 1.0, %v1418
    %v1420 = vadd.f32 %v1398, %v378
    %1422 = vrot.lane.b32.xlu0 %v1420, 64
    %v1423 = vpop.permute.xlu0 %1422
    %v1425 = vmul.f32 %v1419, %v1423
    %1427 = vrot.lane.b32.xlu0 %v1425, 64
    %v1428 = vpop.permute.xlu0 %1427
    %v1430 = vadd.f32 %v1374, %v1428
    %v1431 = vtanh.pop %v1430
    %v1432 = vsub.f32 %v1368, %v1431
    %1434 = vrot.lane.b32.xlu0 %v1432, 96
    %v1435 = vpop.permute.xlu0 %1434
    %v1437 = vmul.f32 %v1419, %v1435
    %1439 = vrot.lane.b32.xlu0 %v1437, 32
    %v1440 = vpop.permute.xlu0 %1439
    %v1442 = vadd.f32 %v1431, %v1440
    %s1443 = sld [smem:[#allocation4 + $0xe]]
    %v1444 = vstv %s1443
    %v1445 = vmul.f32 %v1442, %v1444
    %v1446 = vadd.f32 %v1372, %v1445
    %s1447 = scalar_lea.vmem [#allocation2], 120
    %v1448 = vld [vmem:[%s1447] sm:$0xff]
    %1450 = vrot.lane.b32.xlu0 %v1442, 64
    %v1451 = vpop.permute.xlu0 %1450
    %v1452 = vsel %vm331, %v1451, 0
    %1454 = vmatpush.msra.mxu0 0.0
    %1455 = vmatpush.msra.mxu0 0.0
    %1456 = vmatpush.msra.mxu0 0.0
    %1457 = vmatpush.msra.mxu0 0.0
    %1458 = vmatpush.msra.mxu0 0.0
    %1459 = vmatpush.msra.mxu0 0.0
    %1460 = vmatpush.msra.mxu0 0.0
    %1461 = vmatpush.msra.mxu0 0.0
    %1462 = vmatpush.msra.mxu0 0.0
    %1463 = vmatpush.msra.mxu0 0.0
    %1464 = vmatpush.msra.mxu0 0.0
    %1465 = vmatpush.msra.mxu0 0.0
    %1466 = vmatpush.msra.mxu0 %v327
    %1467 = vmatpush.msra.mxu0 %v326
    %1468 = vmatpush.msra.mxu0 %v325
    %1469 = vmatpush.msra.mxu0 %v324
    %1470 = vmatmul.f32.gmra.mxu0 %v1452
    %v1471 = vpop.f32.mrf.mxu0
    %v1472 = vadd.f32 0.0, %v1471
    %1473 = vdwg.mxu0
    %v1474 = vadd.f32 %v1448, %v1472
    %v1475 = vxor.u32 %v1474, 2147483648
    %v1476 = vmul.f32 %v1475, 1.442695
    %v1477 = vpow.pop %v1476
    %v1478 = vadd.f32 %v1477, 1.0
    %v1479 = vrcp.pop %v1478
    %v1480 = vmul.f32 %v1478, %v1479
    %v1481 = vsub.f32 1.0, %v1480
    %v1482 = vmul.f32 %v1479, %v1481
    %v1483 = vadd.f32 %v1479, %v1482
    %vm1484 = vweird.f32 %v1478
    %vm1485 = vweird.f32 %v1479
    %vm1486 = vmor %vm1484, %vm1485
    %v1487 = vsel %vm1486, %v1479, %v1483
    %v1488 = vand.u32 2147483647, %v1478
    %vm1489 = vcmp.eq.f32.partialorder %v1488, 8.507059e+37
    %v1490 = vand.u32 %v1478, 2147483648
    %v1491 = vor.u32 1.1754944e-38, %v1490
    %v1492 = vsel %vm1489, %v1491, %v1487
    %v1493 = vmul.f32 1.0, %v1492
    %v1494 = vadd.f32 %v1472, %v378
    %1496 = vrot.lane.b32.xlu0 %v1494, 64
    %v1497 = vpop.permute.xlu0 %1496
    %v1499 = vmul.f32 %v1493, %v1497
    %1501 = vrot.lane.b32.xlu0 %v1499, 64
    %v1502 = vpop.permute.xlu0 %1501
    %v1504 = vadd.f32 %v1448, %v1502
    %v1505 = vtanh.pop %v1504
    %v1506 = vsub.f32 %v1442, %v1505
    %1508 = vrot.lane.b32.xlu0 %v1506, 96
    %v1509 = vpop.permute.xlu0 %1508
    %v1511 = vmul.f32 %v1493, %v1509
    %1513 = vrot.lane.b32.xlu0 %v1511, 32
    %v1514 = vpop.permute.xlu0 %1513
    %v1516 = vadd.f32 %v1505, %v1514
    %s1517 = sld [smem:[#allocation4 + $0xf]]
    %v1518 = vstv %s1517
    %v1519 = vmul.f32 %v1516, %v1518
    %v1520 = vadd.f32 %v1446, %v1519
    %s1521 = scalar_lea.vmem [#allocation2], 128
    %v1522 = vld [vmem:[%s1521] sm:$0xff]
    %1524 = vrot.lane.b32.xlu0 %v1516, 64
    %v1525 = vpop.permute.xlu0 %1524
    %v1526 = vsel %vm331, %v1525, 0
    %1528 = vmatpush.msra.mxu0 0.0
    %1529 = vmatpush.msra.mxu0 0.0
    %1530 = vmatpush.msra.mxu0 0.0
    %1531 = vmatpush.msra.mxu0 0.0
    %1532 = vmatpush.msra.mxu0 0.0
    %1533 = vmatpush.msra.mxu0 0.0
    %1534 = vmatpush.msra.mxu0 0.0
    %1535 = vmatpush.msra.mxu0 0.0
    %1536 = vmatpush.msra.mxu0 0.0
    %1537 = vmatpush.msra.mxu0 0.0
    %1538 = vmatpush.msra.mxu0 0.0
    %1539 = vmatpush.msra.mxu0 0.0
    %1540 = vmatpush.msra.mxu0 %v327
    %1541 = vmatpush.msra.mxu0 %v326
    %1542 = vmatpush.msra.mxu0 %v325
    %1543 = vmatpush.msra.mxu0 %v324
    %1544 = vmatmul.f32.gmra.mxu0 %v1526
    %v1545 = vpop.f32.mrf.mxu0
    %v1546 = vadd.f32 0.0, %v1545
    %1547 = vdwg.mxu0
    %v1548 = vadd.f32 %v1522, %v1546
    %v1549 = vxor.u32 %v1548, 2147483648
    %v1550 = vmul.f32 %v1549, 1.442695
    %v1551 = vpow.pop %v1550
    %v1552 = vadd.f32 %v1551, 1.0
    %v1553 = vrcp.pop %v1552
    %v1554 = vmul.f32 %v1552, %v1553
    %v1555 = vsub.f32 1.0, %v1554
    %v1556 = vmul.f32 %v1553, %v1555
    %v1557 = vadd.f32 %v1553, %v1556
    %vm1558 = vweird.f32 %v1552
    %vm1559 = vweird.f32 %v1553
    %vm1560 = vmor %vm1558, %vm1559
    %v1561 = vsel %vm1560, %v1553, %v1557
    %v1562 = vand.u32 2147483647, %v1552
    %vm1563 = vcmp.eq.f32.partialorder %v1562, 8.507059e+37
    %v1564 = vand.u32 %v1552, 2147483648
    %v1565 = vor.u32 1.1754944e-38, %v1564
    %v1566 = vsel %vm1563, %v1565, %v1561
    %v1567 = vmul.f32 1.0, %v1566
    %v1568 = vadd.f32 %v1546, %v378
    %1570 = vrot.lane.b32.xlu0 %v1568, 64
    %v1571 = vpop.permute.xlu0 %1570
    %v1573 = vmul.f32 %v1567, %v1571
    %1575 = vrot.lane.b32.xlu0 %v1573, 64
    %v1576 = vpop.permute.xlu0 %1575
    %v1578 = vadd.f32 %v1522, %v1576
    %v1579 = vtanh.pop %v1578
    %v1580 = vsub.f32 %v1516, %v1579
    %1582 = vrot.lane.b32.xlu0 %v1580, 96
    %v1583 = vpop.permute.xlu0 %1582
    %v1585 = vmul.f32 %v1567, %v1583
    %1587 = vrot.lane.b32.xlu0 %v1585, 32
    %v1588 = vpop.permute.xlu0 %1587
    %v1590 = vadd.f32 %v1579, %v1588
    %s1591 = sld [smem:[#allocation4 + $0x10]]
    %v1592 = vstv %s1591
    %v1593 = vmul.f32 %v1590, %v1592
    %v1594 = vadd.f32 %v1520, %v1593
    %s1595 = scalar_lea.vmem [#allocation2], 136
    %v1596 = vld [vmem:[%s1595] sm:$0xff]
    %1598 = vrot.lane.b32.xlu0 %v1590, 64
    %v1599 = vpop.permute.xlu0 %1598
    %v1600 = vsel %vm331, %v1599, 0
    %1602 = vmatpush.msra.mxu0 0.0
    %1603 = vmatpush.msra.mxu0 0.0
    %1604 = vmatpush.msra.mxu0 0.0
    %1605 = vmatpush.msra.mxu0 0.0
    %1606 = vmatpush.msra.mxu0 0.0
    %1607 = vmatpush.msra.mxu0 0.0
    %1608 = vmatpush.msra.mxu0 0.0
    %1609 = vmatpush.msra.mxu0 0.0
    %1610 = vmatpush.msra.mxu0 0.0
    %1611 = vmatpush.msra.mxu0 0.0
    %1612 = vmatpush.msra.mxu0 0.0
    %1613 = vmatpush.msra.mxu0 0.0
    %1614 = vmatpush.msra.mxu0 %v327
    %1615 = vmatpush.msra.mxu0 %v326
    %1616 = vmatpush.msra.mxu0 %v325
    %1617 = vmatpush.msra.mxu0 %v324
    %1618 = vmatmul.f32.gmra.mxu0 %v1600
    %v1619 = vpop.f32.mrf.mxu0
    %v1620 = vadd.f32 0.0, %v1619
    %1621 = vdwg.mxu0
    %v1622 = vadd.f32 %v1596, %v1620
    %v1623 = vxor.u32 %v1622, 2147483648
    %v1624 = vmul.f32 %v1623, 1.442695
    %v1625 = vpow.pop %v1624
    %v1626 = vadd.f32 %v1625, 1.0
    %v1627 = vrcp.pop %v1626
    %v1628 = vmul.f32 %v1626, %v1627
    %v1629 = vsub.f32 1.0, %v1628
    %v1630 = vmul.f32 %v1627, %v1629
    %v1631 = vadd.f32 %v1627, %v1630
    %vm1632 = vweird.f32 %v1626
    %vm1633 = vweird.f32 %v1627
    %vm1634 = vmor %vm1632, %vm1633
    %v1635 = vsel %vm1634, %v1627, %v1631
    %v1636 = vand.u32 2147483647, %v1626
    %vm1637 = vcmp.eq.f32.partialorder %v1636, 8.507059e+37
    %v1638 = vand.u32 %v1626, 2147483648
    %v1639 = vor.u32 1.1754944e-38, %v1638
    %v1640 = vsel %vm1637, %v1639, %v1635
    %v1641 = vmul.f32 1.0, %v1640
    %v1642 = vadd.f32 %v1620, %v378
    %1644 = vrot.lane.b32.xlu0 %v1642, 64
    %v1645 = vpop.permute.xlu0 %1644
    %v1647 = vmul.f32 %v1641, %v1645
    %1649 = vrot.lane.b32.xlu0 %v1647, 64
    %v1650 = vpop.permute.xlu0 %1649
    %v1652 = vadd.f32 %v1596, %v1650
    %v1653 = vtanh.pop %v1652
    %v1654 = vsub.f32 %v1590, %v1653
    %1656 = vrot.lane.b32.xlu0 %v1654, 96
    %v1657 = vpop.permute.xlu0 %1656
    %v1659 = vmul.f32 %v1641, %v1657
    %1661 = vrot.lane.b32.xlu0 %v1659, 32
    %v1662 = vpop.permute.xlu0 %1661
    %v1664 = vadd.f32 %v1653, %v1662
    %s1665 = sld [smem:[#allocation4 + $0x11]]
    %v1666 = vstv %s1665
    %v1667 = vmul.f32 %v1664, %v1666
    %v1668 = vadd.f32 %v1594, %v1667
    %s1669 = scalar_lea.vmem [#allocation2], 144
    %v1670 = vld [vmem:[%s1669] sm:$0xff]
    %1672 = vrot.lane.b32.xlu0 %v1664, 64
    %v1673 = vpop.permute.xlu0 %1672
    %v1674 = vsel %vm331, %v1673, 0
    %1676 = vmatpush.msra.mxu0 0.0
    %1677 = vmatpush.msra.mxu0 0.0
    %1678 = vmatpush.msra.mxu0 0.0
    %1679 = vmatpush.msra.mxu0 0.0
    %1680 = vmatpush.msra.mxu0 0.0
    %1681 = vmatpush.msra.mxu0 0.0
    %1682 = vmatpush.msra.mxu0 0.0
    %1683 = vmatpush.msra.mxu0 0.0
    %1684 = vmatpush.msra.mxu0 0.0
    %1685 = vmatpush.msra.mxu0 0.0
    %1686 = vmatpush.msra.mxu0 0.0
    %1687 = vmatpush.msra.mxu0 0.0
    %1688 = vmatpush.msra.mxu0 %v327
    %1689 = vmatpush.msra.mxu0 %v326
    %1690 = vmatpush.msra.mxu0 %v325
    %1691 = vmatpush.msra.mxu0 %v324
    %1692 = vmatmul.f32.gmra.mxu0 %v1674
    %v1693 = vpop.f32.mrf.mxu0
    %v1694 = vadd.f32 0.0, %v1693
    %1695 = vdwg.mxu0
    %v1696 = vadd.f32 %v1670, %v1694
    %v1697 = vxor.u32 %v1696, 2147483648
    %v1698 = vmul.f32 %v1697, 1.442695
    %v1699 = vpow.pop %v1698
    %v1700 = vadd.f32 %v1699, 1.0
    %v1701 = vrcp.pop %v1700
    %v1702 = vmul.f32 %v1700, %v1701
    %v1703 = vsub.f32 1.0, %v1702
    %v1704 = vmul.f32 %v1701, %v1703
    %v1705 = vadd.f32 %v1701, %v1704
    %vm1706 = vweird.f32 %v1700
    %vm1707 = vweird.f32 %v1701
    %vm1708 = vmor %vm1706, %vm1707
    %v1709 = vsel %vm1708, %v1701, %v1705
    %v1710 = vand.u32 2147483647, %v1700
    %vm1711 = vcmp.eq.f32.partialorder %v1710, 8.507059e+37
    %v1712 = vand.u32 %v1700, 2147483648
    %v1713 = vor.u32 1.1754944e-38, %v1712
    %v1714 = vsel %vm1711, %v1713, %v1709
    %v1715 = vmul.f32 1.0, %v1714
    %v1716 = vadd.f32 %v1694, %v378
    %1718 = vrot.lane.b32.xlu0 %v1716, 64
    %v1719 = vpop.permute.xlu0 %1718
    %v1721 = vmul.f32 %v1715, %v1719
    %1723 = vrot.lane.b32.xlu0 %v1721, 64
    %v1724 = vpop.permute.xlu0 %1723
    %v1726 = vadd.f32 %v1670, %v1724
    %v1727 = vtanh.pop %v1726
    %v1728 = vsub.f32 %v1664, %v1727
    %1730 = vrot.lane.b32.xlu0 %v1728, 96
    %v1731 = vpop.permute.xlu0 %1730
    %v1733 = vmul.f32 %v1715, %v1731
    %1735 = vrot.lane.b32.xlu0 %v1733, 32
    %v1736 = vpop.permute.xlu0 %1735
    %v1738 = vadd.f32 %v1727, %v1736
    %s1739 = sld [smem:[#allocation4 + $0x12]]
    %v1740 = vstv %s1739
    %v1741 = vmul.f32 %v1738, %v1740
    %v1742 = vadd.f32 %v1668, %v1741
    %s1743 = scalar_lea.vmem [#allocation2], 152
    %v1744 = vld [vmem:[%s1743] sm:$0xff]
    %1746 = vrot.lane.b32.xlu0 %v1738, 64
    %v1747 = vpop.permute.xlu0 %1746
    %v1748 = vsel %vm331, %v1747, 0
    %1750 = vmatpush.msra.mxu0 0.0
    %1751 = vmatpush.msra.mxu0 0.0
    %1752 = vmatpush.msra.mxu0 0.0
    %1753 = vmatpush.msra.mxu0 0.0
    %1754 = vmatpush.msra.mxu0 0.0
    %1755 = vmatpush.msra.mxu0 0.0
    %1756 = vmatpush.msra.mxu0 0.0
    %1757 = vmatpush.msra.mxu0 0.0
    %1758 = vmatpush.msra.mxu0 0.0
    %1759 = vmatpush.msra.mxu0 0.0
    %1760 = vmatpush.msra.mxu0 0.0
    %1761 = vmatpush.msra.mxu0 0.0
    %1762 = vmatpush.msra.mxu0 %v327
    %1763 = vmatpush.msra.mxu0 %v326
    %1764 = vmatpush.msra.mxu0 %v325
    %1765 = vmatpush.msra.mxu0 %v324
    %1766 = vmatmul.f32.gmra.mxu0 %v1748
    %v1767 = vpop.f32.mrf.mxu0
    %v1768 = vadd.f32 0.0, %v1767
    %1769 = vdwg.mxu0
    %v1770 = vadd.f32 %v1744, %v1768
    %v1771 = vxor.u32 %v1770, 2147483648
    %v1772 = vmul.f32 %v1771, 1.442695
    %v1773 = vpow.pop %v1772
    %v1774 = vadd.f32 %v1773, 1.0
    %v1775 = vrcp.pop %v1774
    %v1776 = vmul.f32 %v1774, %v1775
    %v1777 = vsub.f32 1.0, %v1776
    %v1778 = vmul.f32 %v1775, %v1777
    %v1779 = vadd.f32 %v1775, %v1778
    %vm1780 = vweird.f32 %v1774
    %vm1781 = vweird.f32 %v1775
    %vm1782 = vmor %vm1780, %vm1781
    %v1783 = vsel %vm1782, %v1775, %v1779
    %v1784 = vand.u32 2147483647, %v1774
    %vm1785 = vcmp.eq.f32.partialorder %v1784, 8.507059e+37
    %v1786 = vand.u32 %v1774, 2147483648
    %v1787 = vor.u32 1.1754944e-38, %v1786
    %v1788 = vsel %vm1785, %v1787, %v1783
    %v1789 = vmul.f32 1.0, %v1788
    %v1790 = vadd.f32 %v1768, %v378
    %1792 = vrot.lane.b32.xlu0 %v1790, 64
    %v1793 = vpop.permute.xlu0 %1792
    %v1795 = vmul.f32 %v1789, %v1793
    %1797 = vrot.lane.b32.xlu0 %v1795, 64
    %v1798 = vpop.permute.xlu0 %1797
    %v1800 = vadd.f32 %v1744, %v1798
    %v1801 = vtanh.pop %v1800
    %v1802 = vsub.f32 %v1738, %v1801
    %1804 = vrot.lane.b32.xlu0 %v1802, 96
    %v1805 = vpop.permute.xlu0 %1804
    %v1807 = vmul.f32 %v1789, %v1805
    %1809 = vrot.lane.b32.xlu0 %v1807, 32
    %v1810 = vpop.permute.xlu0 %1809
    %v1812 = vadd.f32 %v1801, %v1810
    %s1813 = sld [smem:[#allocation4 + $0x13]]
    %v1814 = vstv %s1813
    %v1815 = vmul.f32 %v1812, %v1814
    %v1816 = vadd.f32 %v1742, %v1815
    %s1817 = scalar_lea.vmem [#allocation2], 160
    %v1818 = vld [vmem:[%s1817] sm:$0xff]
    %1820 = vrot.lane.b32.xlu0 %v1812, 64
    %v1821 = vpop.permute.xlu0 %1820
    %v1822 = vsel %vm331, %v1821, 0
    %1824 = vmatpush.msra.mxu0 0.0
    %1825 = vmatpush.msra.mxu0 0.0
    %1826 = vmatpush.msra.mxu0 0.0
    %1827 = vmatpush.msra.mxu0 0.0
    %1828 = vmatpush.msra.mxu0 0.0
    %1829 = vmatpush.msra.mxu0 0.0
    %1830 = vmatpush.msra.mxu0 0.0
    %1831 = vmatpush.msra.mxu0 0.0
    %1832 = vmatpush.msra.mxu0 0.0
    %1833 = vmatpush.msra.mxu0 0.0
    %1834 = vmatpush.msra.mxu0 0.0
    %1835 = vmatpush.msra.mxu0 0.0
    %1836 = vmatpush.msra.mxu0 %v327
    %1837 = vmatpush.msra.mxu0 %v326
    %1838 = vmatpush.msra.mxu0 %v325
    %1839 = vmatpush.msra.mxu0 %v324
    %1840 = vmatmul.f32.gmra.mxu0 %v1822
    %v1841 = vpop.f32.mrf.mxu0
    %v1842 = vadd.f32 0.0, %v1841
    %1843 = vdwg.mxu0
    %v1844 = vadd.f32 %v1818, %v1842
    %v1845 = vxor.u32 %v1844, 2147483648
    %v1846 = vmul.f32 %v1845, 1.442695
    %v1847 = vpow.pop %v1846
    %v1848 = vadd.f32 %v1847, 1.0
    %v1849 = vrcp.pop %v1848
    %v1850 = vmul.f32 %v1848, %v1849
    %v1851 = vsub.f32 1.0, %v1850
    %v1852 = vmul.f32 %v1849, %v1851
    %v1853 = vadd.f32 %v1849, %v1852
    %vm1854 = vweird.f32 %v1848
    %vm1855 = vweird.f32 %v1849
    %vm1856 = vmor %vm1854, %vm1855
    %v1857 = vsel %vm1856, %v1849, %v1853
    %v1858 = vand.u32 2147483647, %v1848
    %vm1859 = vcmp.eq.f32.partialorder %v1858, 8.507059e+37
    %v1860 = vand.u32 %v1848, 2147483648
    %v1861 = vor.u32 1.1754944e-38, %v1860
    %v1862 = vsel %vm1859, %v1861, %v1857
    %v1863 = vmul.f32 1.0, %v1862
    %v1864 = vadd.f32 %v1842, %v378
    %1866 = vrot.lane.b32.xlu0 %v1864, 64
    %v1867 = vpop.permute.xlu0 %1866
    %v1869 = vmul.f32 %v1863, %v1867
    %1871 = vrot.lane.b32.xlu0 %v1869, 64
    %v1872 = vpop.permute.xlu0 %1871
    %v1874 = vadd.f32 %v1818, %v1872
    %v1875 = vtanh.pop %v1874
    %v1876 = vsub.f32 %v1812, %v1875
    %1878 = vrot.lane.b32.xlu0 %v1876, 96
    %v1879 = vpop.permute.xlu0 %1878
    %v1881 = vmul.f32 %v1863, %v1879
    %1883 = vrot.lane.b32.xlu0 %v1881, 32
    %v1884 = vpop.permute.xlu0 %1883
    %v1886 = vadd.f32 %v1875, %v1884
    %s1887 = sld [smem:[#allocation4 + $0x14]]
    %v1888 = vstv %s1887
    %v1889 = vmul.f32 %v1886, %v1888
    %v1890 = vadd.f32 %v1816, %v1889
    %s1891 = scalar_lea.vmem [#allocation2], 168
    %v1892 = vld [vmem:[%s1891] sm:$0xff]
    %1894 = vrot.lane.b32.xlu0 %v1886, 64
    %v1895 = vpop.permute.xlu0 %1894
    %v1896 = vsel %vm331, %v1895, 0
    %1898 = vmatpush.msra.mxu0 0.0
    %1899 = vmatpush.msra.mxu0 0.0
    %1900 = vmatpush.msra.mxu0 0.0
    %1901 = vmatpush.msra.mxu0 0.0
    %1902 = vmatpush.msra.mxu0 0.0
    %1903 = vmatpush.msra.mxu0 0.0
    %1904 = vmatpush.msra.mxu0 0.0
    %1905 = vmatpush.msra.mxu0 0.0
    %1906 = vmatpush.msra.mxu0 0.0
    %1907 = vmatpush.msra.mxu0 0.0
    %1908 = vmatpush.msra.mxu0 0.0
    %1909 = vmatpush.msra.mxu0 0.0
    %1910 = vmatpush.msra.mxu0 %v327
    %1911 = vmatpush.msra.mxu0 %v326
    %1912 = vmatpush.msra.mxu0 %v325
    %1913 = vmatpush.msra.mxu0 %v324
    %1914 = vmatmul.f32.gmra.mxu0 %v1896
    %v1915 = vpop.f32.mrf.mxu0
    %v1916 = vadd.f32 0.0, %v1915
    %1917 = vdwg.mxu0
    %v1918 = vadd.f32 %v1892, %v1916
    %v1919 = vxor.u32 %v1918, 2147483648
    %v1920 = vmul.f32 %v1919, 1.442695
    %v1921 = vpow.pop %v1920
    %v1922 = vadd.f32 %v1921, 1.0
    %v1923 = vrcp.pop %v1922
    %v1924 = vmul.f32 %v1922, %v1923
    %v1925 = vsub.f32 1.0, %v1924
    %v1926 = vmul.f32 %v1923, %v1925
    %v1927 = vadd.f32 %v1923, %v1926
    %vm1928 = vweird.f32 %v1922
    %vm1929 = vweird.f32 %v1923
    %vm1930 = vmor %vm1928, %vm1929
    %v1931 = vsel %vm1930, %v1923, %v1927
    %v1932 = vand.u32 2147483647, %v1922
    %vm1933 = vcmp.eq.f32.partialorder %v1932, 8.507059e+37
    %v1934 = vand.u32 %v1922, 2147483648
    %v1935 = vor.u32 1.1754944e-38, %v1934
    %v1936 = vsel %vm1933, %v1935, %v1931
    %v1937 = vmul.f32 1.0, %v1936
    %v1938 = vadd.f32 %v1916, %v378
    %1940 = vrot.lane.b32.xlu0 %v1938, 64
    %v1941 = vpop.permute.xlu0 %1940
    %v1943 = vmul.f32 %v1937, %v1941
    %1945 = vrot.lane.b32.xlu0 %v1943, 64
    %v1946 = vpop.permute.xlu0 %1945
    %v1948 = vadd.f32 %v1892, %v1946
    %v1949 = vtanh.pop %v1948
    %v1950 = vsub.f32 %v1886, %v1949
    %1952 = vrot.lane.b32.xlu0 %v1950, 96
    %v1953 = vpop.permute.xlu0 %1952
    %v1955 = vmul.f32 %v1937, %v1953
    %1957 = vrot.lane.b32.xlu0 %v1955, 32
    %v1958 = vpop.permute.xlu0 %1957
    %v1960 = vadd.f32 %v1949, %v1958
    %s1961 = sld [smem:[#allocation4 + $0x15]]
    %v1962 = vstv %s1961
    %v1963 = vmul.f32 %v1960, %v1962
    %v1964 = vadd.f32 %v1890, %v1963
    %s1965 = scalar_lea.vmem [#allocation2], 176
    %v1966 = vld [vmem:[%s1965] sm:$0xff]
    %1968 = vrot.lane.b32.xlu0 %v1960, 64
    %v1969 = vpop.permute.xlu0 %1968
    %v1970 = vsel %vm331, %v1969, 0
    %1972 = vmatpush.msra.mxu0 0.0
    %1973 = vmatpush.msra.mxu0 0.0
    %1974 = vmatpush.msra.mxu0 0.0
    %1975 = vmatpush.msra.mxu0 0.0
    %1976 = vmatpush.msra.mxu0 0.0
    %1977 = vmatpush.msra.mxu0 0.0
    %1978 = vmatpush.msra.mxu0 0.0
    %1979 = vmatpush.msra.mxu0 0.0
    %1980 = vmatpush.msra.mxu0 0.0
    %1981 = vmatpush.msra.mxu0 0.0
    %1982 = vmatpush.msra.mxu0 0.0
    %1983 = vmatpush.msra.mxu0 0.0
    %1984 = vmatpush.msra.mxu0 %v327
    %1985 = vmatpush.msra.mxu0 %v326
    %1986 = vmatpush.msra.mxu0 %v325
    %1987 = vmatpush.msra.mxu0 %v324
    %1988 = vmatmul.f32.gmra.mxu0 %v1970
    %v1989 = vpop.f32.mrf.mxu0
    %v1990 = vadd.f32 0.0, %v1989
    %1991 = vdwg.mxu0
    %v1992 = vadd.f32 %v1966, %v1990
    %v1993 = vxor.u32 %v1992, 2147483648
    %v1994 = vmul.f32 %v1993, 1.442695
    %v1995 = vpow.pop %v1994
    %v1996 = vadd.f32 %v1995, 1.0
    %v1997 = vrcp.pop %v1996
    %v1998 = vmul.f32 %v1996, %v1997
    %v1999 = vsub.f32 1.0, %v1998
    %v2000 = vmul.f32 %v1997, %v1999
    %v2001 = vadd.f32 %v1997, %v2000
    %vm2002 = vweird.f32 %v1996
    %vm2003 = vweird.f32 %v1997
    %vm2004 = vmor %vm2002, %vm2003
    %v2005 = vsel %vm2004, %v1997, %v2001
    %v2006 = vand.u32 2147483647, %v1996
    %vm2007 = vcmp.eq.f32.partialorder %v2006, 8.507059e+37
    %v2008 = vand.u32 %v1996, 2147483648
    %v2009 = vor.u32 1.1754944e-38, %v2008
    %v2010 = vsel %vm2007, %v2009, %v2005
    %v2011 = vmul.f32 1.0, %v2010
    %v2012 = vadd.f32 %v1990, %v378
    %2014 = vrot.lane.b32.xlu0 %v2012, 64
    %v2015 = vpop.permute.xlu0 %2014
    %v2017 = vmul.f32 %v2011, %v2015
    %2019 = vrot.lane.b32.xlu0 %v2017, 64
    %v2020 = vpop.permute.xlu0 %2019
    %v2022 = vadd.f32 %v1966, %v2020
    %v2023 = vtanh.pop %v2022
    %v2024 = vsub.f32 %v1960, %v2023
    %2026 = vrot.lane.b32.xlu0 %v2024, 96
    %v2027 = vpop.permute.xlu0 %2026
    %v2029 = vmul.f32 %v2011, %v2027
    %2031 = vrot.lane.b32.xlu0 %v2029, 32
    %v2032 = vpop.permute.xlu0 %2031
    %v2034 = vadd.f32 %v2023, %v2032
    %s2035 = sld [smem:[#allocation4 + $0x16]]
    %v2036 = vstv %s2035
    %v2037 = vmul.f32 %v2034, %v2036
    %v2038 = vadd.f32 %v1964, %v2037
    %s2039 = scalar_lea.vmem [#allocation2], 184
    %v2040 = vld [vmem:[%s2039] sm:$0xff]
    %2042 = vrot.lane.b32.xlu0 %v2034, 64
    %v2043 = vpop.permute.xlu0 %2042
    %v2044 = vsel %vm331, %v2043, 0
    %2046 = vmatpush.msra.mxu0 0.0
    %2047 = vmatpush.msra.mxu0 0.0
    %2048 = vmatpush.msra.mxu0 0.0
    %2049 = vmatpush.msra.mxu0 0.0
    %2050 = vmatpush.msra.mxu0 0.0
    %2051 = vmatpush.msra.mxu0 0.0
    %2052 = vmatpush.msra.mxu0 0.0
    %2053 = vmatpush.msra.mxu0 0.0
    %2054 = vmatpush.msra.mxu0 0.0
    %2055 = vmatpush.msra.mxu0 0.0
    %2056 = vmatpush.msra.mxu0 0.0
    %2057 = vmatpush.msra.mxu0 0.0
    %2058 = vmatpush.msra.mxu0 %v327
    %2059 = vmatpush.msra.mxu0 %v326
    %2060 = vmatpush.msra.mxu0 %v325
    %2061 = vmatpush.msra.mxu0 %v324
    %2062 = vmatmul.f32.gmra.mxu0 %v2044
    %v2063 = vpop.f32.mrf.mxu0
    %v2064 = vadd.f32 0.0, %v2063
    %2065 = vdwg.mxu0
    %v2066 = vadd.f32 %v2040, %v2064
    %v2067 = vxor.u32 %v2066, 2147483648
    %v2068 = vmul.f32 %v2067, 1.442695
    %v2069 = vpow.pop %v2068
    %v2070 = vadd.f32 %v2069, 1.0
    %v2071 = vrcp.pop %v2070
    %v2072 = vmul.f32 %v2070, %v2071
    %v2073 = vsub.f32 1.0, %v2072
    %v2074 = vmul.f32 %v2071, %v2073
    %v2075 = vadd.f32 %v2071, %v2074
    %vm2076 = vweird.f32 %v2070
    %vm2077 = vweird.f32 %v2071
    %vm2078 = vmor %vm2076, %vm2077
    %v2079 = vsel %vm2078, %v2071, %v2075
    %v2080 = vand.u32 2147483647, %v2070
    %vm2081 = vcmp.eq.f32.partialorder %v2080, 8.507059e+37
    %v2082 = vand.u32 %v2070, 2147483648
    %v2083 = vor.u32 1.1754944e-38, %v2082
    %v2084 = vsel %vm2081, %v2083, %v2079
    %v2085 = vmul.f32 1.0, %v2084
    %v2086 = vadd.f32 %v2064, %v378
    %2088 = vrot.lane.b32.xlu0 %v2086, 64
    %v2089 = vpop.permute.xlu0 %2088
    %v2091 = vmul.f32 %v2085, %v2089
    %2093 = vrot.lane.b32.xlu0 %v2091, 64
    %v2094 = vpop.permute.xlu0 %2093
    %v2096 = vadd.f32 %v2040, %v2094
    %v2097 = vtanh.pop %v2096
    %v2098 = vsub.f32 %v2034, %v2097
    %2100 = vrot.lane.b32.xlu0 %v2098, 96
    %v2101 = vpop.permute.xlu0 %2100
    %v2103 = vmul.f32 %v2085, %v2101
    %2105 = vrot.lane.b32.xlu0 %v2103, 32
    %v2106 = vpop.permute.xlu0 %2105
    %v2108 = vadd.f32 %v2097, %v2106
    %s2109 = sld [smem:[#allocation4 + $0x17]]
    %v2110 = vstv %s2109
    %v2111 = vmul.f32 %v2108, %v2110
    %v2112 = vadd.f32 %v2038, %v2111
    %s2113 = scalar_lea.vmem [#allocation2], 192
    %v2114 = vld [vmem:[%s2113] sm:$0xff]
    %2116 = vrot.lane.b32.xlu0 %v2108, 64
    %v2117 = vpop.permute.xlu0 %2116
    %v2118 = vsel %vm331, %v2117, 0
    %2120 = vmatpush.msra.mxu0 0.0
    %2121 = vmatpush.msra.mxu0 0.0
    %2122 = vmatpush.msra.mxu0 0.0
    %2123 = vmatpush.msra.mxu0 0.0
    %2124 = vmatpush.msra.mxu0 0.0
    %2125 = vmatpush.msra.mxu0 0.0
    %2126 = vmatpush.msra.mxu0 0.0
    %2127 = vmatpush.msra.mxu0 0.0
    %2128 = vmatpush.msra.mxu0 0.0
    %2129 = vmatpush.msra.mxu0 0.0
    %2130 = vmatpush.msra.mxu0 0.0
    %2131 = vmatpush.msra.mxu0 0.0
    %2132 = vmatpush.msra.mxu0 %v327
    %2133 = vmatpush.msra.mxu0 %v326
    %2134 = vmatpush.msra.mxu0 %v325
    %2135 = vmatpush.msra.mxu0 %v324
    %2136 = vmatmul.f32.gmra.mxu0 %v2118
    %v2137 = vpop.f32.mrf.mxu0
    %v2138 = vadd.f32 0.0, %v2137
    %2139 = vdwg.mxu0
    %v2140 = vadd.f32 %v2114, %v2138
    %v2141 = vxor.u32 %v2140, 2147483648
    %v2142 = vmul.f32 %v2141, 1.442695
    %v2143 = vpow.pop %v2142
    %v2144 = vadd.f32 %v2143, 1.0
    %v2145 = vrcp.pop %v2144
    %v2146 = vmul.f32 %v2144, %v2145
    %v2147 = vsub.f32 1.0, %v2146
    %v2148 = vmul.f32 %v2145, %v2147
    %v2149 = vadd.f32 %v2145, %v2148
    %vm2150 = vweird.f32 %v2144
    %vm2151 = vweird.f32 %v2145
    %vm2152 = vmor %vm2150, %vm2151
    %v2153 = vsel %vm2152, %v2145, %v2149
    %v2154 = vand.u32 2147483647, %v2144
    %vm2155 = vcmp.eq.f32.partialorder %v2154, 8.507059e+37
    %v2156 = vand.u32 %v2144, 2147483648
    %v2157 = vor.u32 1.1754944e-38, %v2156
    %v2158 = vsel %vm2155, %v2157, %v2153
    %v2159 = vmul.f32 1.0, %v2158
    %v2160 = vadd.f32 %v2138, %v378
    %2162 = vrot.lane.b32.xlu0 %v2160, 64
    %v2163 = vpop.permute.xlu0 %2162
    %v2165 = vmul.f32 %v2159, %v2163
    %2167 = vrot.lane.b32.xlu0 %v2165, 64
    %v2168 = vpop.permute.xlu0 %2167
    %v2170 = vadd.f32 %v2114, %v2168
    %v2171 = vtanh.pop %v2170
    %v2172 = vsub.f32 %v2108, %v2171
    %2174 = vrot.lane.b32.xlu0 %v2172, 96
    %v2175 = vpop.permute.xlu0 %2174
    %v2177 = vmul.f32 %v2159, %v2175
    %2179 = vrot.lane.b32.xlu0 %v2177, 32
    %v2180 = vpop.permute.xlu0 %2179
    %v2182 = vadd.f32 %v2171, %v2180
    %s2183 = sld [smem:[#allocation4 + $0x18]]
    %v2184 = vstv %s2183
    %v2185 = vmul.f32 %v2182, %v2184
    %v2186 = vadd.f32 %v2112, %v2185
    %s2187 = scalar_lea.vmem [#allocation2], 200
    %v2188 = vld [vmem:[%s2187] sm:$0xff]
    %2190 = vrot.lane.b32.xlu0 %v2182, 64
    %v2191 = vpop.permute.xlu0 %2190
    %v2192 = vsel %vm331, %v2191, 0
    %2194 = vmatpush.msra.mxu0 0.0
    %2195 = vmatpush.msra.mxu0 0.0
    %2196 = vmatpush.msra.mxu0 0.0
    %2197 = vmatpush.msra.mxu0 0.0
    %2198 = vmatpush.msra.mxu0 0.0
    %2199 = vmatpush.msra.mxu0 0.0
    %2200 = vmatpush.msra.mxu0 0.0
    %2201 = vmatpush.msra.mxu0 0.0
    %2202 = vmatpush.msra.mxu0 0.0
    %2203 = vmatpush.msra.mxu0 0.0
    %2204 = vmatpush.msra.mxu0 0.0
    %2205 = vmatpush.msra.mxu0 0.0
    %2206 = vmatpush.msra.mxu0 %v327
    %2207 = vmatpush.msra.mxu0 %v326
    %2208 = vmatpush.msra.mxu0 %v325
    %2209 = vmatpush.msra.mxu0 %v324
    %2210 = vmatmul.f32.gmra.mxu0 %v2192
    %v2211 = vpop.f32.mrf.mxu0
    %v2212 = vadd.f32 0.0, %v2211
    %2213 = vdwg.mxu0
    %v2214 = vadd.f32 %v2188, %v2212
    %v2215 = vxor.u32 %v2214, 2147483648
    %v2216 = vmul.f32 %v2215, 1.442695
    %v2217 = vpow.pop %v2216
    %v2218 = vadd.f32 %v2217, 1.0
    %v2219 = vrcp.pop %v2218
    %v2220 = vmul.f32 %v2218, %v2219
    %v2221 = vsub.f32 1.0, %v2220
    %v2222 = vmul.f32 %v2219, %v2221
    %v2223 = vadd.f32 %v2219, %v2222
    %vm2224 = vweird.f32 %v2218
    %vm2225 = vweird.f32 %v2219
    %vm2226 = vmor %vm2224, %vm2225
    %v2227 = vsel %vm2226, %v2219, %v2223
    %v2228 = vand.u32 2147483647, %v2218
    %vm2229 = vcmp.eq.f32.partialorder %v2228, 8.507059e+37
    %v2230 = vand.u32 %v2218, 2147483648
    %v2231 = vor.u32 1.1754944e-38, %v2230
    %v2232 = vsel %vm2229, %v2231, %v2227
    %v2233 = vmul.f32 1.0, %v2232
    %v2234 = vadd.f32 %v2212, %v378
    %2236 = vrot.lane.b32.xlu0 %v2234, 64
    %v2237 = vpop.permute.xlu0 %2236
    %v2239 = vmul.f32 %v2233, %v2237
    %2241 = vrot.lane.b32.xlu0 %v2239, 64
    %v2242 = vpop.permute.xlu0 %2241
    %v2244 = vadd.f32 %v2188, %v2242
    %v2245 = vtanh.pop %v2244
    %v2246 = vsub.f32 %v2182, %v2245
    %2248 = vrot.lane.b32.xlu0 %v2246, 96
    %v2249 = vpop.permute.xlu0 %2248
    %v2251 = vmul.f32 %v2233, %v2249
    %2253 = vrot.lane.b32.xlu0 %v2251, 32
    %v2254 = vpop.permute.xlu0 %2253
    %v2256 = vadd.f32 %v2245, %v2254
    %s2257 = sld [smem:[#allocation4 + $0x19]]
    %v2258 = vstv %s2257
    %v2259 = vmul.f32 %v2256, %v2258
    %v2260 = vadd.f32 %v2186, %v2259
    %s2261 = scalar_lea.vmem [#allocation2], 208
    %v2262 = vld [vmem:[%s2261] sm:$0xff]
    %2264 = vrot.lane.b32.xlu0 %v2256, 64
    %v2265 = vpop.permute.xlu0 %2264
    %v2266 = vsel %vm331, %v2265, 0
    %2268 = vmatpush.msra.mxu0 0.0
    %2269 = vmatpush.msra.mxu0 0.0
    %2270 = vmatpush.msra.mxu0 0.0
    %2271 = vmatpush.msra.mxu0 0.0
    %2272 = vmatpush.msra.mxu0 0.0
    %2273 = vmatpush.msra.mxu0 0.0
    %2274 = vmatpush.msra.mxu0 0.0
    %2275 = vmatpush.msra.mxu0 0.0
    %2276 = vmatpush.msra.mxu0 0.0
    %2277 = vmatpush.msra.mxu0 0.0
    %2278 = vmatpush.msra.mxu0 0.0
    %2279 = vmatpush.msra.mxu0 0.0
    %2280 = vmatpush.msra.mxu0 %v327
    %2281 = vmatpush.msra.mxu0 %v326
    %2282 = vmatpush.msra.mxu0 %v325
    %2283 = vmatpush.msra.mxu0 %v324
    %2284 = vmatmul.f32.gmra.mxu0 %v2266
    %v2285 = vpop.f32.mrf.mxu0
    %v2286 = vadd.f32 0.0, %v2285
    %2287 = vdwg.mxu0
    %v2288 = vadd.f32 %v2262, %v2286
    %v2289 = vxor.u32 %v2288, 2147483648
    %v2290 = vmul.f32 %v2289, 1.442695
    %v2291 = vpow.pop %v2290
    %v2292 = vadd.f32 %v2291, 1.0
    %v2293 = vrcp.pop %v2292
    %v2294 = vmul.f32 %v2292, %v2293
    %v2295 = vsub.f32 1.0, %v2294
    %v2296 = vmul.f32 %v2293, %v2295
    %v2297 = vadd.f32 %v2293, %v2296
    %vm2298 = vweird.f32 %v2292
    %vm2299 = vweird.f32 %v2293
    %vm2300 = vmor %vm2298, %vm2299
    %v2301 = vsel %vm2300, %v2293, %v2297
    %v2302 = vand.u32 2147483647, %v2292
    %vm2303 = vcmp.eq.f32.partialorder %v2302, 8.507059e+37
    %v2304 = vand.u32 %v2292, 2147483648
    %v2305 = vor.u32 1.1754944e-38, %v2304
    %v2306 = vsel %vm2303, %v2305, %v2301
    %v2307 = vmul.f32 1.0, %v2306
    %v2308 = vadd.f32 %v2286, %v378
    %2310 = vrot.lane.b32.xlu0 %v2308, 64
    %v2311 = vpop.permute.xlu0 %2310
    %v2313 = vmul.f32 %v2307, %v2311
    %2315 = vrot.lane.b32.xlu0 %v2313, 64
    %v2316 = vpop.permute.xlu0 %2315
    %v2318 = vadd.f32 %v2262, %v2316
    %v2319 = vtanh.pop %v2318
    %v2320 = vsub.f32 %v2256, %v2319
    %2322 = vrot.lane.b32.xlu0 %v2320, 96
    %v2323 = vpop.permute.xlu0 %2322
    %v2325 = vmul.f32 %v2307, %v2323
    %2327 = vrot.lane.b32.xlu0 %v2325, 32
    %v2328 = vpop.permute.xlu0 %2327
    %v2330 = vadd.f32 %v2319, %v2328
    %s2331 = sld [smem:[#allocation4 + $0x1a]]
    %v2332 = vstv %s2331
    %v2333 = vmul.f32 %v2330, %v2332
    %v2334 = vadd.f32 %v2260, %v2333
    %s2335 = scalar_lea.vmem [#allocation2], 216
    %v2336 = vld [vmem:[%s2335] sm:$0xff]
    %2338 = vrot.lane.b32.xlu0 %v2330, 64
    %v2339 = vpop.permute.xlu0 %2338
    %v2340 = vsel %vm331, %v2339, 0
    %2342 = vmatpush.msra.mxu0 0.0
    %2343 = vmatpush.msra.mxu0 0.0
    %2344 = vmatpush.msra.mxu0 0.0
    %2345 = vmatpush.msra.mxu0 0.0
    %2346 = vmatpush.msra.mxu0 0.0
    %2347 = vmatpush.msra.mxu0 0.0
    %2348 = vmatpush.msra.mxu0 0.0
    %2349 = vmatpush.msra.mxu0 0.0
    %2350 = vmatpush.msra.mxu0 0.0
    %2351 = vmatpush.msra.mxu0 0.0
    %2352 = vmatpush.msra.mxu0 0.0
    %2353 = vmatpush.msra.mxu0 0.0
    %2354 = vmatpush.msra.mxu0 %v327
    %2355 = vmatpush.msra.mxu0 %v326
    %2356 = vmatpush.msra.mxu0 %v325
    %2357 = vmatpush.msra.mxu0 %v324
    %2358 = vmatmul.f32.gmra.mxu0 %v2340
    %v2359 = vpop.f32.mrf.mxu0
    %v2360 = vadd.f32 0.0, %v2359
    %2361 = vdwg.mxu0
    %v2362 = vadd.f32 %v2336, %v2360
    %v2363 = vxor.u32 %v2362, 2147483648
    %v2364 = vmul.f32 %v2363, 1.442695
    %v2365 = vpow.pop %v2364
    %v2366 = vadd.f32 %v2365, 1.0
    %v2367 = vrcp.pop %v2366
    %v2368 = vmul.f32 %v2366, %v2367
    %v2369 = vsub.f32 1.0, %v2368
    %v2370 = vmul.f32 %v2367, %v2369
    %v2371 = vadd.f32 %v2367, %v2370
    %vm2372 = vweird.f32 %v2366
    %vm2373 = vweird.f32 %v2367
    %vm2374 = vmor %vm2372, %vm2373
    %v2375 = vsel %vm2374, %v2367, %v2371
    %v2376 = vand.u32 2147483647, %v2366
    %vm2377 = vcmp.eq.f32.partialorder %v2376, 8.507059e+37
    %v2378 = vand.u32 %v2366, 2147483648
    %v2379 = vor.u32 1.1754944e-38, %v2378
    %v2380 = vsel %vm2377, %v2379, %v2375
    %v2381 = vmul.f32 1.0, %v2380
    %v2382 = vadd.f32 %v2360, %v378
    %2384 = vrot.lane.b32.xlu0 %v2382, 64
    %v2385 = vpop.permute.xlu0 %2384
    %v2387 = vmul.f32 %v2381, %v2385
    %2389 = vrot.lane.b32.xlu0 %v2387, 64
    %v2390 = vpop.permute.xlu0 %2389
    %v2392 = vadd.f32 %v2336, %v2390
    %v2393 = vtanh.pop %v2392
    %v2394 = vsub.f32 %v2330, %v2393
    %2396 = vrot.lane.b32.xlu0 %v2394, 96
    %v2397 = vpop.permute.xlu0 %2396
    %v2399 = vmul.f32 %v2381, %v2397
    %2401 = vrot.lane.b32.xlu0 %v2399, 32
    %v2402 = vpop.permute.xlu0 %2401
    %v2404 = vadd.f32 %v2393, %v2402
    %s2405 = sld [smem:[#allocation4 + $0x1b]]
    %v2406 = vstv %s2405
    %v2407 = vmul.f32 %v2404, %v2406
    %v2408 = vadd.f32 %v2334, %v2407
    %s2409 = scalar_lea.vmem [#allocation2], 224
    %v2410 = vld [vmem:[%s2409] sm:$0xff]
    %2412 = vrot.lane.b32.xlu0 %v2404, 64
    %v2413 = vpop.permute.xlu0 %2412
    %v2414 = vsel %vm331, %v2413, 0
    %2416 = vmatpush.msra.mxu0 0.0
    %2417 = vmatpush.msra.mxu0 0.0
    %2418 = vmatpush.msra.mxu0 0.0
    %2419 = vmatpush.msra.mxu0 0.0
    %2420 = vmatpush.msra.mxu0 0.0
    %2421 = vmatpush.msra.mxu0 0.0
    %2422 = vmatpush.msra.mxu0 0.0
    %2423 = vmatpush.msra.mxu0 0.0
    %2424 = vmatpush.msra.mxu0 0.0
    %2425 = vmatpush.msra.mxu0 0.0
    %2426 = vmatpush.msra.mxu0 0.0
    %2427 = vmatpush.msra.mxu0 0.0
    %2428 = vmatpush.msra.mxu0 %v327
    %2429 = vmatpush.msra.mxu0 %v326
    %2430 = vmatpush.msra.mxu0 %v325
    %2431 = vmatpush.msra.mxu0 %v324
    %2432 = vmatmul.f32.gmra.mxu0 %v2414
    %v2433 = vpop.f32.mrf.mxu0
    %v2434 = vadd.f32 0.0, %v2433
    %2435 = vdwg.mxu0
    %v2436 = vadd.f32 %v2410, %v2434
    %v2437 = vxor.u32 %v2436, 2147483648
    %v2438 = vmul.f32 %v2437, 1.442695
    %v2439 = vpow.pop %v2438
    %v2440 = vadd.f32 %v2439, 1.0
    %v2441 = vrcp.pop %v2440
    %v2442 = vmul.f32 %v2440, %v2441
    %v2443 = vsub.f32 1.0, %v2442
    %v2444 = vmul.f32 %v2441, %v2443
    %v2445 = vadd.f32 %v2441, %v2444
    %vm2446 = vweird.f32 %v2440
    %vm2447 = vweird.f32 %v2441
    %vm2448 = vmor %vm2446, %vm2447
    %v2449 = vsel %vm2448, %v2441, %v2445
    %v2450 = vand.u32 2147483647, %v2440
    %vm2451 = vcmp.eq.f32.partialorder %v2450, 8.507059e+37
    %v2452 = vand.u32 %v2440, 2147483648
    %v2453 = vor.u32 1.1754944e-38, %v2452
    %v2454 = vsel %vm2451, %v2453, %v2449
    %v2455 = vmul.f32 1.0, %v2454
    %v2456 = vadd.f32 %v2434, %v378
    %2458 = vrot.lane.b32.xlu0 %v2456, 64
    %v2459 = vpop.permute.xlu0 %2458
    %v2461 = vmul.f32 %v2455, %v2459
    %2463 = vrot.lane.b32.xlu0 %v2461, 64
    %v2464 = vpop.permute.xlu0 %2463
    %v2466 = vadd.f32 %v2410, %v2464
    %v2467 = vtanh.pop %v2466
    %v2468 = vsub.f32 %v2404, %v2467
    %2470 = vrot.lane.b32.xlu0 %v2468, 96
    %v2471 = vpop.permute.xlu0 %2470
    %v2473 = vmul.f32 %v2455, %v2471
    %2475 = vrot.lane.b32.xlu0 %v2473, 32
    %v2476 = vpop.permute.xlu0 %2475
    %v2478 = vadd.f32 %v2467, %v2476
    %s2479 = sld [smem:[#allocation4 + $0x1c]]
    %v2480 = vstv %s2479
    %v2481 = vmul.f32 %v2478, %v2480
    %v2482 = vadd.f32 %v2408, %v2481
    %s2483 = scalar_lea.vmem [#allocation2], 232
    %v2484 = vld [vmem:[%s2483] sm:$0xff]
    %2486 = vrot.lane.b32.xlu0 %v2478, 64
    %v2487 = vpop.permute.xlu0 %2486
    %v2488 = vsel %vm331, %v2487, 0
    %2490 = vmatpush.msra.mxu0 0.0
    %2491 = vmatpush.msra.mxu0 0.0
    %2492 = vmatpush.msra.mxu0 0.0
    %2493 = vmatpush.msra.mxu0 0.0
    %2494 = vmatpush.msra.mxu0 0.0
    %2495 = vmatpush.msra.mxu0 0.0
    %2496 = vmatpush.msra.mxu0 0.0
    %2497 = vmatpush.msra.mxu0 0.0
    %2498 = vmatpush.msra.mxu0 0.0
    %2499 = vmatpush.msra.mxu0 0.0
    %2500 = vmatpush.msra.mxu0 0.0
    %2501 = vmatpush.msra.mxu0 0.0
    %2502 = vmatpush.msra.mxu0 %v327
    %2503 = vmatpush.msra.mxu0 %v326
    %2504 = vmatpush.msra.mxu0 %v325
    %2505 = vmatpush.msra.mxu0 %v324
    %2506 = vmatmul.f32.gmra.mxu0 %v2488
    %v2507 = vpop.f32.mrf.mxu0
    %v2508 = vadd.f32 0.0, %v2507
    %2509 = vdwg.mxu0
    %v2510 = vadd.f32 %v2484, %v2508
    %v2511 = vxor.u32 %v2510, 2147483648
    %v2512 = vmul.f32 %v2511, 1.442695
    %v2513 = vpow.pop %v2512
    %v2514 = vadd.f32 %v2513, 1.0
    %v2515 = vrcp.pop %v2514
    %v2516 = vmul.f32 %v2514, %v2515
    %v2517 = vsub.f32 1.0, %v2516
    %v2518 = vmul.f32 %v2515, %v2517
    %v2519 = vadd.f32 %v2515, %v2518
    %vm2520 = vweird.f32 %v2514
    %vm2521 = vweird.f32 %v2515
    %vm2522 = vmor %vm2520, %vm2521
    %v2523 = vsel %vm2522, %v2515, %v2519
    %v2524 = vand.u32 2147483647, %v2514
    %vm2525 = vcmp.eq.f32.partialorder %v2524, 8.507059e+37
    %v2526 = vand.u32 %v2514, 2147483648
    %v2527 = vor.u32 1.1754944e-38, %v2526
    %v2528 = vsel %vm2525, %v2527, %v2523
    %v2529 = vmul.f32 1.0, %v2528
    %v2530 = vadd.f32 %v2508, %v378
    %2532 = vrot.lane.b32.xlu0 %v2530, 64
    %v2533 = vpop.permute.xlu0 %2532
    %v2535 = vmul.f32 %v2529, %v2533
    %2537 = vrot.lane.b32.xlu0 %v2535, 64
    %v2538 = vpop.permute.xlu0 %2537
    %v2540 = vadd.f32 %v2484, %v2538
    %v2541 = vtanh.pop %v2540
    %v2542 = vsub.f32 %v2478, %v2541
    %2544 = vrot.lane.b32.xlu0 %v2542, 96
    %v2545 = vpop.permute.xlu0 %2544
    %v2547 = vmul.f32 %v2529, %v2545
    %2549 = vrot.lane.b32.xlu0 %v2547, 32
    %v2550 = vpop.permute.xlu0 %2549
    %v2552 = vadd.f32 %v2541, %v2550
    %s2553 = sld [smem:[#allocation4 + $0x1d]]
    %v2554 = vstv %s2553
    %v2555 = vmul.f32 %v2552, %v2554
    %v2556 = vadd.f32 %v2482, %v2555
    %s2557 = scalar_lea.vmem [#allocation2], 240
    %v2558 = vld [vmem:[%s2557] sm:$0xff]
    %2560 = vrot.lane.b32.xlu0 %v2552, 64
    %v2561 = vpop.permute.xlu0 %2560
    %v2562 = vsel %vm331, %v2561, 0
    %2564 = vmatpush.msra.mxu0 0.0
    %2565 = vmatpush.msra.mxu0 0.0
    %2566 = vmatpush.msra.mxu0 0.0
    %2567 = vmatpush.msra.mxu0 0.0
    %2568 = vmatpush.msra.mxu0 0.0
    %2569 = vmatpush.msra.mxu0 0.0
    %2570 = vmatpush.msra.mxu0 0.0
    %2571 = vmatpush.msra.mxu0 0.0
    %2572 = vmatpush.msra.mxu0 0.0
    %2573 = vmatpush.msra.mxu0 0.0
    %2574 = vmatpush.msra.mxu0 0.0
    %2575 = vmatpush.msra.mxu0 0.0
    %2576 = vmatpush.msra.mxu0 %v327
    %2577 = vmatpush.msra.mxu0 %v326
    %2578 = vmatpush.msra.mxu0 %v325
    %2579 = vmatpush.msra.mxu0 %v324
    %2580 = vmatmul.f32.gmra.mxu0 %v2562
    %v2581 = vpop.f32.mrf.mxu0
    %v2582 = vadd.f32 0.0, %v2581
    %2583 = vdwg.mxu0
    %v2584 = vadd.f32 %v2558, %v2582
    %v2585 = vxor.u32 %v2584, 2147483648
    %v2586 = vmul.f32 %v2585, 1.442695
    %v2587 = vpow.pop %v2586
    %v2588 = vadd.f32 %v2587, 1.0
    %v2589 = vrcp.pop %v2588
    %v2590 = vmul.f32 %v2588, %v2589
    %v2591 = vsub.f32 1.0, %v2590
    %v2592 = vmul.f32 %v2589, %v2591
    %v2593 = vadd.f32 %v2589, %v2592
    %vm2594 = vweird.f32 %v2588
    %vm2595 = vweird.f32 %v2589
    %vm2596 = vmor %vm2594, %vm2595
    %v2597 = vsel %vm2596, %v2589, %v2593
    %v2598 = vand.u32 2147483647, %v2588
    %vm2599 = vcmp.eq.f32.partialorder %v2598, 8.507059e+37
    %v2600 = vand.u32 %v2588, 2147483648
    %v2601 = vor.u32 1.1754944e-38, %v2600
    %v2602 = vsel %vm2599, %v2601, %v2597
    %v2603 = vmul.f32 1.0, %v2602
    %v2604 = vadd.f32 %v2582, %v378
    %2606 = vrot.lane.b32.xlu0 %v2604, 64
    %v2607 = vpop.permute.xlu0 %2606
    %v2609 = vmul.f32 %v2603, %v2607
    %2611 = vrot.lane.b32.xlu0 %v2609, 64
    %v2612 = vpop.permute.xlu0 %2611
    %v2614 = vadd.f32 %v2558, %v2612
    %v2615 = vtanh.pop %v2614
    %v2616 = vsub.f32 %v2552, %v2615
    %2618 = vrot.lane.b32.xlu0 %v2616, 96
    %v2619 = vpop.permute.xlu0 %2618
    %v2621 = vmul.f32 %v2603, %v2619
    %2623 = vrot.lane.b32.xlu0 %v2621, 32
    %v2624 = vpop.permute.xlu0 %2623
    %v2626 = vadd.f32 %v2615, %v2624
    %s2627 = sld [smem:[#allocation4 + $0x1e]]
    %v2628 = vstv %s2627
    %v2629 = vmul.f32 %v2626, %v2628
    %v2630 = vadd.f32 %v2556, %v2629
    %s2631 = scalar_lea.vmem [#allocation2], 248
    %v2632 = vld [vmem:[%s2631] sm:$0xff]
    %2634 = vrot.lane.b32.xlu0 %v2626, 64
    %v2635 = vpop.permute.xlu0 %2634
    %v2636 = vsel %vm331, %v2635, 0
    %2638 = vmatpush.msra.mxu0 0.0
    %2639 = vmatpush.msra.mxu0 0.0
    %2640 = vmatpush.msra.mxu0 0.0
    %2641 = vmatpush.msra.mxu0 0.0
    %2642 = vmatpush.msra.mxu0 0.0
    %2643 = vmatpush.msra.mxu0 0.0
    %2644 = vmatpush.msra.mxu0 0.0
    %2645 = vmatpush.msra.mxu0 0.0
    %2646 = vmatpush.msra.mxu0 0.0
    %2647 = vmatpush.msra.mxu0 0.0
    %2648 = vmatpush.msra.mxu0 0.0
    %2649 = vmatpush.msra.mxu0 0.0
    %2650 = vmatpush.msra.mxu0 %v327
    %2651 = vmatpush.msra.mxu0 %v326
    %2652 = vmatpush.msra.mxu0 %v325
    %2653 = vmatpush.msra.mxu0 %v324
    %2654 = vmatmul.f32.gmra.mxu0 %v2636
    %v2655 = vpop.f32.mrf.mxu0
    %v2656 = vadd.f32 0.0, %v2655
    %2657 = vdwg.mxu0
    %v2658 = vadd.f32 %v2632, %v2656
    %v2659 = vxor.u32 %v2658, 2147483648
    %v2660 = vmul.f32 %v2659, 1.442695
    %v2661 = vpow.pop %v2660
    %v2662 = vadd.f32 %v2661, 1.0
    %v2663 = vrcp.pop %v2662
    %v2664 = vmul.f32 %v2662, %v2663
    %v2665 = vsub.f32 1.0, %v2664
    %v2666 = vmul.f32 %v2663, %v2665
    %v2667 = vadd.f32 %v2663, %v2666
    %vm2668 = vweird.f32 %v2662
    %vm2669 = vweird.f32 %v2663
    %vm2670 = vmor %vm2668, %vm2669
    %v2671 = vsel %vm2670, %v2663, %v2667
    %v2672 = vand.u32 2147483647, %v2662
    %vm2673 = vcmp.eq.f32.partialorder %v2672, 8.507059e+37
    %v2674 = vand.u32 %v2662, 2147483648
    %v2675 = vor.u32 1.1754944e-38, %v2674
    %v2676 = vsel %vm2673, %v2675, %v2671
    %v2677 = vmul.f32 1.0, %v2676
    %v2678 = vadd.f32 %v2656, %v378
    %2680 = vrot.lane.b32.xlu0 %v2678, 64
    %v2681 = vpop.permute.xlu0 %2680
    %v2683 = vmul.f32 %v2677, %v2681
    %2685 = vrot.lane.b32.xlu0 %v2683, 64
    %v2686 = vpop.permute.xlu0 %2685
    %v2688 = vadd.f32 %v2632, %v2686
    %v2689 = vtanh.pop %v2688
    %v2690 = vsub.f32 %v2626, %v2689
    %2692 = vrot.lane.b32.xlu0 %v2690, 96
    %v2693 = vpop.permute.xlu0 %2692
    %v2695 = vmul.f32 %v2677, %v2693
    %2697 = vrot.lane.b32.xlu0 %v2695, 32
    %v2698 = vpop.permute.xlu0 %2697
    %v2700 = vadd.f32 %v2689, %v2698
    %s2701 = sld [smem:[#allocation4 + $0x1f]]
    %v2702 = vstv %s2701
    %v2703 = vmul.f32 %v2700, %v2702
    %v2704 = vadd.f32 %v2630, %v2703
    %s2705 = sld [smem:[#allocation3]]
    %v2706 = vstv %s2705
    %v2707 = vadd.f32 %v2704, %v2706
    %2709 = vrot.lane.b32.xlu0 %v2707, 33
    %v2710 = vpop.permute.xlu0 %2709
    %vm2712 = vcmask 7168
    %2713 = vst.msk [vmem:[%s8] sm:$0xff] %vm2712, %v2710
    // Predicated region
    $region38: #{rnn_forward.1} parent=1 // pred_check
      _
    $region39: #{rnn_forward.1} parent=1 // pred_check_branch
      %2715 = sbr.rel (0) target = $region41
    $region40: #{rnn_forward.1} parent=1 // pred_region
      _
    $region41: #{rnn_forward.1} parent=1 // pred_fallthru
      _
    // Predicated region
    $region42: #{rnn_forward.1} parent=1 // pred_check
      _
    $region43: #{rnn_forward.1} parent=1 // pred_check_branch
      %2717 = sbr.rel (0) target = $region45
    $region44: #{rnn_forward.1} parent=1 // pred_region
      _
    $region45: #{rnn_forward.1} parent=1 // pred_fallthru
      _
    %2718 = vsyncpa [#allocation5], 1

</llo_original>
